<compile_context>
chip_gen: v5e
topology: v5e:2x2
jax: 0.10.0
libtpu: 0.0.40
codegen_flags: <defaults>
</compile_context>

<pallas_src>
import functools

import jax
import jax.numpy as jnp
from jax.experimental import pallas as pl
from jax.experimental.pallas import tpu as pltpu

HIDDEN1 = 1024
HIDDEN2 = 512
LANE = 128
SUBLANE = 8

_SINGLE_BUFFER_WEIGHTS_OK = True  # flipped off if pl.Buffered(1) is rejected


def _round_up(x, m):
    return (x + m - 1) // m * m


def _cdiv(a, b):
    return -(-a // b)


def _epilogue_dtype(compute_dtype):
    """bf16 bias+ReLU epilogue on v6e/v7x (bf16 VALU); f32 elsewhere (v5e has no bf16 VPU)."""
    if compute_dtype != jnp.bfloat16:
        return jnp.float32
    try:
        kind = jax.devices()[0].device_kind.lower()
    except Exception:
        kind = ""
    return jnp.bfloat16 if ("v6" in kind or "v7" in kind) else jnp.float32


def _choose_batch_tile(batch, block_b):
    """Balanced batch tiles: minimize zero-row padding for ragged B."""
    num_steps = max(1, _cdiv(batch, block_b))
    # v7x has 2 TensorCores: give the runtime >=2 grid steps to shard across
    # them whenever each half-tile still fills the MXU M dimension (>=128 rows).
    if num_steps == 1 and batch >= 2 * LANE:
        num_steps = 2
    return _round_up(_cdiv(batch, num_steps), SUBLANE)


def _mlp_kernel(x_ref, w1_ref, b1_ref, w2_ref, b2_ref, w3_ref, b3_ref, o_ref):
    """Fused fc1+ReLU -> fc2+ReLU -> fc3+sigmoid for one batch tile.

    MXU inputs are in the weight dtype (bf16 default / f32); accumulation is
    always f32 (preferred_element_type). The bias+ReLU epilogue runs in the
    bias dtype: bf16 on v6e/v7x, f32 on v5e. Dropout == identity (eval mode).
    """
    wdt = w1_ref.dtype   # MXU input dtype
    adt = b1_ref.dtype   # epilogue (bias add / ReLU) dtype

    # fc1 + bias + ReLU. (K=input_size deliberately NOT padded: ~5% of FLOPs.)
    h = jnp.dot(x_ref[...], w1_ref[...], preferred_element_type=jnp.float32)
    h = jnp.maximum(h.astype(adt) + b1_ref[...], 0).astype(wdt)

    # fc2 + bias + ReLU (dominant matmul).
    # TODO(synk): evaluate fp8 fc2 weights (per-channel scales) on v7x.
    h = jnp.dot(h, w2_ref[...], preferred_element_type=jnp.float32)
    h = jnp.maximum(h.astype(adt) + b2_ref[...], 0).astype(wdt)

    # fc3 + bias + sigmoid (f32 epilogue; out dim zero-padded to 128 lanes so
    # stores are unmasked/lane-dense; wrapper slices the padding off).
    o = jnp.dot(h, w3_ref[...], preferred_element_type=jnp.float32)
    o_ref[...] = jax.nn.sigmoid(o + b3_ref[...].astype(jnp.float32))


@functools.partial(
    jax.jit,
    static_argnames=("tb", "compute_dtype", "epilogue_dtype", "single_buffer_weights"),
)
def _forward(x, w1, b1, w2, b2, w3, b3, *, tb, compute_dtype, epilogue_dtype,
             single_buffer_weights):
    B, in_size = x.shape
    out_size = w3.shape[1]
    wdt = compute_dtype
    adt = epilogue_dtype

    # Lane-dense output: zero-pad fc3 out-dim to a multiple of 128 lanes.
    out_pad = _round_up(max(out_size, LANE), LANE)

    # Pre-cast params once in the wrapper (kernel does no per-tile casts).
    # In a real deployment the bf16 copies would be stored once, not per call.
    w1c, w2c, w3c = (w.astype(wdt) for w in (w1, w2, w3))
    b1c, b2c = b1.astype(adt), b2.astype(adt)
    b3c = b3.astype(jnp.float32)
    if out_pad != out_size:
        w3c = jnp.pad(w3c, ((0, 0), (0, out_pad - out_size)))
        b3c = jnp.pad(b3c, ((0, 0), (0, out_pad - out_size)))

    # Batch padding to a multiple of the balanced tile; skipped when aligned.
    b_pad = _round_up(B, tb)
    xp = x.astype(wdt)                      # no-op when x already in wdt
    if b_pad != B:
        xp = jnp.pad(xp, ((0, b_pad - B), (0, 0)))

    # Weights/biases: constant index_map -> DMA'd once, VMEM resident across
    # all grid steps. Single-buffer them (double-buffering a never-changing
    # block just wastes ~1.2-2.4 MiB of VMEM).
    const = lambda i: (0, 0)
    wspec_kwargs = {}
    if single_buffer_weights:
        wspec_kwargs["pipeline_mode"] = pl.Buffered(1)

    def wspec(shape):
        return pl.BlockSpec(shape, const, **wspec_kwargs)

    nbytes = lambda a: int(a.size) * a.dtype.itemsize
    cost = pl.CostEstimate(
        flops=2 * b_pad * (in_size * HIDDEN1 + HIDDEN1 * HIDDEN2 + HIDDEN2 * out_pad),
        transcendentals=b_pad * out_pad,  # sigmoid exp
        bytes_accessed=(sum(nbytes(a) for a in (w1c, b1c, w2c, b2c, w3c, b3c))
                        + nbytes(xp) + b_pad * out_pad * 4),
    )

    out = pl.pallas_call(
        _mlp_kernel,
        out_shape=jax.ShapeDtypeStruct((b_pad, out_pad), jnp.float32),
        grid=(b_pad // tb,),
        in_specs=[
            pl.BlockSpec((tb, in_size), lambda i: (i, 0)),
            wspec((in_size, HIDDEN1)),
            wspec((1, HIDDEN1)),
            wspec((HIDDEN1, HIDDEN2)),
            wspec((1, HIDDEN2)),
            wspec((HIDDEN2, out_pad)),
            wspec((1, out_pad)),
        ],
        out_specs=pl.BlockSpec((tb, out_pad), lambda i: (i, 0)),
        compiler_params=pltpu.CompilerParams(
            # "parallel": lets the runtime shard batch tiles across v7x's two
            # TensorCores; harmless no-op on single-core v5e/v6e.
            dimension_semantics=("parallel",),
            # Lifts v5e's 16 MiB scoped default for f32/large-tile configs;
            # well under physical VMEM on all generations (>=64 MiB).
            vmem_limit_bytes=32 * 1024 * 1024,
        ),
        cost_estimate=cost,
    )(xp, w1c, b1c, w2c, b2c, w3c, b3c)

    if b_pad == B and out_pad == out_size:
        return out
    return out[:B, :out_size]


def nn1d_forward(x, w1, b1, w2, b2, w3, b3, *, block_b=512,
                 compute_dtype=jnp.bfloat16):
    """NN1d forward pass. bf16-weight MXU path by default (f32 accumulation)."""
    global _SINGLE_BUFFER_WEIGHTS_OK
    tb = _choose_batch_tile(x.shape[0], block_b)
    kwargs = dict(tb=tb, compute_dtype=compute_dtype,
                  epilogue_dtype=_epilogue_dtype(compute_dtype))
    if _SINGLE_BUFFER_WEIGHTS_OK:
        try:
            return _forward(x, w1, b1, w2, b2, w3, b3,
                            single_buffer_weights=True, **kwargs)
        except Exception:
            # This jax build rejects pipeline_mode=pl.Buffered(1); fall back to
            # the default double-buffered weight blocks (correctness identical).
            _SINGLE_BUFFER_WEIGHTS_OK = False
    return _forward(x, w1, b1, w2, b2, w3, b3,
                    single_buffer_weights=False, **kwargs)


def init_params(key, input_size, output_size):
    """PyTorch-style uniform(-1/sqrt(fan_in), 1/sqrt(fan_in)) init, f32."""

    def linear(key, fan_in, fan_out):
        kw, kb = jax.random.split(key)
        bound = 1.0 / jnp.sqrt(float(fan_in))
        # Stored as [in, out] (transpose of torch's [out, in]) for x @ W.
        w = jax.random.uniform(kw, (fan_in, fan_out), jnp.float32, -bound, bound)
        b = jax.random.uniform(kb, (1, fan_out), jnp.float32, -bound, bound)
        return w, b

    k1, k2, k3 = jax.random.split(key, 3)
    w1, b1 = linear(k1, input_size, HIDDEN1)
    w2, b2 = linear(k2, HIDDEN1, HIDDEN2)
    w3, b3 = linear(k3, HIDDEN2, output_size)
    return w1, b1, w2, b2, w3, b3


def reference_forward(x, w1, b1, w2, b2, w3, b3):
    h = jnp.maximum(x @ w1 + b1, 0.0)
    h = jnp.maximum(h @ w2 + b2, 0.0)
    return jax.nn.sigmoid(h @ w3 + b3)


if __name__ == "__main__":
    INPUT_SIZE = 32
    OUTPUT_SIZE = 8
    BATCH = 2

    key = jax.random.PRNGKey(0)
    k_params, k_x, k_x2 = jax.random.split(key, 3)

    w1, b1, w2, b2, w3, b3 = init_params(k_params, INPUT_SIZE, OUTPUT_SIZE)
    x = jax.random.normal(k_x, (BATCH, INPUT_SIZE), jnp.float32)
    ref = reference_forward(x, w1, b1, w2, b2, w3, b3)

    # 1) Default bf16 path (MXU-rate path) at the spec's tiny batch.
    out = jax.block_until_ready(nn1d_forward(x, w1, b1, w2, b2, w3, b3))
    assert out.shape == (BATCH, OUTPUT_SIZE), out.shape
    assert jnp.allclose(out, ref, atol=2e-2, rtol=2e-2), "bf16 mismatch vs reference"

    # 2) f32 path (tight numerics check).
    out32 = jax.block_until_ready(
        nn1d_forward(x, w1, b1, w2, b2, w3, b3, compute_dtype=jnp.float32))
    assert out32.shape == (BATCH, OUTPUT_SIZE), out32.shape
    assert jnp.allclose(out32, ref, atol=1e-5, rtol=1e-5), "f32 mismatch vs reference"

    # 3) Ragged larger batch: exercises balanced tiles (2 x 152 rows instead of
    #    one 512-row tile that was 70% padding) and multi-step pipelining.
    xb = jax.random.normal(k_x2, (300, INPUT_SIZE), jnp.float32)
    out_b = jax.block_until_ready(nn1d_forward(xb, w1, b1, w2, b2, w3, b3))
    ref_b = reference_forward(xb, w1, b1, w2, b2, w3, b3)
    assert out_b.shape == (300, OUTPUT_SIZE), out_b.shape
    assert jnp.allclose(out_b, ref_b, atol=2e-2, rtol=2e-2), "gridded mismatch"

    print("KERNEL_OK")
</pallas_src>

<mosaic_0001>
module attributes {stable_mosaic.version = 11 : i64} {
  func.func @_mlp_kernel(%arg0: i32, %arg1: memref<8x32xbf16, #tpu.memory_space<vmem>>, %arg2: memref<32x1024xbf16, #tpu.memory_space<vmem>>, %arg3: memref<1x1024xf32, #tpu.memory_space<vmem>>, %arg4: memref<1024x512xbf16, #tpu.memory_space<vmem>>, %arg5: memref<1x512xf32, #tpu.memory_space<vmem>>, %arg6: memref<512x128xbf16, #tpu.memory_space<vmem>>, %arg7: memref<1x128xf32, #tpu.memory_space<vmem>>, %arg8: memref<8x128xf32, #tpu.memory_space<vmem>>) attributes {dimension_semantics = [#tpu.dimension_semantics<parallel>], iteration_bounds = array<i64: 1>, scalar_prefetch = 0 : i64, scratch_operands = 0 : i64, tpu.core_type = #tpu.core_type<tc>, window_params = [{transform_indices = @transform_0, window_bounds = array<i64: 8, 32>}, {pipeline_mode = #tpu.pipeline_mode<synchronous>, transform_indices = @transform_1, window_bounds = array<i64: 32, 1024>}, {pipeline_mode = #tpu.pipeline_mode<synchronous>, transform_indices = @transform_2, window_bounds = array<i64: 1, 1024>}, {pipeline_mode = #tpu.pipeline_mode<synchronous>, transform_indices = @transform_3, window_bounds = array<i64: 1024, 512>}, {pipeline_mode = #tpu.pipeline_mode<synchronous>, transform_indices = @transform_4, window_bounds = array<i64: 1, 512>}, {pipeline_mode = #tpu.pipeline_mode<synchronous>, transform_indices = @transform_5, window_bounds = array<i64: 512, 128>}, {pipeline_mode = #tpu.pipeline_mode<synchronous>, transform_indices = @transform_6, window_bounds = array<i64: 1, 128>}, {transform_indices = @transform_7, window_bounds = array<i64: 8, 128>}]} {
    %c0 = arith.constant 0 : index
    %c0_0 = arith.constant 0 : index
    %0 = vector.load %arg1[%c0, %c0_0] : memref<8x32xbf16, #tpu.memory_space<vmem>>, vector<8x32xbf16>
    %c0_1 = arith.constant 0 : index
    %c0_2 = arith.constant 0 : index
    %1 = vector.load %arg2[%c0_1, %c0_2] : memref<32x1024xbf16, #tpu.memory_space<vmem>>, vector<32x1024xbf16>
    %cst = arith.constant dense<0.000000e+00> : vector<8x1024xf32>
    %2 = tpu.matmul %0, %1, %cst {dimension_numbers = #tpu.dot_dimension_numbers<[1], [0], [0], [1], [0, 0, 1, 1], [], []>} : vector<8x32xbf16>, vector<32x1024xbf16>, vector<8x1024xf32> -> vector<8x1024xf32>
    %c0_3 = arith.constant 0 : index
    %c0_4 = arith.constant 0 : index
    %3 = vector.load %arg3[%c0_3, %c0_4] : memref<1x1024xf32, #tpu.memory_space<vmem>>, vector<1x1024xf32>
    %4 = vector.broadcast %3 : vector<1x1024xf32> to vector<8x1024xf32>
    %5 = arith.addf %2, %4 : vector<8x1024xf32>
    %cst_5 = arith.constant 0.000000e+00 : f32
    %6 = vector.broadcast %cst_5 : f32 to vector<8x1024xf32>
    %7 = arith.maximumf %5, %6 : vector<8x1024xf32>
    %8 = arith.truncf %7 : vector<8x1024xf32> to vector<8x1024xbf16>
    %c0_6 = arith.constant 0 : index
    %c0_7 = arith.constant 0 : index
    %9 = vector.load %arg4[%c0_6, %c0_7] : memref<1024x512xbf16, #tpu.memory_space<vmem>>, vector<1024x512xbf16>
    %cst_8 = arith.constant dense<0.000000e+00> : vector<8x512xf32>
    %10 = tpu.matmul %8, %9, %cst_8 {dimension_numbers = #tpu.dot_dimension_numbers<[1], [0], [0], [1], [0, 0, 1, 1], [], []>} : vector<8x1024xbf16>, vector<1024x512xbf16>, vector<8x512xf32> -> vector<8x512xf32>
    %c0_9 = arith.constant 0 : index
    %c0_10 = arith.constant 0 : index
    %11 = vector.load %arg5[%c0_9, %c0_10] : memref<1x512xf32, #tpu.memory_space<vmem>>, vector<1x512xf32>
    %12 = vector.broadcast %11 : vector<1x512xf32> to vector<8x512xf32>
    %13 = arith.addf %10, %12 : vector<8x512xf32>
    %cst_11 = arith.constant 0.000000e+00 : f32
    %14 = vector.broadcast %cst_11 : f32 to vector<8x512xf32>
    %15 = arith.maximumf %13, %14 : vector<8x512xf32>
    %16 = arith.truncf %15 : vector<8x512xf32> to vector<8x512xbf16>
    %c0_12 = arith.constant 0 : index
    %c0_13 = arith.constant 0 : index
    %17 = vector.load %arg6[%c0_12, %c0_13] : memref<512x128xbf16, #tpu.memory_space<vmem>>, vector<512x128xbf16>
    %cst_14 = arith.constant dense<0.000000e+00> : vector<8x128xf32>
    %18 = tpu.matmul %16, %17, %cst_14 {dimension_numbers = #tpu.dot_dimension_numbers<[1], [0], [0], [1], [0, 0, 1, 1], [], []>} : vector<8x512xbf16>, vector<512x128xbf16>, vector<8x128xf32> -> vector<8x128xf32>
    %c0_15 = arith.constant 0 : index
    %c0_16 = arith.constant 0 : index
    %19 = vector.load %arg7[%c0_15, %c0_16] : memref<1x128xf32, #tpu.memory_space<vmem>>, vector<1x128xf32>
    %20 = vector.broadcast %19 : vector<1x128xf32> to vector<8x128xf32>
    %21 = arith.addf %18, %20 : vector<8x128xf32>
    %22 = arith.negf %21 : vector<8x128xf32>
    %23 = math.exp %22 : vector<8x128xf32>
    %cst_17 = arith.constant 1.000000e+00 : f32
    %24 = vector.broadcast %cst_17 : f32 to vector<8x128xf32>
    %25 = arith.addf %24, %23 : vector<8x128xf32>
    %26 = arith.divf %24, %25 : vector<8x128xf32>
    %c0_18 = arith.constant 0 : index
    %c0_19 = arith.constant 0 : index
    %27 = vector.load %arg8[%c0_18, %c0_19] : memref<8x128xf32, #tpu.memory_space<vmem>>, vector<8x128xf32>
    tpu.vector_store %arg8[%c0_18, %c0_19], %26 {strides = array<i32>} : memref<8x128xf32, #tpu.memory_space<vmem>>, vector<8x128xf32>,
    return
  }
  func.func @transform_0(%arg0: i32) -> (i32, i32) {
    %c0_i32 = arith.constant 0 : i32
    %c0_i32_0 = arith.constant 0 : i32
    return %arg0, %c0_i32 : i32, i32
  }
  func.func @transform_1(%arg0: i32) -> (i32, i32) {
    %c0_i32 = arith.constant 0 : i32
    %c0_i32_0 = arith.constant 0 : i32
    %c0_i32_1 = arith.constant 0 : i32
    return %c0_i32, %c0_i32_0 : i32, i32
  }
  func.func @transform_2(%arg0: i32) -> (i32, i32) {
    %c0_i32 = arith.constant 0 : i32
    %c0_i32_0 = arith.constant 0 : i32
    %c0_i32_1 = arith.constant 0 : i32
    return %c0_i32, %c0_i32_0 : i32, i32
  }
  func.func @transform_3(%arg0: i32) -> (i32, i32) {
    %c0_i32 = arith.constant 0 : i32
    %c0_i32_0 = arith.constant 0 : i32
    %c0_i32_1 = arith.constant 0 : i32
    return %c0_i32, %c0_i32_0 : i32, i32
  }
  func.func @transform_4(%arg0: i32) -> (i32, i32) {
    %c0_i32 = arith.constant 0 : i32
    %c0_i32_0 = arith.constant 0 : i32
    %c0_i32_1 = arith.constant 0 : i32
    return %c0_i32, %c0_i32_0 : i32, i32
  }
  func.func @transform_5(%arg0: i32) -> (i32, i32) {
    %c0_i32 = arith.constant 0 : i32
    %c0_i32_0 = arith.constant 0 : i32
    %c0_i32_1 = arith.constant 0 : i32
    return %c0_i32, %c0_i32_0 : i32, i32
  }
  func.func @transform_6(%arg0: i32) -> (i32, i32) {
    %c0_i32 = arith.constant 0 : i32
    %c0_i32_0 = arith.constant 0 : i32
    %c0_i32_1 = arith.constant 0 : i32
    return %c0_i32, %c0_i32_0 : i32, i32
  }
  func.func @transform_7(%arg0: i32) -> (i32, i32) {
    %c0_i32 = arith.constant 0 : i32
    %c0_i32_0 = arith.constant 0 : i32
    return %arg0, %c0_i32 : i32, i32
  }
}

module attributes {stable_mosaic.version = 11 : i64} {
  func.func @_mlp_kernel(%arg0: i32, %arg1: memref<8x32xbf16, #tpu.memory_space<vmem>>, %arg2: memref<32x1024xbf16, #tpu.memory_space<vmem>>, %arg3: memref<1x1024xf32, #tpu.memory_space<vmem>>, %arg4: memref<1024x512xbf16, #tpu.memory_space<vmem>>, %arg5: memref<1x512xf32, #tpu.memory_space<vmem>>, %arg6: memref<512x128xbf16, #tpu.memory_space<vmem>>, %arg7: memref<1x128xf32, #tpu.memory_space<vmem>>, %arg8: memref<8x128xf32, #tpu.memory_space<vmem>>) attributes {dimension_semantics = [#tpu.dimension_semantics<parallel>], iteration_bounds = array<i64: 1>, scalar_prefetch = 0 : i64, scratch_operands = 0 : i64, tpu.core_type = #tpu.core_type<tc>, window_params = [{transform_indices = @transform_0, window_bounds = array<i64: 8, 32>}, {pipeline_mode = #tpu.pipeline_mode<synchronous>, transform_indices = @transform_1, window_bounds = array<i64: 32, 1024>}, {pipeline_mode = #tpu.pipeline_mode<synchronous>, transform_indices = @transform_2, window_bounds = array<i64: 1, 1024>}, {pipeline_mode = #tpu.pipeline_mode<synchronous>, transform_indices = @transform_3, window_bounds = array<i64: 1024, 512>}, {pipeline_mode = #tpu.pipeline_mode<synchronous>, transform_indices = @transform_4, window_bounds = array<i64: 1, 512>}, {pipeline_mode = #tpu.pipeline_mode<synchronous>, transform_indices = @transform_5, window_bounds = array<i64: 512, 128>}, {pipeline_mode = #tpu.pipeline_mode<synchronous>, transform_indices = @transform_6, window_bounds = array<i64: 1, 128>}, {transform_indices = @transform_7, window_bounds = array<i64: 8, 128>}]} {
    %c0 = arith.constant 0 : index
    %c0_0 = arith.constant 0 : index
    %0 = vector.load %arg1[%c0, %c0_0] : memref<8x32xbf16, #tpu.memory_space<vmem>>, vector<8x32xbf16>
    %c0_1 = arith.constant 0 : index
    %c0_2 = arith.constant 0 : index
    %1 = vector.load %arg2[%c0_1, %c0_2] : memref<32x1024xbf16, #tpu.memory_space<vmem>>, vector<32x1024xbf16>
    %cst = arith.constant dense<0.000000e+00> : vector<8x1024xf32>
    %2 = tpu.matmul %0, %1, %cst {dimension_numbers = #tpu.dot_dimension_numbers<[1], [0], [0], [1], [0, 0, 1, 1], [], []>} : vector<8x32xbf16>, vector<32x1024xbf16>, vector<8x1024xf32> -> vector<8x1024xf32>
    %c0_3 = arith.constant 0 : index
    %c0_4 = arith.constant 0 : index
    %3 = vector.load %arg3[%c0_3, %c0_4] : memref<1x1024xf32, #tpu.memory_space<vmem>>, vector<1x1024xf32>
    %4 = vector.broadcast %3 : vector<1x1024xf32> to vector<8x1024xf32>
    %5 = arith.addf %2, %4 : vector<8x1024xf32>
    %cst_5 = arith.constant 0.000000e+00 : f32
    %6 = vector.broadcast %cst_5 : f32 to vector<8x1024xf32>
    %7 = arith.maximumf %5, %6 : vector<8x1024xf32>
    %8 = arith.truncf %7 : vector<8x1024xf32> to vector<8x1024xbf16>
    %c0_6 = arith.constant 0 : index
    %c0_7 = arith.constant 0 : index
    %9 = vector.load %arg4[%c0_6, %c0_7] : memref<1024x512xbf16, #tpu.memory_space<vmem>>, vector<1024x512xbf16>
    %cst_8 = arith.constant dense<0.000000e+00> : vector<8x512xf32>
    %10 = tpu.matmul %8, %9, %cst_8 {dimension_numbers = #tpu.dot_dimension_numbers<[1], [0], [0], [1], [0, 0, 1, 1], [], []>} : vector<8x1024xbf16>, vector<1024x512xbf16>, vector<8x512xf32> -> vector<8x512xf32>
    %c0_9 = arith.constant 0 : index
    %c0_10 = arith.constant 0 : index
    %11 = vector.load %arg5[%c0_9, %c0_10] : memref<1x512xf32, #tpu.memory_space<vmem>>, vector<1x512xf32>
    %12 = vector.broadcast %11 : vector<1x512xf32> to vector<8x512xf32>
    %13 = arith.addf %10, %12 : vector<8x512xf32>
    %cst_11 = arith.constant 0.000000e+00 : f32
    %14 = vector.broadcast %cst_11 : f32 to vector<8x512xf32>
    %15 = arith.maximumf %13, %14 : vector<8x512xf32>
    %16 = arith.truncf %15 : vector<8x512xf32> to vector<8x512xbf16>
    %c0_12 = arith.constant 0 : index
    %c0_13 = arith.constant 0 : index
    %17 = vector.load %arg6[%c0_12, %c0_13] : memref<512x128xbf16, #tpu.memory_space<vmem>>, vector<512x128xbf16>
    %cst_14 = arith.constant dense<0.000000e+00> : vector<8x128xf32>
    %18 = tpu.matmul %16, %17, %cst_14 {dimension_numbers = #tpu.dot_dimension_numbers<[1], [0], [0], [1], [0, 0, 1, 1], [], []>} : vector<8x512xbf16>, vector<512x128xbf16>, vector<8x128xf32> -> vector<8x128xf32>
    %c0_15 = arith.constant 0 : index
    %c0_16 = arith.constant 0 : index
    %19 = vector.load %arg7[%c0_15, %c0_16] : memref<1x128xf32, #tpu.memory_space<vmem>>, vector<1x128xf32>
    %20 = vector.broadcast %19 : vector<1x128xf32> to vector<8x128xf32>
    %21 = arith.addf %18, %20 : vector<8x128xf32>
    %22 = arith.negf %21 : vector<8x128xf32>
    %23 = math.exp %22 : vector<8x128xf32>
    %cst_17 = arith.constant 1.000000e+00 : f32
    %24 = vector.broadcast %cst_17 : f32 to vector<8x128xf32>
    %25 = arith.addf %24, %23 : vector<8x128xf32>
    %26 = arith.divf %24, %25 : vector<8x128xf32>
    %c0_18 = arith.constant 0 : index
    %c0_19 = arith.constant 0 : index
    %27 = vector.load %arg8[%c0_18, %c0_19] : memref<8x128xf32, #tpu.memory_space<vmem>>, vector<8x128xf32>
    tpu.vector_store %arg8[%c0_18, %c0_19], %26 {strides = array<i32>} : memref<8x128xf32, #tpu.memory_space<vmem>>, vector<8x128xf32>,
    return
  }
  func.func @transform_0(%arg0: i32) -> (i32, i32) {
    %c0_i32 = arith.constant 0 : i32
    %c0_i32_0 = arith.constant 0 : i32
    return %arg0, %c0_i32 : i32, i32
  }
  func.func @transform_1(%arg0: i32) -> (i32, i32) {
    %c0_i32 = arith.constant 0 : i32
    %c0_i32_0 = arith.constant 0 : i32
    %c0_i32_1 = arith.constant 0 : i32
    return %c0_i32, %c0_i32_0 : i32, i32
  }
  func.func @transform_2(%arg0: i32) -> (i32, i32) {
    %c0_i32 = arith.constant 0 : i32
    %c0_i32_0 = arith.constant 0 : i32
    %c0_i32_1 = arith.constant 0 : i32
    return %c0_i32, %c0_i32_0 : i32, i32
  }
  func.func @transform_3(%arg0: i32) -> (i32, i32) {
    %c0_i32 = arith.constant 0 : i32
    %c0_i32_0 = arith.constant 0 : i32
    %c0_i32_1 = arith.constant 0 : i32
    return %c0_i32, %c0_i32_0 : i32, i32
  }
  func.func @transform_4(%arg0: i32) -> (i32, i32) {
    %c0_i32 = arith.constant 0 : i32
    %c0_i32_0 = arith.constant 0 : i32
    %c0_i32_1 = arith.constant 0 : i32
    return %c0_i32, %c0_i32_0 : i32, i32
  }
  func.func @transform_5(%arg0: i32) -> (i32, i32) {
    %c0_i32 = arith.constant 0 : i32
    %c0_i32_0 = arith.constant 0 : i32
    %c0_i32_1 = arith.constant 0 : i32
    return %c0_i32, %c0_i32_0 : i32, i32
  }
  func.func @transform_6(%arg0: i32) -> (i32, i32) {
    %c0_i32 = arith.constant 0 : i32
    %c0_i32_0 = arith.constant 0 : i32
    %c0_i32_1 = arith.constant 0 : i32
    return %c0_i32, %c0_i32_0 : i32, i32
  }
  func.func @transform_7(%arg0: i32) -> (i32, i32) {
    %c0_i32 = arith.constant 0 : i32
    %c0_i32_0 = arith.constant 0 : i32
    return %arg0, %c0_i32 : i32, i32
  }
}

</mosaic_0001>

<llo_original>
// kernel: _forward.1
$region0: #{_forward.1}
  #allocation0 [shape = 'u32[]', space=smem, size = 0x4, offset = 0x4, fixed_abs, tag = 'smem constant byte address 0x4 - core index']
  #allocation1 [shape = 'u32[72,128]{1,0:T(1,128)}', space=vmem, size = 0x9000, scoped, tag = 'internal scratch']
  %s0 = inlined_call_operand.vmem [shape: bf16[8,32], index: 0, kind: input, shape index: {}]
  %s1 = inlined_call_operand.vmem [shape: bf16[32,1024], index: 1, kind: input, shape index: {}]
  %s2 = inlined_call_operand.vmem [shape: f32[1,1024], index: 2, kind: input, shape index: {}]
  %s3 = inlined_call_operand.vmem [shape: bf16[1024,512], index: 3, kind: input, shape index: {}]
  %s4 = inlined_call_operand.vmem [shape: f32[1,512], index: 4, kind: input, shape index: {}]
  %s5 = inlined_call_operand.vmem [shape: bf16[512,128], index: 5, kind: input, shape index: {}]
  %s6 = inlined_call_operand.vmem [shape: f32[1,128], index: 6, kind: input, shape index: {}]
  %s7 = inlined_call_operand.vmem [shape: f32[8,128], index: 7, kind: output, shape index: {}]
  %s8 = sld [smem:[#allocation0]]
  $region38: #{_forward.1} parent=0
    _
  %s10 = ssub.s32 1, %s8
  %s11 = scalar_select 0, %s10, %s8
  // Predicated region
  $region2: #{_forward.1} parent=0 // pred_check
    _
  $region3: #{_forward.1} parent=0 // pred_check_branch
    %13 = sbr.rel (0) target = $region5
  $region4: #{_forward.1} parent=0 // pred_region
    _
  $region5: #{_forward.1} parent=0 // pred_fallthru
    _
  // Predicated region
  $region6: #{_forward.1} parent=0 // pred_check
    _
  $region7: #{_forward.1} parent=0 // pred_check_branch
    %15 = sbr.rel (0) target = $region9
  $region8: #{_forward.1} parent=0 // pred_region
    _
  $region9: #{_forward.1} parent=0 // pred_fallthru
    _
  // Predicated region
  $region10: #{_forward.1} parent=0 // pred_check
    _
  $region11: #{_forward.1} parent=0 // pred_check_branch
    %17 = sbr.rel (0) target = $region13
  $region12: #{_forward.1} parent=0 // pred_region
    _
  $region13: #{_forward.1} parent=0 // pred_fallthru
    _
  // Predicated region
  $region14: #{_forward.1} parent=0 // pred_check
    _
  $region15: #{_forward.1} parent=0 // pred_check_branch
    %19 = sbr.rel (0) target = $region17
  $region16: #{_forward.1} parent=0 // pred_region
    _
  $region17: #{_forward.1} parent=0 // pred_fallthru
    _
  // Predicated region
  $region18: #{_forward.1} parent=0 // pred_check
    _
  $region19: #{_forward.1} parent=0 // pred_check_branch
    %21 = sbr.rel (0) target = $region21
  $region20: #{_forward.1} parent=0 // pred_region
    _
  $region21: #{_forward.1} parent=0 // pred_fallthru
    _
  // Predicated region
  $region22: #{_forward.1} parent=0 // pred_check
    _
  $region23: #{_forward.1} parent=0 // pred_check_branch
    %23 = sbr.rel (0) target = $region25
  $region24: #{_forward.1} parent=0 // pred_region
    _
  $region25: #{_forward.1} parent=0 // pred_fallthru
    _
  // Predicated region
  $region26: #{_forward.1} parent=0 // pred_check
    _
  $region27: #{_forward.1} parent=0 // pred_check_branch
    %25 = sbr.rel (0) target = $region29
  $region28: #{_forward.1} parent=0 // pred_region
    _
  $region29: #{_forward.1} parent=0 // pred_fallthru
    _
  %v27 = vld [vmem:[%s0] sm:$0xf]
  %v28 = vld [vmem:[%s1] sm:$0xff]
  %v29 = vld [vmem:[%s1 + $0x8] sm:$0xff]
  %v30 = vld [vmem:[%s1 + $0x10] sm:$0xff]
  %v31 = vld [vmem:[%s1 + $0x18] sm:$0xff]
  %v32 = vld [vmem:[%s1 + $0x20] sm:$0xff]
  %v33 = vld [vmem:[%s1 + $0x28] sm:$0xff]
  %v34 = vld [vmem:[%s1 + $0x30] sm:$0xff]
  %v35 = vld [vmem:[%s1 + $0x38] sm:$0xff]
  %v36 = vld [vmem:[%s1 + $0x40] sm:$0xff]
  %v37 = vld [vmem:[%s1 + $0x48] sm:$0xff]
  %v38 = vld [vmem:[%s1 + $0x50] sm:$0xff]
  %v39 = vld [vmem:[%s1 + $0x58] sm:$0xff]
  %v40 = vld [vmem:[%s1 + $0x60] sm:$0xff]
  %v41 = vld [vmem:[%s1 + $0x68] sm:$0xff]
  %v42 = vld [vmem:[%s1 + $0x70] sm:$0xff]
  %v43 = vld [vmem:[%s1 + $0x78] sm:$0xff]
  %v44 = vld [vmem:[%s2] sm:$0xff]
  %v46 = vperm.slane %v44, 0
  %v47 = vperm.slane %v44, 1
  %v48 = vperm.slane %v44, 2
  %v49 = vperm.slane %v44, 3
  %v50 = vperm.slane %v44, 4
  %v51 = vperm.slane %v44, 5
  %v52 = vperm.slane %v44, 6
  %v53 = vperm.slane %v44, 7
  %v78 = vunpack.c.l.b16 %v28
  %v79 = vunpack.c.h.b16 %v28
  %v80 = vunpack.c.l.b16 %v29
  %v81 = vunpack.c.h.b16 %v29
  %v82 = vunpack.c.l.b16 %v30
  %v83 = vunpack.c.h.b16 %v30
  %v84 = vunpack.c.l.b16 %v31
  %v85 = vunpack.c.h.b16 %v31
  %v86 = vunpack.c.l.b16 %v32
  %v87 = vunpack.c.h.b16 %v32
  %v88 = vunpack.c.l.b16 %v33
  %v89 = vunpack.c.h.b16 %v33
  %v90 = vunpack.c.l.b16 %v34
  %v91 = vunpack.c.h.b16 %v34
  %v92 = vunpack.c.l.b16 %v35
  %v93 = vunpack.c.h.b16 %v35
  %v94 = vunpack.c.l.b16 %v36
  %v95 = vunpack.c.h.b16 %v36
  %v96 = vunpack.c.l.b16 %v37
  %v97 = vunpack.c.h.b16 %v37
  %v98 = vunpack.c.l.b16 %v38
  %v99 = vunpack.c.h.b16 %v38
  %v100 = vunpack.c.l.b16 %v39
  %v101 = vunpack.c.h.b16 %v39
  %v102 = vunpack.c.l.b16 %v40
  %v103 = vunpack.c.h.b16 %v40
  %v104 = vunpack.c.l.b16 %v41
  %v105 = vunpack.c.h.b16 %v41
  %v106 = vunpack.c.l.b16 %v42
  %v107 = vunpack.c.h.b16 %v42
  %v108 = vunpack.c.l.b16 %v43
  %v109 = vunpack.c.h.b16 %v43
  %v110 = vpack.c.b16 %v86, %v78
  %v111 = vpack.c.b16 %v87, %v79
  %v112 = vpack.c.b16 %v88, %v80
  %v113 = vpack.c.b16 %v89, %v81
  %v114 = vpack.c.b16 %v90, %v82
  %v115 = vpack.c.b16 %v91, %v83
  %v116 = vpack.c.b16 %v92, %v84
  %v117 = vpack.c.b16 %v93, %v85
  %v118 = vpack.c.b16 %v102, %v94
  %v119 = vpack.c.b16 %v103, %v95
  %v120 = vpack.c.b16 %v104, %v96
  %v121 = vpack.c.b16 %v105, %v97
  %v122 = vpack.c.b16 %v106, %v98
  %v123 = vpack.c.b16 %v107, %v99
  %v124 = vpack.c.b16 %v108, %v100
  %v125 = vpack.c.b16 %v109, %v101
  %vm142 = vcmask 261120
  %v144 = vsel %vm142, %v27, 0
  %146 = vmatpush.bf16.msra.mxu0 0
  %147 = vmatpush.bf16.msra.mxu0 0
  %148 = vmatpush.bf16.msra.mxu0 0
  %149 = vmatpush.bf16.msra.mxu0 0
  %150 = vmatpush.bf16.msra.mxu0 0
  %151 = vmatpush.bf16.msra.mxu0 0
  %152 = vmatpush.bf16.msra.mxu0 %v118
  %153 = vmatpush.bf16.msra.mxu0 %v110
  %154 = vmatmul.bf16.gmra.mxu0 %v144
  %v155 = vpop.f32.mrf.mxu0
  %v156 = vadd.f32 %v46, %v155
  %v157 = vpop.f32.mrf.mxu0
  %158 = vdwg.mxu0
  %159 = vmatpush.bf16.msra.mxu0 0
  %160 = vmatpush.bf16.msra.mxu0 0
  %161 = vmatpush.bf16.msra.mxu0 0
  %162 = vmatpush.bf16.msra.mxu0 0
  %163 = vmatpush.bf16.msra.mxu0 0
  %164 = vmatpush.bf16.msra.mxu0 0
  %165 = vmatpush.bf16.msra.mxu0 %v119
  %166 = vmatpush.bf16.msra.mxu0 %v111
  %167 = vmatmul.bf16.gmra.mxu0 %v144
  %v168 = vpop.f32.mrf.mxu0
  %v169 = vadd.f32 %v47, %v168
  %v170 = vpop.f32.mrf.mxu0
  %171 = vdwg.mxu0
  %172 = vmatpush.bf16.msra.mxu0 0
  %173 = vmatpush.bf16.msra.mxu0 0
  %174 = vmatpush.bf16.msra.mxu0 0
  %175 = vmatpush.bf16.msra.mxu0 0
  %176 = vmatpush.bf16.msra.mxu0 0
  %177 = vmatpush.bf16.msra.mxu0 0
  %178 = vmatpush.bf16.msra.mxu0 %v120
  %179 = vmatpush.bf16.msra.mxu0 %v112
  %180 = vmatmul.bf16.gmra.mxu0 %v144
  %v181 = vpop.f32.mrf.mxu0
  %v182 = vadd.f32 %v48, %v181
  %v183 = vpop.f32.mrf.mxu0
  %184 = vdwg.mxu0
  %185 = vmatpush.bf16.msra.mxu0 0
  %186 = vmatpush.bf16.msra.mxu0 0
  %187 = vmatpush.bf16.msra.mxu0 0
  %188 = vmatpush.bf16.msra.mxu0 0
  %189 = vmatpush.bf16.msra.mxu0 0
  %190 = vmatpush.bf16.msra.mxu0 0
  %191 = vmatpush.bf16.msra.mxu0 %v121
  %192 = vmatpush.bf16.msra.mxu0 %v113
  %193 = vmatmul.bf16.gmra.mxu0 %v144
  %v194 = vpop.f32.mrf.mxu0
  %v195 = vadd.f32 %v49, %v194
  %v196 = vpop.f32.mrf.mxu0
  %197 = vdwg.mxu0
  %198 = vmatpush.bf16.msra.mxu0 0
  %199 = vmatpush.bf16.msra.mxu0 0
  %200 = vmatpush.bf16.msra.mxu0 0
  %201 = vmatpush.bf16.msra.mxu0 0
  %202 = vmatpush.bf16.msra.mxu0 0
  %203 = vmatpush.bf16.msra.mxu0 0
  %204 = vmatpush.bf16.msra.mxu0 %v122
  %205 = vmatpush.bf16.msra.mxu0 %v114
  %206 = vmatmul.bf16.gmra.mxu0 %v144
  %v207 = vpop.f32.mrf.mxu0
  %v208 = vadd.f32 %v50, %v207
  %v209 = vpop.f32.mrf.mxu0
  %210 = vdwg.mxu0
  %211 = vmatpush.bf16.msra.mxu0 0
  %212 = vmatpush.bf16.msra.mxu0 0
  %213 = vmatpush.bf16.msra.mxu0 0
  %214 = vmatpush.bf16.msra.mxu0 0
  %215 = vmatpush.bf16.msra.mxu0 0
  %216 = vmatpush.bf16.msra.mxu0 0
  %217 = vmatpush.bf16.msra.mxu0 %v123
  %218 = vmatpush.bf16.msra.mxu0 %v115
  %219 = vmatmul.bf16.gmra.mxu0 %v144
  %v220 = vpop.f32.mrf.mxu0
  %v221 = vadd.f32 %v51, %v220
  %v222 = vpop.f32.mrf.mxu0
  %223 = vdwg.mxu0
  %224 = vmatpush.bf16.msra.mxu0 0
  %225 = vmatpush.bf16.msra.mxu0 0
  %226 = vmatpush.bf16.msra.mxu0 0
  %227 = vmatpush.bf16.msra.mxu0 0
  %228 = vmatpush.bf16.msra.mxu0 0
  %229 = vmatpush.bf16.msra.mxu0 0
  %230 = vmatpush.bf16.msra.mxu0 %v124
  %231 = vmatpush.bf16.msra.mxu0 %v116
  %232 = vmatmul.bf16.gmra.mxu0 %v144
  %v233 = vpop.f32.mrf.mxu0
  %v234 = vadd.f32 %v52, %v233
  %v235 = vpop.f32.mrf.mxu0
  %236 = vdwg.mxu0
  %237 = vmatpush.bf16.msra.mxu0 0
  %238 = vmatpush.bf16.msra.mxu0 0
  %239 = vmatpush.bf16.msra.mxu0 0
  %240 = vmatpush.bf16.msra.mxu0 0
  %241 = vmatpush.bf16.msra.mxu0 0
  %242 = vmatpush.bf16.msra.mxu0 0
  %243 = vmatpush.bf16.msra.mxu0 %v125
  %244 = vmatpush.bf16.msra.mxu0 %v117
  %245 = vmatmul.bf16.gmra.mxu0 %v144
  %v246 = vpop.f32.mrf.mxu0
  %v247 = vadd.f32 %v53, %v246
  %v248 = vpop.f32.mrf.mxu0
  %249 = vdwg.mxu0
  %v250 = vmax.f32 %v156, 0.0
  %v251 = vmax.f32 %v169, 0.0
  %v252 = vmax.f32 %v182, 0.0
  %v253 = vmax.f32 %v195, 0.0
  %v254 = vmax.f32 %v208, 0.0
  %v255 = vmax.f32 %v221, 0.0
  %v256 = vmax.f32 %v234, 0.0
  %v257 = vmax.f32 %v247, 0.0
  %v258 = vpack.c.bf16 %v250, %v250
  %v259 = vpack.c.bf16 %v251, %v251
  %v260 = vpack.c.bf16 %v252, %v252
  %v261 = vpack.c.bf16 %v253, %v253
  %v262 = vpack.c.bf16 %v254, %v254
  %v263 = vpack.c.bf16 %v255, %v255
  %v264 = vpack.c.bf16 %v256, %v256
  %v265 = vpack.c.bf16 %v257, %v257
  %v266 = vld [vmem:[%s3] sm:$0xff]
  %v267 = vld [vmem:[%s3 + $0x8] sm:$0xff]
  %v268 = vld [vmem:[%s3 + $0x10] sm:$0xff]
  %v269 = vld [vmem:[%s3 + $0x18] sm:$0xff]
  %v270 = vld [vmem:[%s3 + $0x20] sm:$0xff]
  %v271 = vld [vmem:[%s3 + $0x28] sm:$0xff]
  %v272 = vld [vmem:[%s3 + $0x30] sm:$0xff]
  %v273 = vld [vmem:[%s3 + $0x38] sm:$0xff]
  %v274 = vld [vmem:[%s3 + $0x40] sm:$0xff]
  %v275 = vld [vmem:[%s3 + $0x48] sm:$0xff]
  %v276 = vld [vmem:[%s3 + $0x50] sm:$0xff]
  %v277 = vld [vmem:[%s3 + $0x58] sm:$0xff]
  %v278 = vld [vmem:[%s3 + $0x60] sm:$0xff]
  %v279 = vld [vmem:[%s3 + $0x68] sm:$0xff]
  %v280 = vld [vmem:[%s3 + $0x70] sm:$0xff]
  %v281 = vld [vmem:[%s3 + $0x78] sm:$0xff]
  %v282 = vld [vmem:[%s3 + $0x80] sm:$0xff]
  %v283 = vld [vmem:[%s3 + $0x88] sm:$0xff]
  %v284 = vld [vmem:[%s3 + $0x90] sm:$0xff]
  %v285 = vld [vmem:[%s3 + $0x98] sm:$0xff]
  %v286 = vld [vmem:[%s3 + $0xa0] sm:$0xff]
  %v287 = vld [vmem:[%s3 + $0xa8] sm:$0xff]
  %v288 = vld [vmem:[%s3 + $0xb0] sm:$0xff]
  %v289 = vld [vmem:[%s3 + $0xb8] sm:$0xff]
  %v290 = vld [vmem:[%s3 + $0xc0] sm:$0xff]
  %v291 = vld [vmem:[%s3 + $0xc8] sm:$0xff]
  %v292 = vld [vmem:[%s3 + $0xd0] sm:$0xff]
  %v293 = vld [vmem:[%s3 + $0xd8] sm:$0xff]
  %v294 = vld [vmem:[%s3 + $0xe0] sm:$0xff]
  %v295 = vld [vmem:[%s3 + $0xe8] sm:$0xff]
  %v296 = vld [vmem:[%s3 + $0xf0] sm:$0xff]
  %v297 = vld [vmem:[%s3 + $0xf8] sm:$0xff]
  %v298 = vld [vmem:[%s3 + $0x100] sm:$0xff]
  %v299 = vld [vmem:[%s3 + $0x108] sm:$0xff]
  %v300 = vld [vmem:[%s3 + $0x110] sm:$0xff]
  %v301 = vld [vmem:[%s3 + $0x118] sm:$0xff]
  %v302 = vld [vmem:[%s3 + $0x120] sm:$0xff]
  %v303 = vld [vmem:[%s3 + $0x128] sm:$0xff]
  %v304 = vld [vmem:[%s3 + $0x130] sm:$0xff]
  %v305 = vld [vmem:[%s3 + $0x138] sm:$0xff]
  %v306 = vld [vmem:[%s3 + $0x140] sm:$0xff]
  %v307 = vld [vmem:[%s3 + $0x148] sm:$0xff]
  %v308 = vld [vmem:[%s3 + $0x150] sm:$0xff]
  %v309 = vld [vmem:[%s3 + $0x158] sm:$0xff]
  %v310 = vld [vmem:[%s3 + $0x160] sm:$0xff]
  %v311 = vld [vmem:[%s3 + $0x168] sm:$0xff]
  %v312 = vld [vmem:[%s3 + $0x170] sm:$0xff]
  %v313 = vld [vmem:[%s3 + $0x178] sm:$0xff]
  %v314 = vld [vmem:[%s3 + $0x180] sm:$0xff]
  %v315 = vld [vmem:[%s3 + $0x188] sm:$0xff]
  %v316 = vld [vmem:[%s3 + $0x190] sm:$0xff]
  %v317 = vld [vmem:[%s3 + $0x198] sm:$0xff]
  %v318 = vld [vmem:[%s3 + $0x1a0] sm:$0xff]
  %v319 = vld [vmem:[%s3 + $0x1a8] sm:$0xff]
  %v320 = vld [vmem:[%s3 + $0x1b0] sm:$0xff]
  %v321 = vld [vmem:[%s3 + $0x1b8] sm:$0xff]
  %v322 = vld [vmem:[%s3 + $0x1c0] sm:$0xff]
  %v323 = vld [vmem:[%s3 + $0x1c8] sm:$0xff]
  %v324 = vld [vmem:[%s3 + $0x1d0] sm:$0xff]
  %v325 = vld [vmem:[%s3 + $0x1d8] sm:$0xff]
  %v326 = vld [vmem:[%s3 + $0x1e0] sm:$0xff]
  %v327 = vld [vmem:[%s3 + $0x1e8] sm:$0xff]
  %v328 = vld [vmem:[%s3 + $0x1f0] sm:$0xff]
  %v329 = vld [vmem:[%s3 + $0x1f8] sm:$0xff]
  %v330 = vld [vmem:[%s3 + $0x200] sm:$0xff]
  %v331 = vld [vmem:[%s3 + $0x208] sm:$0xff]
  %v332 = vld [vmem:[%s3 + $0x210] sm:$0xff]
  %v333 = vld [vmem:[%s3 + $0x218] sm:$0xff]
  %v334 = vld [vmem:[%s3 + $0x220] sm:$0xff]
  %v335 = vld [vmem:[%s3 + $0x228] sm:$0xff]
  %v336 = vld [vmem:[%s3 + $0x230] sm:$0xff]
  %v337 = vld [vmem:[%s3 + $0x238] sm:$0xff]
  %v338 = vld [vmem:[%s3 + $0x240] sm:$0xff]
  %v339 = vld [vmem:[%s3 + $0x248] sm:$0xff]
  %v340 = vld [vmem:[%s3 + $0x250] sm:$0xff]
  %v341 = vld [vmem:[%s3 + $0x258] sm:$0xff]
  %v342 = vld [vmem:[%s3 + $0x260] sm:$0xff]
  %v343 = vld [vmem:[%s3 + $0x268] sm:$0xff]
  %v344 = vld [vmem:[%s3 + $0x270] sm:$0xff]
  %v345 = vld [vmem:[%s3 + $0x278] sm:$0xff]
  %v346 = vld [vmem:[%s3 + $0x280] sm:$0xff]
  %v347 = vld [vmem:[%s3 + $0x288] sm:$0xff]
  %v348 = vld [vmem:[%s3 + $0x290] sm:$0xff]
  %v349 = vld [vmem:[%s3 + $0x298] sm:$0xff]
  %v350 = vld [vmem:[%s3 + $0x2a0] sm:$0xff]
  %v351 = vld [vmem:[%s3 + $0x2a8] sm:$0xff]
  %v352 = vld [vmem:[%s3 + $0x2b0] sm:$0xff]
  %v353 = vld [vmem:[%s3 + $0x2b8] sm:$0xff]
  %v354 = vld [vmem:[%s3 + $0x2c0] sm:$0xff]
  %v355 = vld [vmem:[%s3 + $0x2c8] sm:$0xff]
  %v356 = vld [vmem:[%s3 + $0x2d0] sm:$0xff]
  %v357 = vld [vmem:[%s3 + $0x2d8] sm:$0xff]
  %v358 = vld [vmem:[%s3 + $0x2e0] sm:$0xff]
  %v359 = vld [vmem:[%s3 + $0x2e8] sm:$0xff]
  %v360 = vld [vmem:[%s3 + $0x2f0] sm:$0xff]
  %v361 = vld [vmem:[%s3 + $0x2f8] sm:$0xff]
  %v362 = vld [vmem:[%s3 + $0x300] sm:$0xff]
  %v363 = vld [vmem:[%s3 + $0x308] sm:$0xff]
  %v364 = vld [vmem:[%s3 + $0x310] sm:$0xff]
  %v365 = vld [vmem:[%s3 + $0x318] sm:$0xff]
  %v366 = vld [vmem:[%s3 + $0x320] sm:$0xff]
  %v367 = vld [vmem:[%s3 + $0x328] sm:$0xff]
  %v368 = vld [vmem:[%s3 + $0x330] sm:$0xff]
  %v369 = vld [vmem:[%s3 + $0x338] sm:$0xff]
  %v370 = vld [vmem:[%s3 + $0x340] sm:$0xff]
  %v371 = vld [vmem:[%s3 + $0x348] sm:$0xff]
  %v372 = vld [vmem:[%s3 + $0x350] sm:$0xff]
  %v373 = vld [vmem:[%s3 + $0x358] sm:$0xff]
  %v374 = vld [vmem:[%s3 + $0x360] sm:$0xff]
  %v375 = vld [vmem:[%s3 + $0x368] sm:$0xff]
  %v376 = vld [vmem:[%s3 + $0x370] sm:$0xff]
  %v377 = vld [vmem:[%s3 + $0x378] sm:$0xff]
  %v378 = vld [vmem:[%s3 + $0x380] sm:$0xff]
  %v379 = vld [vmem:[%s3 + $0x388] sm:$0xff]
  %v380 = vld [vmem:[%s3 + $0x390] sm:$0xff]
  %v381 = vld [vmem:[%s3 + $0x398] sm:$0xff]
  %v382 = vld [vmem:[%s3 + $0x3a0] sm:$0xff]
  %v383 = vld [vmem:[%s3 + $0x3a8] sm:$0xff]
  %v384 = vld [vmem:[%s3 + $0x3b0] sm:$0xff]
  %v385 = vld [vmem:[%s3 + $0x3b8] sm:$0xff]
  %v386 = vld [vmem:[%s3 + $0x3c0] sm:$0xff]
  %v387 = vld [vmem:[%s3 + $0x3c8] sm:$0xff]
  %v388 = vld [vmem:[%s3 + $0x3d0] sm:$0xff]
  %v389 = vld [vmem:[%s3 + $0x3d8] sm:$0xff]
  %v390 = vld [vmem:[%s3 + $0x3e0] sm:$0xff]
  %v391 = vld [vmem:[%s3 + $0x3e8] sm:$0xff]
  %v392 = vld [vmem:[%s3 + $0x3f0] sm:$0xff]
  %v393 = vld [vmem:[%s3 + $0x3f8] sm:$0xff]
  %v394 = vld [vmem:[%s3 + $0x400] sm:$0xff]
  %v395 = vld [vmem:[%s3 + $0x408] sm:$0xff]
  %v396 = vld [vmem:[%s3 + $0x410] sm:$0xff]
  %v397 = vld [vmem:[%s3 + $0x418] sm:$0xff]
  %v398 = vld [vmem:[%s3 + $0x420] sm:$0xff]
  %v399 = vld [vmem:[%s3 + $0x428] sm:$0xff]
  %v400 = vld [vmem:[%s3 + $0x430] sm:$0xff]
  %v401 = vld [vmem:[%s3 + $0x438] sm:$0xff]
  %v402 = vld [vmem:[%s3 + $0x440] sm:$0xff]
  %v403 = vld [vmem:[%s3 + $0x448] sm:$0xff]
  %v404 = vld [vmem:[%s3 + $0x450] sm:$0xff]
  %v405 = vld [vmem:[%s3 + $0x458] sm:$0xff]
  %v406 = vld [vmem:[%s3 + $0x460] sm:$0xff]
  %v407 = vld [vmem:[%s3 + $0x468] sm:$0xff]
  %v408 = vld [vmem:[%s3 + $0x470] sm:$0xff]
  %v409 = vld [vmem:[%s3 + $0x478] sm:$0xff]
  %v410 = vld [vmem:[%s3 + $0x480] sm:$0xff]
  %v411 = vld [vmem:[%s3 + $0x488] sm:$0xff]
  %v412 = vld [vmem:[%s3 + $0x490] sm:$0xff]
  %v413 = vld [vmem:[%s3 + $0x498] sm:$0xff]
  %v414 = vld [vmem:[%s3 + $0x4a0] sm:$0xff]
  %v415 = vld [vmem:[%s3 + $0x4a8] sm:$0xff]
  %v416 = vld [vmem:[%s3 + $0x4b0] sm:$0xff]
  %v417 = vld [vmem:[%s3 + $0x4b8] sm:$0xff]
  %v418 = vld [vmem:[%s3 + $0x4c0] sm:$0xff]
  %v419 = vld [vmem:[%s3 + $0x4c8] sm:$0xff]
  %v420 = vld [vmem:[%s3 + $0x4d0] sm:$0xff]
  %v421 = vld [vmem:[%s3 + $0x4d8] sm:$0xff]
  %v422 = vld [vmem:[%s3 + $0x4e0] sm:$0xff]
  %v423 = vld [vmem:[%s3 + $0x4e8] sm:$0xff]
  %v424 = vld [vmem:[%s3 + $0x4f0] sm:$0xff]
  %v425 = vld [vmem:[%s3 + $0x4f8] sm:$0xff]
  %v426 = vld [vmem:[%s3 + $0x500] sm:$0xff]
  %v427 = vld [vmem:[%s3 + $0x508] sm:$0xff]
  %v428 = vld [vmem:[%s3 + $0x510] sm:$0xff]
  %v429 = vld [vmem:[%s3 + $0x518] sm:$0xff]
  %v430 = vld [vmem:[%s3 + $0x520] sm:$0xff]
  %v431 = vld [vmem:[%s3 + $0x528] sm:$0xff]
  %v432 = vld [vmem:[%s3 + $0x530] sm:$0xff]
  %v433 = vld [vmem:[%s3 + $0x538] sm:$0xff]
  %v434 = vld [vmem:[%s3 + $0x540] sm:$0xff]
  %v435 = vld [vmem:[%s3 + $0x548] sm:$0xff]
  %v436 = vld [vmem:[%s3 + $0x550] sm:$0xff]
  %v437 = vld [vmem:[%s3 + $0x558] sm:$0xff]
  %v438 = vld [vmem:[%s3 + $0x560] sm:$0xff]
  %v439 = vld [vmem:[%s3 + $0x568] sm:$0xff]
  %v440 = vld [vmem:[%s3 + $0x570] sm:$0xff]
  %v441 = vld [vmem:[%s3 + $0x578] sm:$0xff]
  %v442 = vld [vmem:[%s3 + $0x580] sm:$0xff]
  %v443 = vld [vmem:[%s3 + $0x588] sm:$0xff]
  %v444 = vld [vmem:[%s3 + $0x590] sm:$0xff]
  %v445 = vld [vmem:[%s3 + $0x598] sm:$0xff]
  %v446 = vld [vmem:[%s3 + $0x5a0] sm:$0xff]
  %v447 = vld [vmem:[%s3 + $0x5a8] sm:$0xff]
  %v448 = vld [vmem:[%s3 + $0x5b0] sm:$0xff]
  %v449 = vld [vmem:[%s3 + $0x5b8] sm:$0xff]
  %v450 = vld [vmem:[%s3 + $0x5c0] sm:$0xff]
  %v451 = vld [vmem:[%s3 + $0x5c8] sm:$0xff]
  %v452 = vld [vmem:[%s3 + $0x5d0] sm:$0xff]
  %v453 = vld [vmem:[%s3 + $0x5d8] sm:$0xff]
  %v454 = vld [vmem:[%s3 + $0x5e0] sm:$0xff]
  %v455 = vld [vmem:[%s3 + $0x5e8] sm:$0xff]
  %v456 = vld [vmem:[%s3 + $0x5f0] sm:$0xff]
  %v457 = vld [vmem:[%s3 + $0x5f8] sm:$0xff]
  %v458 = vld [vmem:[%s3 + $0x600] sm:$0xff]
  %v459 = vld [vmem:[%s3 + $0x608] sm:$0xff]
  %v460 = vld [vmem:[%s3 + $0x610] sm:$0xff]
  %v461 = vld [vmem:[%s3 + $0x618] sm:$0xff]
  %v462 = vld [vmem:[%s3 + $0x620] sm:$0xff]
  %v463 = vld [vmem:[%s3 + $0x628] sm:$0xff]
  %v464 = vld [vmem:[%s3 + $0x630] sm:$0xff]
  %v465 = vld [vmem:[%s3 + $0x638] sm:$0xff]
  %v466 = vld [vmem:[%s3 + $0x640] sm:$0xff]
  %v467 = vld [vmem:[%s3 + $0x648] sm:$0xff]
  %v468 = vld [vmem:[%s3 + $0x650] sm:$0xff]
  %v469 = vld [vmem:[%s3 + $0x658] sm:$0xff]
  %v470 = vld [vmem:[%s3 + $0x660] sm:$0xff]
  %v471 = vld [vmem:[%s3 + $0x668] sm:$0xff]
  %v472 = vld [vmem:[%s3 + $0x670] sm:$0xff]
  %v473 = vld [vmem:[%s3 + $0x678] sm:$0xff]
  %v474 = vld [vmem:[%s3 + $0x680] sm:$0xff]
  %v475 = vld [vmem:[%s3 + $0x688] sm:$0xff]
  %v476 = vld [vmem:[%s3 + $0x690] sm:$0xff]
  %v477 = vld [vmem:[%s3 + $0x698] sm:$0xff]
  %v478 = vld [vmem:[%s3 + $0x6a0] sm:$0xff]
  %v479 = vld [vmem:[%s3 + $0x6a8] sm:$0xff]
  %v480 = vld [vmem:[%s3 + $0x6b0] sm:$0xff]
  %v481 = vld [vmem:[%s3 + $0x6b8] sm:$0xff]
  %v482 = vld [vmem:[%s3 + $0x6c0] sm:$0xff]
  %v483 = vld [vmem:[%s3 + $0x6c8] sm:$0xff]
  %v484 = vld [vmem:[%s3 + $0x6d0] sm:$0xff]
  %v485 = vld [vmem:[%s3 + $0x6d8] sm:$0xff]
  %v486 = vld [vmem:[%s3 + $0x6e0] sm:$0xff]
  %v487 = vld [vmem:[%s3 + $0x6e8] sm:$0xff]
  %v488 = vld [vmem:[%s3 + $0x6f0] sm:$0xff]
  %v489 = vld [vmem:[%s3 + $0x6f8] sm:$0xff]
  %v490 = vld [vmem:[%s3 + $0x700] sm:$0xff]
  %v491 = vld [vmem:[%s3 + $0x708] sm:$0xff]
  %v492 = vld [vmem:[%s3 + $0x710] sm:$0xff]
  %v493 = vld [vmem:[%s3 + $0x718] sm:$0xff]
  %v494 = vld [vmem:[%s3 + $0x720] sm:$0xff]
  %v495 = vld [vmem:[%s3 + $0x728] sm:$0xff]
  %v496 = vld [vmem:[%s3 + $0x730] sm:$0xff]
  %v497 = vld [vmem:[%s3 + $0x738] sm:$0xff]
  %v498 = vld [vmem:[%s3 + $0x740] sm:$0xff]
  %v499 = vld [vmem:[%s3 + $0x748] sm:$0xff]
  %v500 = vld [vmem:[%s3 + $0x750] sm:$0xff]
  %v501 = vld [vmem:[%s3 + $0x758] sm:$0xff]
  %v502 = vld [vmem:[%s3 + $0x760] sm:$0xff]
  %v503 = vld [vmem:[%s3 + $0x768] sm:$0xff]
  %v504 = vld [vmem:[%s3 + $0x770] sm:$0xff]
  %v505 = vld [vmem:[%s3 + $0x778] sm:$0xff]
  %v506 = vld [vmem:[%s3 + $0x780] sm:$0xff]
  %v507 = vld [vmem:[%s3 + $0x788] sm:$0xff]
  %v508 = vld [vmem:[%s3 + $0x790] sm:$0xff]
  %v509 = vld [vmem:[%s3 + $0x798] sm:$0xff]
  %v510 = vld [vmem:[%s3 + $0x7a0] sm:$0xff]
  %v511 = vld [vmem:[%s3 + $0x7a8] sm:$0xff]
  %v512 = vld [vmem:[%s3 + $0x7b0] sm:$0xff]
  %v513 = vld [vmem:[%s3 + $0x7b8] sm:$0xff]
  %v514 = vld [vmem:[%s3 + $0x7c0] sm:$0xff]
  %v515 = vld [vmem:[%s3 + $0x7c8] sm:$0xff]
  %v516 = vld [vmem:[%s3 + $0x7d0] sm:$0xff]
  %v517 = vld [vmem:[%s3 + $0x7d8] sm:$0xff]
  %v518 = vld [vmem:[%s3 + $0x7e0] sm:$0xff]
  %v519 = vld [vmem:[%s3 + $0x7e8] sm:$0xff]
  %v520 = vld [vmem:[%s3 + $0x7f0] sm:$0xff]
  %v521 = vld [vmem:[%s3 + $0x7f8] sm:$0xff]
  %v522 = vld [vmem:[%s4] sm:$0xf]
  %v524 = vperm.slane %v522, 0
  %v525 = vperm.slane %v522, 1
  %v526 = vperm.slane %v522, 2
  %v527 = vperm.slane %v522, 3
  %v788 = vunpack.c.l.b16 %v266
  %v789 = vunpack.c.h.b16 %v266
  %v790 = vunpack.c.l.b16 %v267
  %v791 = vunpack.c.h.b16 %v267
  %v792 = vunpack.c.l.b16 %v268
  %v793 = vunpack.c.h.b16 %v268
  %v794 = vunpack.c.l.b16 %v269
  %v795 = vunpack.c.h.b16 %v269
  %v796 = vunpack.c.l.b16 %v270
  %v797 = vunpack.c.h.b16 %v270
  %v798 = vunpack.c.l.b16 %v271
  %v799 = vunpack.c.h.b16 %v271
  %v800 = vunpack.c.l.b16 %v272
  %v801 = vunpack.c.h.b16 %v272
  %v802 = vunpack.c.l.b16 %v273
  %v803 = vunpack.c.h.b16 %v273
  %v804 = vunpack.c.l.b16 %v274
  %v805 = vunpack.c.h.b16 %v274
  %v806 = vunpack.c.l.b16 %v275
  %v807 = vunpack.c.h.b16 %v275
  %v808 = vunpack.c.l.b16 %v276
  %v809 = vunpack.c.h.b16 %v276
  %v810 = vunpack.c.l.b16 %v277
  %v811 = vunpack.c.h.b16 %v277
  %v812 = vunpack.c.l.b16 %v278
  %v813 = vunpack.c.h.b16 %v278
  %v814 = vunpack.c.l.b16 %v279
  %v815 = vunpack.c.h.b16 %v279
  %v816 = vunpack.c.l.b16 %v280
  %v817 = vunpack.c.h.b16 %v280
  %v818 = vunpack.c.l.b16 %v281
  %v819 = vunpack.c.h.b16 %v281
  %v820 = vunpack.c.l.b16 %v282
  %v821 = vunpack.c.h.b16 %v282
  %v822 = vunpack.c.l.b16 %v283
  %v823 = vunpack.c.h.b16 %v283
  %v824 = vunpack.c.l.b16 %v284
  %v825 = vunpack.c.h.b16 %v284
  %v826 = vunpack.c.l.b16 %v285
  %v827 = vunpack.c.h.b16 %v285
  %v828 = vunpack.c.l.b16 %v286
  %v829 = vunpack.c.h.b16 %v286
  %v830 = vunpack.c.l.b16 %v287
  %v831 = vunpack.c.h.b16 %v287
  %v832 = vunpack.c.l.b16 %v288
  %v833 = vunpack.c.h.b16 %v288
  %v834 = vunpack.c.l.b16 %v289
  %v835 = vunpack.c.h.b16 %v289
  %v836 = vunpack.c.l.b16 %v290
  %v837 = vunpack.c.h.b16 %v290
  %v838 = vunpack.c.l.b16 %v291
  %v839 = vunpack.c.h.b16 %v291
  %v840 = vunpack.c.l.b16 %v292
  %v841 = vunpack.c.h.b16 %v292
  %v842 = vunpack.c.l.b16 %v293
  %v843 = vunpack.c.h.b16 %v293
  %v844 = vunpack.c.l.b16 %v294
  %v845 = vunpack.c.h.b16 %v294
  %v846 = vunpack.c.l.b16 %v295
  %v847 = vunpack.c.h.b16 %v295
  %v848 = vunpack.c.l.b16 %v296
  %v849 = vunpack.c.h.b16 %v296
  %v850 = vunpack.c.l.b16 %v297
  %v851 = vunpack.c.h.b16 %v297
  %v852 = vunpack.c.l.b16 %v298
  %v853 = vunpack.c.h.b16 %v298
  %v854 = vunpack.c.l.b16 %v299
  %v855 = vunpack.c.h.b16 %v299
  %v856 = vunpack.c.l.b16 %v300
  %v857 = vunpack.c.h.b16 %v300
  %v858 = vunpack.c.l.b16 %v301
  %v859 = vunpack.c.h.b16 %v301
  %v860 = vunpack.c.l.b16 %v302
  %v861 = vunpack.c.h.b16 %v302
  %v862 = vunpack.c.l.b16 %v303
  %v863 = vunpack.c.h.b16 %v303
  %v864 = vunpack.c.l.b16 %v304
  %v865 = vunpack.c.h.b16 %v304
  %v866 = vunpack.c.l.b16 %v305
  %v867 = vunpack.c.h.b16 %v305
  %v868 = vunpack.c.l.b16 %v306
  %v869 = vunpack.c.h.b16 %v306
  %v870 = vunpack.c.l.b16 %v307
  %v871 = vunpack.c.h.b16 %v307
  %v872 = vunpack.c.l.b16 %v308
  %v873 = vunpack.c.h.b16 %v308
  %v874 = vunpack.c.l.b16 %v309
  %v875 = vunpack.c.h.b16 %v309
  %v876 = vunpack.c.l.b16 %v310
  %v877 = vunpack.c.h.b16 %v310
  %v878 = vunpack.c.l.b16 %v311
  %v879 = vunpack.c.h.b16 %v311
  %v880 = vunpack.c.l.b16 %v312
  %v881 = vunpack.c.h.b16 %v312
  %v882 = vunpack.c.l.b16 %v313
  %v883 = vunpack.c.h.b16 %v313
  %v884 = vunpack.c.l.b16 %v314
  %v885 = vunpack.c.h.b16 %v314
  %v886 = vunpack.c.l.b16 %v315
  %v887 = vunpack.c.h.b16 %v315
  %v888 = vunpack.c.l.b16 %v316
  %v889 = vunpack.c.h.b16 %v316
  %v890 = vunpack.c.l.b16 %v317
  %v891 = vunpack.c.h.b16 %v317
  %v892 = vunpack.c.l.b16 %v318
  %v893 = vunpack.c.h.b16 %v318
  %v894 = vunpack.c.l.b16 %v319
  %v895 = vunpack.c.h.b16 %v319
  %v896 = vunpack.c.l.b16 %v320
  %v897 = vunpack.c.h.b16 %v320
  %v898 = vunpack.c.l.b16 %v321
  %v899 = vunpack.c.h.b16 %v321
  %v900 = vunpack.c.l.b16 %v322
  %v901 = vunpack.c.h.b16 %v322
  %v902 = vunpack.c.l.b16 %v323
  %v903 = vunpack.c.h.b16 %v323
  %v904 = vunpack.c.l.b16 %v324
  %v905 = vunpack.c.h.b16 %v324
  %v906 = vunpack.c.l.b16 %v325
  %v907 = vunpack.c.h.b16 %v325
  %v908 = vunpack.c.l.b16 %v326
  %v909 = vunpack.c.h.b16 %v326
  %v910 = vunpack.c.l.b16 %v327
  %v911 = vunpack.c.h.b16 %v327
  %v912 = vunpack.c.l.b16 %v328
  %v913 = vunpack.c.h.b16 %v328
  %v914 = vunpack.c.l.b16 %v329
  %v915 = vunpack.c.h.b16 %v329
  %v916 = vunpack.c.l.b16 %v330
  %v917 = vunpack.c.h.b16 %v330
  %v918 = vunpack.c.l.b16 %v331
  %v919 = vunpack.c.h.b16 %v331
  %v920 = vunpack.c.l.b16 %v332
  %v921 = vunpack.c.h.b16 %v332
  %v922 = vunpack.c.l.b16 %v333
  %v923 = vunpack.c.h.b16 %v333
  %v924 = vunpack.c.l.b16 %v334
  %v925 = vunpack.c.h.b16 %v334
  %v926 = vunpack.c.l.b16 %v335
  %v927 = vunpack.c.h.b16 %v335
  %v928 = vunpack.c.l.b16 %v336
  %v929 = vunpack.c.h.b16 %v336
  %v930 = vunpack.c.l.b16 %v337
  %v931 = vunpack.c.h.b16 %v337
  %v932 = vunpack.c.l.b16 %v338
  %v933 = vunpack.c.h.b16 %v338
  %v934 = vunpack.c.l.b16 %v339
  %v935 = vunpack.c.h.b16 %v339
  %v936 = vunpack.c.l.b16 %v340
  %v937 = vunpack.c.h.b16 %v340
  %v938 = vunpack.c.l.b16 %v341
  %v939 = vunpack.c.h.b16 %v341
  %v940 = vunpack.c.l.b16 %v342
  %v941 = vunpack.c.h.b16 %v342
  %v942 = vunpack.c.l.b16 %v343
  %v943 = vunpack.c.h.b16 %v343
  %v944 = vunpack.c.l.b16 %v344
  %v945 = vunpack.c.h.b16 %v344
  %v946 = vunpack.c.l.b16 %v345
  %v947 = vunpack.c.h.b16 %v345
  %v948 = vunpack.c.l.b16 %v346
  %v949 = vunpack.c.h.b16 %v346
  %v950 = vunpack.c.l.b16 %v347
  %v951 = vunpack.c.h.b16 %v347
  %v952 = vunpack.c.l.b16 %v348
  %v953 = vunpack.c.h.b16 %v348
  %v954 = vunpack.c.l.b16 %v349
  %v955 = vunpack.c.h.b16 %v349
  %v956 = vunpack.c.l.b16 %v350
  %v957 = vunpack.c.h.b16 %v350
  %v958 = vunpack.c.l.b16 %v351
  %v959 = vunpack.c.h.b16 %v351
  %v960 = vunpack.c.l.b16 %v352
  %v961 = vunpack.c.h.b16 %v352
  %v962 = vunpack.c.l.b16 %v353
  %v963 = vunpack.c.h.b16 %v353
  %v964 = vunpack.c.l.b16 %v354
  %v965 = vunpack.c.h.b16 %v354
  %v966 = vunpack.c.l.b16 %v355
  %v967 = vunpack.c.h.b16 %v355
  %v968 = vunpack.c.l.b16 %v356
  %v969 = vunpack.c.h.b16 %v356
  %v970 = vunpack.c.l.b16 %v357
  %v971 = vunpack.c.h.b16 %v357
  %v972 = vunpack.c.l.b16 %v358
  %v973 = vunpack.c.h.b16 %v358
  %v974 = vunpack.c.l.b16 %v359
  %v975 = vunpack.c.h.b16 %v359
  %v976 = vunpack.c.l.b16 %v360
  %v977 = vunpack.c.h.b16 %v360
  %v978 = vunpack.c.l.b16 %v361
  %v979 = vunpack.c.h.b16 %v361
  %v980 = vunpack.c.l.b16 %v362
  %v981 = vunpack.c.h.b16 %v362
  %v982 = vunpack.c.l.b16 %v363
  %v983 = vunpack.c.h.b16 %v363
  %v984 = vunpack.c.l.b16 %v364
  %v985 = vunpack.c.h.b16 %v364
  %v986 = vunpack.c.l.b16 %v365
  %v987 = vunpack.c.h.b16 %v365
  %v988 = vunpack.c.l.b16 %v366
  %v989 = vunpack.c.h.b16 %v366
  %v990 = vunpack.c.l.b16 %v367
  %v991 = vunpack.c.h.b16 %v367
  %v992 = vunpack.c.l.b16 %v368
  %v993 = vunpack.c.h.b16 %v368
  %v994 = vunpack.c.l.b16 %v369
  %v995 = vunpack.c.h.b16 %v369
  %v996 = vunpack.c.l.b16 %v370
  %v997 = vunpack.c.h.b16 %v370
  %v998 = vunpack.c.l.b16 %v371
  %v999 = vunpack.c.h.b16 %v371
  %v1000 = vunpack.c.l.b16 %v372
  %v1001 = vunpack.c.h.b16 %v372
  %v1002 = vunpack.c.l.b16 %v373
  %v1003 = vunpack.c.h.b16 %v373
  %v1004 = vunpack.c.l.b16 %v374
  %v1005 = vunpack.c.h.b16 %v374
  %v1006 = vunpack.c.l.b16 %v375
  %v1007 = vunpack.c.h.b16 %v375
  %v1008 = vunpack.c.l.b16 %v376
  %v1009 = vunpack.c.h.b16 %v376
  %v1010 = vunpack.c.l.b16 %v377
  %v1011 = vunpack.c.h.b16 %v377
  %v1012 = vunpack.c.l.b16 %v378
  %v1013 = vunpack.c.h.b16 %v378
  %v1014 = vunpack.c.l.b16 %v379
  %v1015 = vunpack.c.h.b16 %v379
  %v1016 = vunpack.c.l.b16 %v380
  %v1017 = vunpack.c.h.b16 %v380
  %v1018 = vunpack.c.l.b16 %v381
  %v1019 = vunpack.c.h.b16 %v381
  %v1020 = vunpack.c.l.b16 %v382
  %v1021 = vunpack.c.h.b16 %v382
  %v1022 = vunpack.c.l.b16 %v383
  %v1023 = vunpack.c.h.b16 %v383
  %v1024 = vunpack.c.l.b16 %v384
  %v1025 = vunpack.c.h.b16 %v384
  %v1026 = vunpack.c.l.b16 %v385
  %v1027 = vunpack.c.h.b16 %v385
  %v1028 = vunpack.c.l.b16 %v386
  %v1029 = vunpack.c.h.b16 %v386
  %v1030 = vunpack.c.l.b16 %v387
  %v1031 = vunpack.c.h.b16 %v387
  %v1032 = vunpack.c.l.b16 %v388
  %v1033 = vunpack.c.h.b16 %v388
  %v1034 = vunpack.c.l.b16 %v389
  %v1035 = vunpack.c.h.b16 %v389
  %v1036 = vunpack.c.l.b16 %v390
  %v1037 = vunpack.c.h.b16 %v390
  %v1038 = vunpack.c.l.b16 %v391
  %v1039 = vunpack.c.h.b16 %v391
  %v1040 = vunpack.c.l.b16 %v392
  %v1041 = vunpack.c.h.b16 %v392
  %v1042 = vunpack.c.l.b16 %v393
  %v1043 = vunpack.c.h.b16 %v393
  %v1044 = vunpack.c.l.b16 %v394
  %v1045 = vunpack.c.h.b16 %v394
  %v1046 = vunpack.c.l.b16 %v395
  %v1047 = vunpack.c.h.b16 %v395
  %v1048 = vunpack.c.l.b16 %v396
  %v1049 = vunpack.c.h.b16 %v396
  %v1050 = vunpack.c.l.b16 %v397
  %v1051 = vunpack.c.h.b16 %v397
  %v1052 = vunpack.c.l.b16 %v398
  %v1053 = vunpack.c.h.b16 %v398
  %v1054 = vunpack.c.l.b16 %v399
  %v1055 = vunpack.c.h.b16 %v399
  %v1056 = vunpack.c.l.b16 %v400
  %v1057 = vunpack.c.h.b16 %v400
  %v1058 = vunpack.c.l.b16 %v401
  %v1059 = vunpack.c.h.b16 %v401
  %v1060 = vunpack.c.l.b16 %v402
  %v1061 = vunpack.c.h.b16 %v402
  %v1062 = vunpack.c.l.b16 %v403
  %v1063 = vunpack.c.h.b16 %v403
  %v1064 = vunpack.c.l.b16 %v404
  %v1065 = vunpack.c.h.b16 %v404
  %v1066 = vunpack.c.l.b16 %v405
  %v1067 = vunpack.c.h.b16 %v405
  %v1068 = vunpack.c.l.b16 %v406
  %v1069 = vunpack.c.h.b16 %v406
  %v1070 = vunpack.c.l.b16 %v407
  %v1071 = vunpack.c.h.b16 %v407
  %v1072 = vunpack.c.l.b16 %v408
  %v1073 = vunpack.c.h.b16 %v408
  %v1074 = vunpack.c.l.b16 %v409
  %v1075 = vunpack.c.h.b16 %v409
  %v1076 = vunpack.c.l.b16 %v410
  %v1077 = vunpack.c.h.b16 %v410
  %v1078 = vunpack.c.l.b16 %v411
  %v1079 = vunpack.c.h.b16 %v411
  %v1080 = vunpack.c.l.b16 %v412
  %v1081 = vunpack.c.h.b16 %v412
  %v1082 = vunpack.c.l.b16 %v413
  %v1083 = vunpack.c.h.b16 %v413
  %v1084 = vunpack.c.l.b16 %v414
  %v1085 = vunpack.c.h.b16 %v414
  %v1086 = vunpack.c.l.b16 %v415
  %v1087 = vunpack.c.h.b16 %v415
  %v1088 = vunpack.c.l.b16 %v416
  %v1089 = vunpack.c.h.b16 %v416
  %v1090 = vunpack.c.l.b16 %v417
  %v1091 = vunpack.c.h.b16 %v417
  %v1092 = vunpack.c.l.b16 %v418
  %v1093 = vunpack.c.h.b16 %v418
  %v1094 = vunpack.c.l.b16 %v419
  %v1095 = vunpack.c.h.b16 %v419
  %v1096 = vunpack.c.l.b16 %v420
  %v1097 = vunpack.c.h.b16 %v420
  %v1098 = vunpack.c.l.b16 %v421
  %v1099 = vunpack.c.h.b16 %v421
  %v1100 = vunpack.c.l.b16 %v422
  %v1101 = vunpack.c.h.b16 %v422
  %v1102 = vunpack.c.l.b16 %v423
  %v1103 = vunpack.c.h.b16 %v423
  %v1104 = vunpack.c.l.b16 %v424
  %v1105 = vunpack.c.h.b16 %v424
  %v1106 = vunpack.c.l.b16 %v425
  %v1107 = vunpack.c.h.b16 %v425
  %v1108 = vunpack.c.l.b16 %v426
  %v1109 = vunpack.c.h.b16 %v426
  %v1110 = vunpack.c.l.b16 %v427
  %v1111 = vunpack.c.h.b16 %v427
  %v1112 = vunpack.c.l.b16 %v428
  %v1113 = vunpack.c.h.b16 %v428
  %v1114 = vunpack.c.l.b16 %v429
  %v1115 = vunpack.c.h.b16 %v429
  %v1116 = vunpack.c.l.b16 %v430
  %v1117 = vunpack.c.h.b16 %v430
  %v1118 = vunpack.c.l.b16 %v431
  %v1119 = vunpack.c.h.b16 %v431
  %v1120 = vunpack.c.l.b16 %v432
  %v1121 = vunpack.c.h.b16 %v432
  %v1122 = vunpack.c.l.b16 %v433
  %v1123 = vunpack.c.h.b16 %v433
  %v1124 = vunpack.c.l.b16 %v434
  %v1125 = vunpack.c.h.b16 %v434
  %v1126 = vunpack.c.l.b16 %v435
  %v1127 = vunpack.c.h.b16 %v435
  %v1128 = vunpack.c.l.b16 %v436
  %v1129 = vunpack.c.h.b16 %v436
  %v1130 = vunpack.c.l.b16 %v437
  %v1131 = vunpack.c.h.b16 %v437
  %v1132 = vunpack.c.l.b16 %v438
  %v1133 = vunpack.c.h.b16 %v438
  %v1134 = vunpack.c.l.b16 %v439
  %v1135 = vunpack.c.h.b16 %v439
  %v1136 = vunpack.c.l.b16 %v440
  %v1137 = vunpack.c.h.b16 %v440
  %v1138 = vunpack.c.l.b16 %v441
  %v1139 = vunpack.c.h.b16 %v441
  %v1140 = vunpack.c.l.b16 %v442
  %v1141 = vunpack.c.h.b16 %v442
  %v1142 = vunpack.c.l.b16 %v443
  %v1143 = vunpack.c.h.b16 %v443
  %v1144 = vunpack.c.l.b16 %v444
  %v1145 = vunpack.c.h.b16 %v444
  %v1146 = vunpack.c.l.b16 %v445
  %v1147 = vunpack.c.h.b16 %v445
  %v1148 = vunpack.c.l.b16 %v446
  %v1149 = vunpack.c.h.b16 %v446
  %v1150 = vunpack.c.l.b16 %v447
  %v1151 = vunpack.c.h.b16 %v447
  %v1152 = vunpack.c.l.b16 %v448
  %v1153 = vunpack.c.h.b16 %v448
  %v1154 = vunpack.c.l.b16 %v449
  %v1155 = vunpack.c.h.b16 %v449
  %v1156 = vunpack.c.l.b16 %v450
  %v1157 = vunpack.c.h.b16 %v450
  %v1158 = vunpack.c.l.b16 %v451
  %v1159 = vunpack.c.h.b16 %v451
  %v1160 = vunpack.c.l.b16 %v452
  %v1161 = vunpack.c.h.b16 %v452
  %v1162 = vunpack.c.l.b16 %v453
  %v1163 = vunpack.c.h.b16 %v453
  %v1164 = vunpack.c.l.b16 %v454
  %v1165 = vunpack.c.h.b16 %v454
  %v1166 = vunpack.c.l.b16 %v455
  %v1167 = vunpack.c.h.b16 %v455
  %v1168 = vunpack.c.l.b16 %v456
  %v1169 = vunpack.c.h.b16 %v456
  %v1170 = vunpack.c.l.b16 %v457
  %v1171 = vunpack.c.h.b16 %v457
  %v1172 = vunpack.c.l.b16 %v458
  %v1173 = vunpack.c.h.b16 %v458
  %v1174 = vunpack.c.l.b16 %v459
  %v1175 = vunpack.c.h.b16 %v459
  %v1176 = vunpack.c.l.b16 %v460
  %v1177 = vunpack.c.h.b16 %v460
  %v1178 = vunpack.c.l.b16 %v461
  %v1179 = vunpack.c.h.b16 %v461
  %v1180 = vunpack.c.l.b16 %v462
  %v1181 = vunpack.c.h.b16 %v462
  %v1182 = vunpack.c.l.b16 %v463
  %v1183 = vunpack.c.h.b16 %v463
  %v1184 = vunpack.c.l.b16 %v464
  %v1185 = vunpack.c.h.b16 %v464
  %v1186 = vunpack.c.l.b16 %v465
  %v1187 = vunpack.c.h.b16 %v465
  %v1188 = vunpack.c.l.b16 %v466
  %v1189 = vunpack.c.h.b16 %v466
  %v1190 = vunpack.c.l.b16 %v467
  %v1191 = vunpack.c.h.b16 %v467
  %v1192 = vunpack.c.l.b16 %v468
  %v1193 = vunpack.c.h.b16 %v468
  %v1194 = vunpack.c.l.b16 %v469
  %v1195 = vunpack.c.h.b16 %v469
  %v1196 = vunpack.c.l.b16 %v470
  %v1197 = vunpack.c.h.b16 %v470
  %v1198 = vunpack.c.l.b16 %v471
  %v1199 = vunpack.c.h.b16 %v471
  %v1200 = vunpack.c.l.b16 %v472
  %v1201 = vunpack.c.h.b16 %v472
  %v1202 = vunpack.c.l.b16 %v473
  %v1203 = vunpack.c.h.b16 %v473
  %v1204 = vunpack.c.l.b16 %v474
  %v1205 = vunpack.c.h.b16 %v474
  %v1206 = vunpack.c.l.b16 %v475
  %v1207 = vunpack.c.h.b16 %v475
  %v1208 = vunpack.c.l.b16 %v476
  %v1209 = vunpack.c.h.b16 %v476
  %v1210 = vunpack.c.l.b16 %v477
  %v1211 = vunpack.c.h.b16 %v477
  %v1212 = vunpack.c.l.b16 %v478
  %v1213 = vunpack.c.h.b16 %v478
  %v1214 = vunpack.c.l.b16 %v479
  %v1215 = vunpack.c.h.b16 %v479
  %v1216 = vunpack.c.l.b16 %v480
  %v1217 = vunpack.c.h.b16 %v480
  %v1218 = vunpack.c.l.b16 %v481
  %v1219 = vunpack.c.h.b16 %v481
  %v1220 = vunpack.c.l.b16 %v482
  %v1221 = vunpack.c.h.b16 %v482
  %v1222 = vunpack.c.l.b16 %v483
  %v1223 = vunpack.c.h.b16 %v483
  %v1224 = vunpack.c.l.b16 %v484
  %v1225 = vunpack.c.h.b16 %v484
  %v1226 = vunpack.c.l.b16 %v485
  %v1227 = vunpack.c.h.b16 %v485
  %v1228 = vunpack.c.l.b16 %v486
  %v1229 = vunpack.c.h.b16 %v486
  %v1230 = vunpack.c.l.b16 %v487
  %v1231 = vunpack.c.h.b16 %v487
  %v1232 = vunpack.c.l.b16 %v488
  %v1233 = vunpack.c.h.b16 %v488
  %v1234 = vunpack.c.l.b16 %v489
  %v1235 = vunpack.c.h.b16 %v489
  %v1236 = vunpack.c.l.b16 %v490
  %v1237 = vunpack.c.h.b16 %v490
  %v1238 = vunpack.c.l.b16 %v491
  %v1239 = vunpack.c.h.b16 %v491
  %v1240 = vunpack.c.l.b16 %v492
  %v1241 = vunpack.c.h.b16 %v492
  %v1242 = vunpack.c.l.b16 %v493
  %v1243 = vunpack.c.h.b16 %v493
  %v1244 = vunpack.c.l.b16 %v494
  %v1245 = vunpack.c.h.b16 %v494
  %v1246 = vunpack.c.l.b16 %v495
  %v1247 = vunpack.c.h.b16 %v495
  %v1248 = vunpack.c.l.b16 %v496
  %v1249 = vunpack.c.h.b16 %v496
  %v1250 = vunpack.c.l.b16 %v497
  %v1251 = vunpack.c.h.b16 %v497
  %v1252 = vunpack.c.l.b16 %v498
  %v1253 = vunpack.c.h.b16 %v498
  %v1254 = vunpack.c.l.b16 %v499
  %v1255 = vunpack.c.h.b16 %v499
  %v1256 = vunpack.c.l.b16 %v500
  %v1257 = vunpack.c.h.b16 %v500
  %v1258 = vunpack.c.l.b16 %v501
  %v1259 = vunpack.c.h.b16 %v501
  %v1260 = vunpack.c.l.b16 %v502
  %v1261 = vunpack.c.h.b16 %v502
  %v1262 = vunpack.c.l.b16 %v503
  %v1263 = vunpack.c.h.b16 %v503
  %v1264 = vunpack.c.l.b16 %v504
  %v1265 = vunpack.c.h.b16 %v504
  %v1266 = vunpack.c.l.b16 %v505
  %v1267 = vunpack.c.h.b16 %v505
  %v1268 = vunpack.c.l.b16 %v506
  %v1269 = vunpack.c.h.b16 %v506
  %v1270 = vunpack.c.l.b16 %v507
  %v1271 = vunpack.c.h.b16 %v507
  %v1272 = vunpack.c.l.b16 %v508
  %v1273 = vunpack.c.h.b16 %v508
  %v1274 = vunpack.c.l.b16 %v509
  %v1275 = vunpack.c.h.b16 %v509
  %v1276 = vunpack.c.l.b16 %v510
  %v1277 = vunpack.c.h.b16 %v510
  %v1278 = vunpack.c.l.b16 %v511
  %v1279 = vunpack.c.h.b16 %v511
  %v1280 = vunpack.c.l.b16 %v512
  %v1281 = vunpack.c.h.b16 %v512
  %v1282 = vunpack.c.l.b16 %v513
  %v1283 = vunpack.c.h.b16 %v513
  %v1284 = vunpack.c.l.b16 %v514
  %v1285 = vunpack.c.h.b16 %v514
  %v1286 = vunpack.c.l.b16 %v515
  %v1287 = vunpack.c.h.b16 %v515
  %v1288 = vunpack.c.l.b16 %v516
  %v1289 = vunpack.c.h.b16 %v516
  %v1290 = vunpack.c.l.b16 %v517
  %v1291 = vunpack.c.h.b16 %v517
  %v1292 = vunpack.c.l.b16 %v518
  %v1293 = vunpack.c.h.b16 %v518
  %v1294 = vunpack.c.l.b16 %v519
  %v1295 = vunpack.c.h.b16 %v519
  %v1296 = vunpack.c.l.b16 %v520
  %v1297 = vunpack.c.h.b16 %v520
  %v1298 = vunpack.c.l.b16 %v521
  %v1299 = vunpack.c.h.b16 %v521
  %v1300 = vpack.c.b16 %v792, %v788
  %v1301 = vpack.c.b16 %v793, %v789
  %v1302 = vpack.c.b16 %v794, %v790
  %v1303 = vpack.c.b16 %v795, %v791
  %v1304 = vpack.c.b16 %v800, %v796
  %v1305 = vpack.c.b16 %v801, %v797
  %v1306 = vpack.c.b16 %v802, %v798
  %v1307 = vpack.c.b16 %v803, %v799
  %v1308 = vpack.c.b16 %v808, %v804
  %v1309 = vpack.c.b16 %v809, %v805
  %v1310 = vpack.c.b16 %v810, %v806
  %v1311 = vpack.c.b16 %v811, %v807
  %v1312 = vpack.c.b16 %v816, %v812
  %v1313 = vpack.c.b16 %v817, %v813
  %v1314 = vpack.c.b16 %v818, %v814
  %v1315 = vpack.c.b16 %v819, %v815
  %v1316 = vpack.c.b16 %v824, %v820
  %v1317 = vpack.c.b16 %v825, %v821
  %v1318 = vpack.c.b16 %v826, %v822
  %v1319 = vpack.c.b16 %v827, %v823
  %v1320 = vpack.c.b16 %v832, %v828
  %v1321 = vpack.c.b16 %v833, %v829
  %v1322 = vpack.c.b16 %v834, %v830
  %v1323 = vpack.c.b16 %v835, %v831
  %v1324 = vpack.c.b16 %v840, %v836
  %v1325 = vpack.c.b16 %v841, %v837
  %v1326 = vpack.c.b16 %v842, %v838
  %v1327 = vpack.c.b16 %v843, %v839
  %v1328 = vpack.c.b16 %v848, %v844
  %v1329 = vpack.c.b16 %v849, %v845
  %v1330 = vpack.c.b16 %v850, %v846
  %v1331 = vpack.c.b16 %v851, %v847
  %v1332 = vpack.c.b16 %v856, %v852
  %v1333 = vpack.c.b16 %v857, %v853
  %v1334 = vpack.c.b16 %v858, %v854
  %v1335 = vpack.c.b16 %v859, %v855
  %v1336 = vpack.c.b16 %v864, %v860
  %v1337 = vpack.c.b16 %v865, %v861
  %v1338 = vpack.c.b16 %v866, %v862
  %v1339 = vpack.c.b16 %v867, %v863
  %v1340 = vpack.c.b16 %v872, %v868
  %v1341 = vpack.c.b16 %v873, %v869
  %v1342 = vpack.c.b16 %v874, %v870
  %v1343 = vpack.c.b16 %v875, %v871
  %v1344 = vpack.c.b16 %v880, %v876
  %v1345 = vpack.c.b16 %v881, %v877
  %v1346 = vpack.c.b16 %v882, %v878
  %v1347 = vpack.c.b16 %v883, %v879
  %v1348 = vpack.c.b16 %v888, %v884
  %v1349 = vpack.c.b16 %v889, %v885
  %v1350 = vpack.c.b16 %v890, %v886
  %v1351 = vpack.c.b16 %v891, %v887
  %v1352 = vpack.c.b16 %v896, %v892
  %v1353 = vpack.c.b16 %v897, %v893
  %v1354 = vpack.c.b16 %v898, %v894
  %v1355 = vpack.c.b16 %v899, %v895
  %v1356 = vpack.c.b16 %v904, %v900
  %v1357 = vpack.c.b16 %v905, %v901
  %v1358 = vpack.c.b16 %v906, %v902
  %v1359 = vpack.c.b16 %v907, %v903
  %v1360 = vpack.c.b16 %v912, %v908
  %v1361 = vpack.c.b16 %v913, %v909
  %v1362 = vpack.c.b16 %v914, %v910
  %v1363 = vpack.c.b16 %v915, %v911
  %v1364 = vpack.c.b16 %v920, %v916
  %v1365 = vpack.c.b16 %v921, %v917
  %v1366 = vpack.c.b16 %v922, %v918
  %v1367 = vpack.c.b16 %v923, %v919
  %v1368 = vpack.c.b16 %v928, %v924
  %v1369 = vpack.c.b16 %v929, %v925
  %v1370 = vpack.c.b16 %v930, %v926
  %v1371 = vpack.c.b16 %v931, %v927
  %v1372 = vpack.c.b16 %v936, %v932
  %v1373 = vpack.c.b16 %v937, %v933
  %v1374 = vpack.c.b16 %v938, %v934
  %v1375 = vpack.c.b16 %v939, %v935
  %v1376 = vpack.c.b16 %v944, %v940
  %v1377 = vpack.c.b16 %v945, %v941
  %v1378 = vpack.c.b16 %v946, %v942
  %v1379 = vpack.c.b16 %v947, %v943
  %v1380 = vpack.c.b16 %v952, %v948
  %v1381 = vpack.c.b16 %v953, %v949
  %v1382 = vpack.c.b16 %v954, %v950
  %v1383 = vpack.c.b16 %v955, %v951
  %v1384 = vpack.c.b16 %v960, %v956
  %v1385 = vpack.c.b16 %v961, %v957
  %v1386 = vpack.c.b16 %v962, %v958
  %v1387 = vpack.c.b16 %v963, %v959
  %v1388 = vpack.c.b16 %v968, %v964
  %v1389 = vpack.c.b16 %v969, %v965
  %v1390 = vpack.c.b16 %v970, %v966
  %v1391 = vpack.c.b16 %v971, %v967
  %v1392 = vpack.c.b16 %v976, %v972
  %v1393 = vpack.c.b16 %v977, %v973
  %v1394 = vpack.c.b16 %v978, %v974
  %v1395 = vpack.c.b16 %v979, %v975
  %v1396 = vpack.c.b16 %v984, %v980
  %v1397 = vpack.c.b16 %v985, %v981
  %v1398 = vpack.c.b16 %v986, %v982
  %v1399 = vpack.c.b16 %v987, %v983
  %v1400 = vpack.c.b16 %v992, %v988
  %v1401 = vpack.c.b16 %v993, %v989
  %v1402 = vpack.c.b16 %v994, %v990
  %v1403 = vpack.c.b16 %v995, %v991
  %v1404 = vpack.c.b16 %v1000, %v996
  %v1405 = vpack.c.b16 %v1001, %v997
  %v1406 = vpack.c.b16 %v1002, %v998
  %v1407 = vpack.c.b16 %v1003, %v999
  %v1408 = vpack.c.b16 %v1008, %v1004
  %v1409 = vpack.c.b16 %v1009, %v1005
  %v1410 = vpack.c.b16 %v1010, %v1006
  %v1411 = vpack.c.b16 %v1011, %v1007
  %v1412 = vpack.c.b16 %v1016, %v1012
  %v1413 = vpack.c.b16 %v1017, %v1013
  %v1414 = vpack.c.b16 %v1018, %v1014
  %v1415 = vpack.c.b16 %v1019, %v1015
  %v1416 = vpack.c.b16 %v1024, %v1020
  %v1417 = vpack.c.b16 %v1025, %v1021
  %v1418 = vpack.c.b16 %v1026, %v1022
  %v1419 = vpack.c.b16 %v1027, %v1023
  %v1420 = vpack.c.b16 %v1032, %v1028
  %v1421 = vpack.c.b16 %v1033, %v1029
  %v1422 = vpack.c.b16 %v1034, %v1030
  %v1423 = vpack.c.b16 %v1035, %v1031
  %v1424 = vpack.c.b16 %v1040, %v1036
  %v1425 = vpack.c.b16 %v1041, %v1037
  %v1426 = vpack.c.b16 %v1042, %v1038
  %v1427 = vpack.c.b16 %v1043, %v1039
  %v1428 = vpack.c.b16 %v1048, %v1044
  %v1429 = vpack.c.b16 %v1049, %v1045
  %v1430 = vpack.c.b16 %v1050, %v1046
  %v1431 = vpack.c.b16 %v1051, %v1047
  %v1432 = vpack.c.b16 %v1056, %v1052
  %v1433 = vpack.c.b16 %v1057, %v1053
  %v1434 = vpack.c.b16 %v1058, %v1054
  %v1435 = vpack.c.b16 %v1059, %v1055
  %v1436 = vpack.c.b16 %v1064, %v1060
  %v1437 = vpack.c.b16 %v1065, %v1061
  %v1438 = vpack.c.b16 %v1066, %v1062
  %v1439 = vpack.c.b16 %v1067, %v1063
  %v1440 = vpack.c.b16 %v1072, %v1068
  %v1441 = vpack.c.b16 %v1073, %v1069
  %v1442 = vpack.c.b16 %v1074, %v1070
  %v1443 = vpack.c.b16 %v1075, %v1071
  %v1444 = vpack.c.b16 %v1080, %v1076
  %v1445 = vpack.c.b16 %v1081, %v1077
  %v1446 = vpack.c.b16 %v1082, %v1078
  %v1447 = vpack.c.b16 %v1083, %v1079
  %v1448 = vpack.c.b16 %v1088, %v1084
  %v1449 = vpack.c.b16 %v1089, %v1085
  %v1450 = vpack.c.b16 %v1090, %v1086
  %v1451 = vpack.c.b16 %v1091, %v1087
  %v1452 = vpack.c.b16 %v1096, %v1092
  %v1453 = vpack.c.b16 %v1097, %v1093
  %v1454 = vpack.c.b16 %v1098, %v1094
  %v1455 = vpack.c.b16 %v1099, %v1095
  %v1456 = vpack.c.b16 %v1104, %v1100
  %v1457 = vpack.c.b16 %v1105, %v1101
  %v1458 = vpack.c.b16 %v1106, %v1102
  %v1459 = vpack.c.b16 %v1107, %v1103
  %v1460 = vpack.c.b16 %v1112, %v1108
  %v1461 = vpack.c.b16 %v1113, %v1109
  %v1462 = vpack.c.b16 %v1114, %v1110
  %v1463 = vpack.c.b16 %v1115, %v1111
  %v1464 = vpack.c.b16 %v1120, %v1116
  %v1465 = vpack.c.b16 %v1121, %v1117
  %v1466 = vpack.c.b16 %v1122, %v1118
  %v1467 = vpack.c.b16 %v1123, %v1119
  %v1468 = vpack.c.b16 %v1128, %v1124
  %v1469 = vpack.c.b16 %v1129, %v1125
  %v1470 = vpack.c.b16 %v1130, %v1126
  %v1471 = vpack.c.b16 %v1131, %v1127
  %v1472 = vpack.c.b16 %v1136, %v1132
  %v1473 = vpack.c.b16 %v1137, %v1133
  %v1474 = vpack.c.b16 %v1138, %v1134
  %v1475 = vpack.c.b16 %v1139, %v1135
  %v1476 = vpack.c.b16 %v1144, %v1140
  %v1477 = vpack.c.b16 %v1145, %v1141
  %v1478 = vpack.c.b16 %v1146, %v1142
  %v1479 = vpack.c.b16 %v1147, %v1143
  %v1480 = vpack.c.b16 %v1152, %v1148
  %v1481 = vpack.c.b16 %v1153, %v1149
  %v1482 = vpack.c.b16 %v1154, %v1150
  %v1483 = vpack.c.b16 %v1155, %v1151
  %v1484 = vpack.c.b16 %v1160, %v1156
  %v1485 = vpack.c.b16 %v1161, %v1157
  %v1486 = vpack.c.b16 %v1162, %v1158
  %v1487 = vpack.c.b16 %v1163, %v1159
  %v1488 = vpack.c.b16 %v1168, %v1164
  %v1489 = vpack.c.b16 %v1169, %v1165
  %v1490 = vpack.c.b16 %v1170, %v1166
  %v1491 = vpack.c.b16 %v1171, %v1167
  %v1492 = vpack.c.b16 %v1176, %v1172
  %v1493 = vpack.c.b16 %v1177, %v1173
  %v1494 = vpack.c.b16 %v1178, %v1174
  %v1495 = vpack.c.b16 %v1179, %v1175
  %v1496 = vpack.c.b16 %v1184, %v1180
  %v1497 = vpack.c.b16 %v1185, %v1181
  %v1498 = vpack.c.b16 %v1186, %v1182
  %v1499 = vpack.c.b16 %v1187, %v1183
  %v1500 = vpack.c.b16 %v1192, %v1188
  %v1501 = vpack.c.b16 %v1193, %v1189
  %v1502 = vpack.c.b16 %v1194, %v1190
  %v1503 = vpack.c.b16 %v1195, %v1191
  %v1504 = vpack.c.b16 %v1200, %v1196
  %v1505 = vpack.c.b16 %v1201, %v1197
  %v1506 = vpack.c.b16 %v1202, %v1198
  %v1507 = vpack.c.b16 %v1203, %v1199
  %v1508 = vpack.c.b16 %v1208, %v1204
  %v1509 = vpack.c.b16 %v1209, %v1205
  %v1510 = vpack.c.b16 %v1210, %v1206
  %v1511 = vpack.c.b16 %v1211, %v1207
  %v1512 = vpack.c.b16 %v1216, %v1212
  %v1513 = vpack.c.b16 %v1217, %v1213
  %v1514 = vpack.c.b16 %v1218, %v1214
  %v1515 = vpack.c.b16 %v1219, %v1215
  %v1516 = vpack.c.b16 %v1224, %v1220
  %v1517 = vpack.c.b16 %v1225, %v1221
  %v1518 = vpack.c.b16 %v1226, %v1222
  %v1519 = vpack.c.b16 %v1227, %v1223
  %v1520 = vpack.c.b16 %v1232, %v1228
  %v1521 = vpack.c.b16 %v1233, %v1229
  %v1522 = vpack.c.b16 %v1234, %v1230
  %v1523 = vpack.c.b16 %v1235, %v1231
  %v1524 = vpack.c.b16 %v1240, %v1236
  %v1525 = vpack.c.b16 %v1241, %v1237
  %v1526 = vpack.c.b16 %v1242, %v1238
  %v1527 = vpack.c.b16 %v1243, %v1239
  %v1528 = vpack.c.b16 %v1248, %v1244
  %v1529 = vpack.c.b16 %v1249, %v1245
  %v1530 = vpack.c.b16 %v1250, %v1246
  %v1531 = vpack.c.b16 %v1251, %v1247
  %v1532 = vpack.c.b16 %v1256, %v1252
  %v1533 = vpack.c.b16 %v1257, %v1253
  %v1534 = vpack.c.b16 %v1258, %v1254
  %v1535 = vpack.c.b16 %v1259, %v1255
  %v1536 = vpack.c.b16 %v1264, %v1260
  %v1537 = vpack.c.b16 %v1265, %v1261
  %v1538 = vpack.c.b16 %v1266, %v1262
  %v1539 = vpack.c.b16 %v1267, %v1263
  %v1540 = vpack.c.b16 %v1272, %v1268
  %v1541 = vpack.c.b16 %v1273, %v1269
  %v1542 = vpack.c.b16 %v1274, %v1270
  %v1543 = vpack.c.b16 %v1275, %v1271
  %v1544 = vpack.c.b16 %v1280, %v1276
  %v1545 = vpack.c.b16 %v1281, %v1277
  %v1546 = vpack.c.b16 %v1282, %v1278
  %v1547 = vpack.c.b16 %v1283, %v1279
  %v1548 = vpack.c.b16 %v1288, %v1284
  %v1549 = vpack.c.b16 %v1289, %v1285
  %v1550 = vpack.c.b16 %v1290, %v1286
  %v1551 = vpack.c.b16 %v1291, %v1287
  %v1552 = vpack.c.b16 %v1296, %v1292
  %v1553 = vpack.c.b16 %v1297, %v1293
  %v1554 = vpack.c.b16 %v1298, %v1294
  %v1555 = vpack.c.b16 %v1299, %v1295
  %1812 = vmatpush.bf16.msra.mxu0 %v1328
  %1813 = vmatpush.bf16.msra.mxu0 %v1324
  %1814 = vmatpush.bf16.msra.mxu0 %v1320
  %1815 = vmatpush.bf16.msra.mxu0 %v1316
  %1816 = vmatpush.bf16.msra.mxu0 %v1312
  %1817 = vmatpush.bf16.msra.mxu0 %v1308
  %1818 = vmatpush.bf16.msra.mxu0 %v1304
  %1819 = vmatpush.bf16.msra.mxu0 %v1300
  %1820 = vmatmul.bf16.gmra.mxu0 %v258
  %v1821 = vpop.f32.mrf.mxu0
  %v1822 = vadd.f32 %v524, %v1821
  %v1823 = vpop.f32.mrf.mxu0
  %1824 = vdwg.mxu0
  %1825 = vmatpush.bf16.msra.mxu0 %v1360
  %1826 = vmatpush.bf16.msra.mxu0 %v1356
  %1827 = vmatpush.bf16.msra.mxu0 %v1352
  %1828 = vmatpush.bf16.msra.mxu0 %v1348
  %1829 = vmatpush.bf16.msra.mxu0 %v1344
  %1830 = vmatpush.bf16.msra.mxu0 %v1340
  %1831 = vmatpush.bf16.msra.mxu0 %v1336
  %1832 = vmatpush.bf16.msra.mxu0 %v1332
  %1833 = vmatmul.bf16.gmra.mxu0 %v259
  %v1834 = vpop.f32.mrf.mxu0
  %v1835 = vadd.f32 %v1822, %v1834
  %v1836 = vpop.f32.mrf.mxu0
  %1837 = vdwg.mxu0
  %1838 = vmatpush.bf16.msra.mxu0 %v1392
  %1839 = vmatpush.bf16.msra.mxu0 %v1388
  %1840 = vmatpush.bf16.msra.mxu0 %v1384
  %1841 = vmatpush.bf16.msra.mxu0 %v1380
  %1842 = vmatpush.bf16.msra.mxu0 %v1376
  %1843 = vmatpush.bf16.msra.mxu0 %v1372
  %1844 = vmatpush.bf16.msra.mxu0 %v1368
  %1845 = vmatpush.bf16.msra.mxu0 %v1364
  %1846 = vmatmul.bf16.gmra.mxu0 %v260
  %v1847 = vpop.f32.mrf.mxu0
  %v1848 = vadd.f32 %v1835, %v1847
  %v1849 = vpop.f32.mrf.mxu0
  %1850 = vdwg.mxu0
  %1851 = vmatpush.bf16.msra.mxu0 %v1424
  %1852 = vmatpush.bf16.msra.mxu0 %v1420
  %1853 = vmatpush.bf16.msra.mxu0 %v1416
  %1854 = vmatpush.bf16.msra.mxu0 %v1412
  %1855 = vmatpush.bf16.msra.mxu0 %v1408
  %1856 = vmatpush.bf16.msra.mxu0 %v1404
  %1857 = vmatpush.bf16.msra.mxu0 %v1400
  %1858 = vmatpush.bf16.msra.mxu0 %v1396
  %1859 = vmatmul.bf16.gmra.mxu0 %v261
  %v1860 = vpop.f32.mrf.mxu0
  %v1861 = vadd.f32 %v1848, %v1860
  %v1862 = vpop.f32.mrf.mxu0
  %1863 = vdwg.mxu0
  %1864 = vmatpush.bf16.msra.mxu0 %v1456
  %1865 = vmatpush.bf16.msra.mxu0 %v1452
  %1866 = vmatpush.bf16.msra.mxu0 %v1448
  %1867 = vmatpush.bf16.msra.mxu0 %v1444
  %1868 = vmatpush.bf16.msra.mxu0 %v1440
  %1869 = vmatpush.bf16.msra.mxu0 %v1436
  %1870 = vmatpush.bf16.msra.mxu0 %v1432
  %1871 = vmatpush.bf16.msra.mxu0 %v1428
  %1872 = vmatmul.bf16.gmra.mxu0 %v262
  %v1873 = vpop.f32.mrf.mxu0
  %v1874 = vadd.f32 %v1861, %v1873
  %v1875 = vpop.f32.mrf.mxu0
  %1876 = vdwg.mxu0
  %1877 = vmatpush.bf16.msra.mxu0 %v1488
  %1878 = vmatpush.bf16.msra.mxu0 %v1484
  %1879 = vmatpush.bf16.msra.mxu0 %v1480
  %1880 = vmatpush.bf16.msra.mxu0 %v1476
  %1881 = vmatpush.bf16.msra.mxu0 %v1472
  %1882 = vmatpush.bf16.msra.mxu0 %v1468
  %1883 = vmatpush.bf16.msra.mxu0 %v1464
  %1884 = vmatpush.bf16.msra.mxu0 %v1460
  %1885 = vmatmul.bf16.gmra.mxu0 %v263
  %v1886 = vpop.f32.mrf.mxu0
  %v1887 = vadd.f32 %v1874, %v1886
  %v1888 = vpop.f32.mrf.mxu0
  %1889 = vdwg.mxu0
  %1890 = vmatpush.bf16.msra.mxu0 %v1520
  %1891 = vmatpush.bf16.msra.mxu0 %v1516
  %1892 = vmatpush.bf16.msra.mxu0 %v1512
  %1893 = vmatpush.bf16.msra.mxu0 %v1508
  %1894 = vmatpush.bf16.msra.mxu0 %v1504
  %1895 = vmatpush.bf16.msra.mxu0 %v1500
  %1896 = vmatpush.bf16.msra.mxu0 %v1496
  %1897 = vmatpush.bf16.msra.mxu0 %v1492
  %1898 = vmatmul.bf16.gmra.mxu0 %v264
  %v1899 = vpop.f32.mrf.mxu0
  %v1900 = vadd.f32 %v1887, %v1899
  %v1901 = vpop.f32.mrf.mxu0
  %1902 = vdwg.mxu0
  %1903 = vmatpush.bf16.msra.mxu0 %v1552
  %1904 = vmatpush.bf16.msra.mxu0 %v1548
  %1905 = vmatpush.bf16.msra.mxu0 %v1544
  %1906 = vmatpush.bf16.msra.mxu0 %v1540
  %1907 = vmatpush.bf16.msra.mxu0 %v1536
  %1908 = vmatpush.bf16.msra.mxu0 %v1532
  %1909 = vmatpush.bf16.msra.mxu0 %v1528
  %1910 = vmatpush.bf16.msra.mxu0 %v1524
  %1911 = vmatmul.bf16.gmra.mxu0 %v265
  %v1912 = vpop.f32.mrf.mxu0
  %v1913 = vadd.f32 %v1900, %v1912
  %v1914 = vpop.f32.mrf.mxu0
  %1915 = vdwg.mxu0
  %1916 = vmatpush.bf16.msra.mxu0 %v1329
  %1917 = vmatpush.bf16.msra.mxu0 %v1325
  %1918 = vmatpush.bf16.msra.mxu0 %v1321
  %1919 = vmatpush.bf16.msra.mxu0 %v1317
  %1920 = vmatpush.bf16.msra.mxu0 %v1313
  %1921 = vmatpush.bf16.msra.mxu0 %v1309
  %1922 = vmatpush.bf16.msra.mxu0 %v1305
  %1923 = vmatpush.bf16.msra.mxu0 %v1301
  %1924 = vmatmul.bf16.gmra.mxu0 %v258
  %v1925 = vpop.f32.mrf.mxu0
  %v1926 = vadd.f32 %v525, %v1925
  %v1927 = vpop.f32.mrf.mxu0
  %1928 = vdwg.mxu0
  %1929 = vmatpush.bf16.msra.mxu0 %v1361
  %1930 = vmatpush.bf16.msra.mxu0 %v1357
  %1931 = vmatpush.bf16.msra.mxu0 %v1353
  %1932 = vmatpush.bf16.msra.mxu0 %v1349
  %1933 = vmatpush.bf16.msra.mxu0 %v1345
  %1934 = vmatpush.bf16.msra.mxu0 %v1341
  %1935 = vmatpush.bf16.msra.mxu0 %v1337
  %1936 = vmatpush.bf16.msra.mxu0 %v1333
  %1937 = vmatmul.bf16.gmra.mxu0 %v259
  %v1938 = vpop.f32.mrf.mxu0
  %v1939 = vadd.f32 %v1926, %v1938
  %v1940 = vpop.f32.mrf.mxu0
  %1941 = vdwg.mxu0
  %1942 = vmatpush.bf16.msra.mxu0 %v1393
  %1943 = vmatpush.bf16.msra.mxu0 %v1389
  %1944 = vmatpush.bf16.msra.mxu0 %v1385
  %1945 = vmatpush.bf16.msra.mxu0 %v1381
  %1946 = vmatpush.bf16.msra.mxu0 %v1377
  %1947 = vmatpush.bf16.msra.mxu0 %v1373
  %1948 = vmatpush.bf16.msra.mxu0 %v1369
  %1949 = vmatpush.bf16.msra.mxu0 %v1365
  %1950 = vmatmul.bf16.gmra.mxu0 %v260
  %v1951 = vpop.f32.mrf.mxu0
  %v1952 = vadd.f32 %v1939, %v1951
  %v1953 = vpop.f32.mrf.mxu0
  %1954 = vdwg.mxu0
  %1955 = vmatpush.bf16.msra.mxu0 %v1425
  %1956 = vmatpush.bf16.msra.mxu0 %v1421
  %1957 = vmatpush.bf16.msra.mxu0 %v1417
  %1958 = vmatpush.bf16.msra.mxu0 %v1413
  %1959 = vmatpush.bf16.msra.mxu0 %v1409
  %1960 = vmatpush.bf16.msra.mxu0 %v1405
  %1961 = vmatpush.bf16.msra.mxu0 %v1401
  %1962 = vmatpush.bf16.msra.mxu0 %v1397
  %1963 = vmatmul.bf16.gmra.mxu0 %v261
  %v1964 = vpop.f32.mrf.mxu0
  %v1965 = vadd.f32 %v1952, %v1964
  %v1966 = vpop.f32.mrf.mxu0
  %1967 = vdwg.mxu0
  %1968 = vmatpush.bf16.msra.mxu0 %v1457
  %1969 = vmatpush.bf16.msra.mxu0 %v1453
  %1970 = vmatpush.bf16.msra.mxu0 %v1449
  %1971 = vmatpush.bf16.msra.mxu0 %v1445
  %1972 = vmatpush.bf16.msra.mxu0 %v1441
  %1973 = vmatpush.bf16.msra.mxu0 %v1437
  %1974 = vmatpush.bf16.msra.mxu0 %v1433
  %1975 = vmatpush.bf16.msra.mxu0 %v1429
  %1976 = vmatmul.bf16.gmra.mxu0 %v262
  %v1977 = vpop.f32.mrf.mxu0
  %v1978 = vadd.f32 %v1965, %v1977
  %v1979 = vpop.f32.mrf.mxu0
  %1980 = vdwg.mxu0
  %1981 = vmatpush.bf16.msra.mxu0 %v1489
  %1982 = vmatpush.bf16.msra.mxu0 %v1485
  %1983 = vmatpush.bf16.msra.mxu0 %v1481
  %1984 = vmatpush.bf16.msra.mxu0 %v1477
  %1985 = vmatpush.bf16.msra.mxu0 %v1473
  %1986 = vmatpush.bf16.msra.mxu0 %v1469
  %1987 = vmatpush.bf16.msra.mxu0 %v1465
  %1988 = vmatpush.bf16.msra.mxu0 %v1461
  %1989 = vmatmul.bf16.gmra.mxu0 %v263
  %v1990 = vpop.f32.mrf.mxu0
  %v1991 = vadd.f32 %v1978, %v1990
  %v1992 = vpop.f32.mrf.mxu0
  %1993 = vdwg.mxu0
  %1994 = vmatpush.bf16.msra.mxu0 %v1521
  %1995 = vmatpush.bf16.msra.mxu0 %v1517
  %1996 = vmatpush.bf16.msra.mxu0 %v1513
  %1997 = vmatpush.bf16.msra.mxu0 %v1509
  %1998 = vmatpush.bf16.msra.mxu0 %v1505
  %1999 = vmatpush.bf16.msra.mxu0 %v1501
  %2000 = vmatpush.bf16.msra.mxu0 %v1497
  %2001 = vmatpush.bf16.msra.mxu0 %v1493
  %2002 = vmatmul.bf16.gmra.mxu0 %v264
  %v2003 = vpop.f32.mrf.mxu0
  %v2004 = vadd.f32 %v1991, %v2003
  %v2005 = vpop.f32.mrf.mxu0
  %2006 = vdwg.mxu0
  %2007 = vmatpush.bf16.msra.mxu0 %v1553
  %2008 = vmatpush.bf16.msra.mxu0 %v1549
  %2009 = vmatpush.bf16.msra.mxu0 %v1545
  %2010 = vmatpush.bf16.msra.mxu0 %v1541
  %2011 = vmatpush.bf16.msra.mxu0 %v1537
  %2012 = vmatpush.bf16.msra.mxu0 %v1533
  %2013 = vmatpush.bf16.msra.mxu0 %v1529
  %2014 = vmatpush.bf16.msra.mxu0 %v1525
  %2015 = vmatmul.bf16.gmra.mxu0 %v265
  %v2016 = vpop.f32.mrf.mxu0
  %v2017 = vadd.f32 %v2004, %v2016
  %v2018 = vpop.f32.mrf.mxu0
  %2019 = vdwg.mxu0
  %2020 = vmatpush.bf16.msra.mxu0 %v1330
  %2021 = vmatpush.bf16.msra.mxu0 %v1326
  %2022 = vmatpush.bf16.msra.mxu0 %v1322
  %2023 = vmatpush.bf16.msra.mxu0 %v1318
  %2024 = vmatpush.bf16.msra.mxu0 %v1314
  %2025 = vmatpush.bf16.msra.mxu0 %v1310
  %2026 = vmatpush.bf16.msra.mxu0 %v1306
  %2027 = vmatpush.bf16.msra.mxu0 %v1302
  %2028 = vmatmul.bf16.gmra.mxu0 %v258
  %v2029 = vpop.f32.mrf.mxu0
  %v2030 = vadd.f32 %v526, %v2029
  %v2031 = vpop.f32.mrf.mxu0
  %2032 = vdwg.mxu0
  %2033 = vmatpush.bf16.msra.mxu0 %v1362
  %2034 = vmatpush.bf16.msra.mxu0 %v1358
  %2035 = vmatpush.bf16.msra.mxu0 %v1354
  %2036 = vmatpush.bf16.msra.mxu0 %v1350
  %2037 = vmatpush.bf16.msra.mxu0 %v1346
  %2038 = vmatpush.bf16.msra.mxu0 %v1342
  %2039 = vmatpush.bf16.msra.mxu0 %v1338
  %2040 = vmatpush.bf16.msra.mxu0 %v1334
  %2041 = vmatmul.bf16.gmra.mxu0 %v259
  %v2042 = vpop.f32.mrf.mxu0
  %v2043 = vadd.f32 %v2030, %v2042
  %v2044 = vpop.f32.mrf.mxu0
  %2045 = vdwg.mxu0
  %2046 = vmatpush.bf16.msra.mxu0 %v1394
  %2047 = vmatpush.bf16.msra.mxu0 %v1390
  %2048 = vmatpush.bf16.msra.mxu0 %v1386
  %2049 = vmatpush.bf16.msra.mxu0 %v1382
  %2050 = vmatpush.bf16.msra.mxu0 %v1378
  %2051 = vmatpush.bf16.msra.mxu0 %v1374
  %2052 = vmatpush.bf16.msra.mxu0 %v1370
  %2053 = vmatpush.bf16.msra.mxu0 %v1366
  %2054 = vmatmul.bf16.gmra.mxu0 %v260
  %v2055 = vpop.f32.mrf.mxu0
  %v2056 = vadd.f32 %v2043, %v2055
  %v2057 = vpop.f32.mrf.mxu0
  %2058 = vdwg.mxu0
  %2059 = vmatpush.bf16.msra.mxu0 %v1426
  %2060 = vmatpush.bf16.msra.mxu0 %v1422
  %2061 = vmatpush.bf16.msra.mxu0 %v1418
  %2062 = vmatpush.bf16.msra.mxu0 %v1414
  %2063 = vmatpush.bf16.msra.mxu0 %v1410
  %2064 = vmatpush.bf16.msra.mxu0 %v1406
  %2065 = vmatpush.bf16.msra.mxu0 %v1402
  %2066 = vmatpush.bf16.msra.mxu0 %v1398
  %2067 = vmatmul.bf16.gmra.mxu0 %v261
  %v2068 = vpop.f32.mrf.mxu0
  %v2069 = vadd.f32 %v2056, %v2068
  %v2070 = vpop.f32.mrf.mxu0
  %2071 = vdwg.mxu0
  %2072 = vmatpush.bf16.msra.mxu0 %v1458
  %2073 = vmatpush.bf16.msra.mxu0 %v1454
  %2074 = vmatpush.bf16.msra.mxu0 %v1450
  %2075 = vmatpush.bf16.msra.mxu0 %v1446
  %2076 = vmatpush.bf16.msra.mxu0 %v1442
  %2077 = vmatpush.bf16.msra.mxu0 %v1438
  %2078 = vmatpush.bf16.msra.mxu0 %v1434
  %2079 = vmatpush.bf16.msra.mxu0 %v1430
  %2080 = vmatmul.bf16.gmra.mxu0 %v262
  %v2081 = vpop.f32.mrf.mxu0
  %v2082 = vadd.f32 %v2069, %v2081
  %v2083 = vpop.f32.mrf.mxu0
  %2084 = vdwg.mxu0
  %2085 = vmatpush.bf16.msra.mxu0 %v1490
  %2086 = vmatpush.bf16.msra.mxu0 %v1486
  %2087 = vmatpush.bf16.msra.mxu0 %v1482
  %2088 = vmatpush.bf16.msra.mxu0 %v1478
  %2089 = vmatpush.bf16.msra.mxu0 %v1474
  %2090 = vmatpush.bf16.msra.mxu0 %v1470
  %2091 = vmatpush.bf16.msra.mxu0 %v1466
  %2092 = vmatpush.bf16.msra.mxu0 %v1462
  %2093 = vmatmul.bf16.gmra.mxu0 %v263
  %v2094 = vpop.f32.mrf.mxu0
  %v2095 = vadd.f32 %v2082, %v2094
  %v2096 = vpop.f32.mrf.mxu0
  %2097 = vdwg.mxu0
  %2098 = vmatpush.bf16.msra.mxu0 %v1522
  %2099 = vmatpush.bf16.msra.mxu0 %v1518
  %2100 = vmatpush.bf16.msra.mxu0 %v1514
  %2101 = vmatpush.bf16.msra.mxu0 %v1510
  %2102 = vmatpush.bf16.msra.mxu0 %v1506
  %2103 = vmatpush.bf16.msra.mxu0 %v1502
  %2104 = vmatpush.bf16.msra.mxu0 %v1498
  %2105 = vmatpush.bf16.msra.mxu0 %v1494
  %2106 = vmatmul.bf16.gmra.mxu0 %v264
  %v2107 = vpop.f32.mrf.mxu0
  %v2108 = vadd.f32 %v2095, %v2107
  %v2109 = vpop.f32.mrf.mxu0
  %2110 = vdwg.mxu0
  %2111 = vmatpush.bf16.msra.mxu0 %v1554
  %2112 = vmatpush.bf16.msra.mxu0 %v1550
  %2113 = vmatpush.bf16.msra.mxu0 %v1546
  %2114 = vmatpush.bf16.msra.mxu0 %v1542
  %2115 = vmatpush.bf16.msra.mxu0 %v1538
  %2116 = vmatpush.bf16.msra.mxu0 %v1534
  %2117 = vmatpush.bf16.msra.mxu0 %v1530
  %2118 = vmatpush.bf16.msra.mxu0 %v1526
  %2119 = vmatmul.bf16.gmra.mxu0 %v265
  %v2120 = vpop.f32.mrf.mxu0
  %v2121 = vadd.f32 %v2108, %v2120
  %v2122 = vpop.f32.mrf.mxu0
  %2123 = vdwg.mxu0
  %2124 = vmatpush.bf16.msra.mxu0 %v1331
  %2125 = vmatpush.bf16.msra.mxu0 %v1327
  %2126 = vmatpush.bf16.msra.mxu0 %v1323
  %2127 = vmatpush.bf16.msra.mxu0 %v1319
  %2128 = vmatpush.bf16.msra.mxu0 %v1315
  %2129 = vmatpush.bf16.msra.mxu0 %v1311
  %2130 = vmatpush.bf16.msra.mxu0 %v1307
  %2131 = vmatpush.bf16.msra.mxu0 %v1303
  %2132 = vmatmul.bf16.gmra.mxu0 %v258
  %v2133 = vpop.f32.mrf.mxu0
  %v2134 = vadd.f32 %v527, %v2133
  %v2135 = vpop.f32.mrf.mxu0
  %2136 = vdwg.mxu0
  %2137 = vmatpush.bf16.msra.mxu0 %v1363
  %2138 = vmatpush.bf16.msra.mxu0 %v1359
  %2139 = vmatpush.bf16.msra.mxu0 %v1355
  %2140 = vmatpush.bf16.msra.mxu0 %v1351
  %2141 = vmatpush.bf16.msra.mxu0 %v1347
  %2142 = vmatpush.bf16.msra.mxu0 %v1343
  %2143 = vmatpush.bf16.msra.mxu0 %v1339
  %2144 = vmatpush.bf16.msra.mxu0 %v1335
  %2145 = vmatmul.bf16.gmra.mxu0 %v259
  %v2146 = vpop.f32.mrf.mxu0
  %v2147 = vadd.f32 %v2134, %v2146
  %v2148 = vpop.f32.mrf.mxu0
  %2149 = vdwg.mxu0
  %2150 = vmatpush.bf16.msra.mxu0 %v1395
  %2151 = vmatpush.bf16.msra.mxu0 %v1391
  %2152 = vmatpush.bf16.msra.mxu0 %v1387
  %2153 = vmatpush.bf16.msra.mxu0 %v1383
  %2154 = vmatpush.bf16.msra.mxu0 %v1379
  %2155 = vmatpush.bf16.msra.mxu0 %v1375
  %2156 = vmatpush.bf16.msra.mxu0 %v1371
  %2157 = vmatpush.bf16.msra.mxu0 %v1367
  %2158 = vmatmul.bf16.gmra.mxu0 %v260
  %v2159 = vpop.f32.mrf.mxu0
  %v2160 = vadd.f32 %v2147, %v2159
  %v2161 = vpop.f32.mrf.mxu0
  %2162 = vdwg.mxu0
  %2163 = vmatpush.bf16.msra.mxu0 %v1427
  %2164 = vmatpush.bf16.msra.mxu0 %v1423
  %2165 = vmatpush.bf16.msra.mxu0 %v1419
  %2166 = vmatpush.bf16.msra.mxu0 %v1415
  %2167 = vmatpush.bf16.msra.mxu0 %v1411
  %2168 = vmatpush.bf16.msra.mxu0 %v1407
  %2169 = vmatpush.bf16.msra.mxu0 %v1403
  %2170 = vmatpush.bf16.msra.mxu0 %v1399
  %2171 = vmatmul.bf16.gmra.mxu0 %v261
  %v2172 = vpop.f32.mrf.mxu0
  %v2173 = vadd.f32 %v2160, %v2172
  %v2174 = vpop.f32.mrf.mxu0
  %2175 = vdwg.mxu0
  %2176 = vmatpush.bf16.msra.mxu0 %v1459
  %2177 = vmatpush.bf16.msra.mxu0 %v1455
  %2178 = vmatpush.bf16.msra.mxu0 %v1451
  %2179 = vmatpush.bf16.msra.mxu0 %v1447
  %2180 = vmatpush.bf16.msra.mxu0 %v1443
  %2181 = vmatpush.bf16.msra.mxu0 %v1439
  %2182 = vmatpush.bf16.msra.mxu0 %v1435
  %2183 = vmatpush.bf16.msra.mxu0 %v1431
  %2184 = vmatmul.bf16.gmra.mxu0 %v262
  %v2185 = vpop.f32.mrf.mxu0
  %v2186 = vadd.f32 %v2173, %v2185
  %v2187 = vpop.f32.mrf.mxu0
  %2188 = vdwg.mxu0
  %2189 = vmatpush.bf16.msra.mxu0 %v1491
  %2190 = vmatpush.bf16.msra.mxu0 %v1487
  %2191 = vmatpush.bf16.msra.mxu0 %v1483
  %2192 = vmatpush.bf16.msra.mxu0 %v1479
  %2193 = vmatpush.bf16.msra.mxu0 %v1475
  %2194 = vmatpush.bf16.msra.mxu0 %v1471
  %2195 = vmatpush.bf16.msra.mxu0 %v1467
  %2196 = vmatpush.bf16.msra.mxu0 %v1463
  %2197 = vmatmul.bf16.gmra.mxu0 %v263
  %v2198 = vpop.f32.mrf.mxu0
  %v2199 = vadd.f32 %v2186, %v2198
  %v2200 = vpop.f32.mrf.mxu0
  %2201 = vdwg.mxu0
  %2202 = vmatpush.bf16.msra.mxu0 %v1523
  %2203 = vmatpush.bf16.msra.mxu0 %v1519
  %2204 = vmatpush.bf16.msra.mxu0 %v1515
  %2205 = vmatpush.bf16.msra.mxu0 %v1511
  %2206 = vmatpush.bf16.msra.mxu0 %v1507
  %2207 = vmatpush.bf16.msra.mxu0 %v1503
  %2208 = vmatpush.bf16.msra.mxu0 %v1499
  %2209 = vmatpush.bf16.msra.mxu0 %v1495
  %2210 = vmatmul.bf16.gmra.mxu0 %v264
  %v2211 = vpop.f32.mrf.mxu0
  %v2212 = vadd.f32 %v2199, %v2211
  %v2213 = vpop.f32.mrf.mxu0
  %2214 = vdwg.mxu0
  %2215 = vmatpush.bf16.msra.mxu0 %v1555
  %2216 = vmatpush.bf16.msra.mxu0 %v1551
  %2217 = vmatpush.bf16.msra.mxu0 %v1547
  %2218 = vmatpush.bf16.msra.mxu0 %v1543
  %2219 = vmatpush.bf16.msra.mxu0 %v1539
  %2220 = vmatpush.bf16.msra.mxu0 %v1535
  %2221 = vmatpush.bf16.msra.mxu0 %v1531
  %2222 = vmatpush.bf16.msra.mxu0 %v1527
  %2223 = vmatmul.bf16.gmra.mxu0 %v265
  %v2224 = vpop.f32.mrf.mxu0
  %v2225 = vadd.f32 %v2212, %v2224
  %v2226 = vpop.f32.mrf.mxu0
  %2227 = vdwg.mxu0
  %v2228 = vmax.f32 %v1913, 0.0
  %v2229 = vmax.f32 %v2017, 0.0
  %v2230 = vmax.f32 %v2121, 0.0
  %v2231 = vmax.f32 %v2225, 0.0
  %v2232 = vpack.c.bf16 %v2228, %v2228
  %v2233 = vpack.c.bf16 %v2229, %v2229
  %v2234 = vpack.c.bf16 %v2230, %v2230
  %v2235 = vpack.c.bf16 %v2231, %v2231
  %v2236 = vld [vmem:[%s5] sm:$0xf]
  %v2237 = vld [vmem:[%s5 + $0x4] sm:$0xf]
  %v2238 = vld [vmem:[%s5 + $0x8] sm:$0xf]
  %v2239 = vld [vmem:[%s5 + $0xc] sm:$0xf]
  %v2240 = vld [vmem:[%s5 + $0x10] sm:$0xf]
  %v2241 = vld [vmem:[%s5 + $0x14] sm:$0xf]
  %v2242 = vld [vmem:[%s5 + $0x18] sm:$0xf]
  %v2243 = vld [vmem:[%s5 + $0x1c] sm:$0xf]
  %v2244 = vld [vmem:[%s5 + $0x20] sm:$0xf]
  %v2245 = vld [vmem:[%s5 + $0x24] sm:$0xf]
  %v2246 = vld [vmem:[%s5 + $0x28] sm:$0xf]
  %v2247 = vld [vmem:[%s5 + $0x2c] sm:$0xf]
  %v2248 = vld [vmem:[%s5 + $0x30] sm:$0xf]
  %v2249 = vld [vmem:[%s5 + $0x34] sm:$0xf]
  %v2250 = vld [vmem:[%s5 + $0x38] sm:$0xf]
  %v2251 = vld [vmem:[%s5 + $0x3c] sm:$0xf]
  %v2252 = vld [vmem:[%s5 + $0x40] sm:$0xf]
  %v2253 = vld [vmem:[%s5 + $0x44] sm:$0xf]
  %v2254 = vld [vmem:[%s5 + $0x48] sm:$0xf]
  %v2255 = vld [vmem:[%s5 + $0x4c] sm:$0xf]
  %v2256 = vld [vmem:[%s5 + $0x50] sm:$0xf]
  %v2257 = vld [vmem:[%s5 + $0x54] sm:$0xf]
  %v2258 = vld [vmem:[%s5 + $0x58] sm:$0xf]
  %v2259 = vld [vmem:[%s5 + $0x5c] sm:$0xf]
  %v2260 = vld [vmem:[%s5 + $0x60] sm:$0xf]
  %v2261 = vld [vmem:[%s5 + $0x64] sm:$0xf]
  %v2262 = vld [vmem:[%s5 + $0x68] sm:$0xf]
  %v2263 = vld [vmem:[%s5 + $0x6c] sm:$0xf]
  %v2264 = vld [vmem:[%s5 + $0x70] sm:$0xf]
  %v2265 = vld [vmem:[%s5 + $0x74] sm:$0xf]
  %v2266 = vld [vmem:[%s5 + $0x78] sm:$0xf]
  %v2267 = vld [vmem:[%s5 + $0x7c] sm:$0xf]
  %v2268 = vld [vmem:[%s5 + $0x80] sm:$0xf]
  %v2269 = vld [vmem:[%s5 + $0x84] sm:$0xf]
  %v2270 = vld [vmem:[%s5 + $0x88] sm:$0xf]
  %v2271 = vld [vmem:[%s5 + $0x8c] sm:$0xf]
  %v2272 = vld [vmem:[%s5 + $0x90] sm:$0xf]
  %v2273 = vld [vmem:[%s5 + $0x94] sm:$0xf]
  %v2274 = vld [vmem:[%s5 + $0x98] sm:$0xf]
  %v2275 = vld [vmem:[%s5 + $0x9c] sm:$0xf]
  %v2276 = vld [vmem:[%s5 + $0xa0] sm:$0xf]
  %v2277 = vld [vmem:[%s5 + $0xa4] sm:$0xf]
  %v2278 = vld [vmem:[%s5 + $0xa8] sm:$0xf]
  %v2279 = vld [vmem:[%s5 + $0xac] sm:$0xf]
  %v2280 = vld [vmem:[%s5 + $0xb0] sm:$0xf]
  %v2281 = vld [vmem:[%s5 + $0xb4] sm:$0xf]
  %v2282 = vld [vmem:[%s5 + $0xb8] sm:$0xf]
  %v2283 = vld [vmem:[%s5 + $0xbc] sm:$0xf]
  %v2284 = vld [vmem:[%s5 + $0xc0] sm:$0xf]
  %v2285 = vld [vmem:[%s5 + $0xc4] sm:$0xf]
  %v2286 = vld [vmem:[%s5 + $0xc8] sm:$0xf]
  %v2287 = vld [vmem:[%s5 + $0xcc] sm:$0xf]
  %v2288 = vld [vmem:[%s5 + $0xd0] sm:$0xf]
  %v2289 = vld [vmem:[%s5 + $0xd4] sm:$0xf]
  %v2290 = vld [vmem:[%s5 + $0xd8] sm:$0xf]
  %v2291 = vld [vmem:[%s5 + $0xdc] sm:$0xf]
  %v2292 = vld [vmem:[%s5 + $0xe0] sm:$0xf]
  %v2293 = vld [vmem:[%s5 + $0xe4] sm:$0xf]
  %v2294 = vld [vmem:[%s5 + $0xe8] sm:$0xf]
  %v2295 = vld [vmem:[%s5 + $0xec] sm:$0xf]
  %v2296 = vld [vmem:[%s5 + $0xf0] sm:$0xf]
  %v2297 = vld [vmem:[%s5 + $0xf4] sm:$0xf]
  %v2298 = vld [vmem:[%s5 + $0xf8] sm:$0xf]
  %v2299 = vld [vmem:[%s5 + $0xfc] sm:$0xf]
  %v2300 = vld [vmem:[%s6] sm:$0x1]
  %v2302 = vperm.slane %v2300, 0
  %v2368 = vunpack.c.l.b16 %v2236
  %v2369 = vunpack.c.l.b16 %v2237
  %v2370 = vunpack.c.l.b16 %v2238
  %v2371 = vunpack.c.l.b16 %v2239
  %v2372 = vunpack.c.l.b16 %v2240
  %v2373 = vunpack.c.l.b16 %v2241
  %v2374 = vunpack.c.l.b16 %v2242
  %v2375 = vunpack.c.l.b16 %v2243
  %v2376 = vunpack.c.l.b16 %v2244
  %v2377 = vunpack.c.l.b16 %v2245
  %v2378 = vunpack.c.l.b16 %v2246
  %v2379 = vunpack.c.l.b16 %v2247
  %v2380 = vunpack.c.l.b16 %v2248
  %v2381 = vunpack.c.l.b16 %v2249
  %v2382 = vunpack.c.l.b16 %v2250
  %v2383 = vunpack.c.l.b16 %v2251
  %v2384 = vunpack.c.l.b16 %v2252
  %v2385 = vunpack.c.l.b16 %v2253
  %v2386 = vunpack.c.l.b16 %v2254
  %v2387 = vunpack.c.l.b16 %v2255
  %v2388 = vunpack.c.l.b16 %v2256
  %v2389 = vunpack.c.l.b16 %v2257
  %v2390 = vunpack.c.l.b16 %v2258
  %v2391 = vunpack.c.l.b16 %v2259
  %v2392 = vunpack.c.l.b16 %v2260
  %v2393 = vunpack.c.l.b16 %v2261
  %v2394 = vunpack.c.l.b16 %v2262
  %v2395 = vunpack.c.l.b16 %v2263
  %v2396 = vunpack.c.l.b16 %v2264
  %v2397 = vunpack.c.l.b16 %v2265
  %v2398 = vunpack.c.l.b16 %v2266
  %v2399 = vunpack.c.l.b16 %v2267
  %v2400 = vunpack.c.l.b16 %v2268
  %v2401 = vunpack.c.l.b16 %v2269
  %v2402 = vunpack.c.l.b16 %v2270
  %v2403 = vunpack.c.l.b16 %v2271
  %v2404 = vunpack.c.l.b16 %v2272
  %v2405 = vunpack.c.l.b16 %v2273
  %v2406 = vunpack.c.l.b16 %v2274
  %v2407 = vunpack.c.l.b16 %v2275
  %v2408 = vunpack.c.l.b16 %v2276
  %v2409 = vunpack.c.l.b16 %v2277
  %v2410 = vunpack.c.l.b16 %v2278
  %v2411 = vunpack.c.l.b16 %v2279
  %v2412 = vunpack.c.l.b16 %v2280
  %v2413 = vunpack.c.l.b16 %v2281
  %v2414 = vunpack.c.l.b16 %v2282
  %v2415 = vunpack.c.l.b16 %v2283
  %v2416 = vunpack.c.l.b16 %v2284
  %v2417 = vunpack.c.l.b16 %v2285
  %v2418 = vunpack.c.l.b16 %v2286
  %v2419 = vunpack.c.l.b16 %v2287
  %v2420 = vunpack.c.l.b16 %v2288
  %v2421 = vunpack.c.l.b16 %v2289
  %v2422 = vunpack.c.l.b16 %v2290
  %v2423 = vunpack.c.l.b16 %v2291
  %v2424 = vunpack.c.l.b16 %v2292
  %v2425 = vunpack.c.l.b16 %v2293
  %v2426 = vunpack.c.l.b16 %v2294
  %v2427 = vunpack.c.l.b16 %v2295
  %v2428 = vunpack.c.l.b16 %v2296
  %v2429 = vunpack.c.l.b16 %v2297
  %v2430 = vunpack.c.l.b16 %v2298
  %v2431 = vunpack.c.l.b16 %v2299
  %v2432 = vpack.c.b16 %v2369, %v2368
  %v2433 = vpack.c.b16 %v2371, %v2370
  %v2434 = vpack.c.b16 %v2373, %v2372
  %v2435 = vpack.c.b16 %v2375, %v2374
  %v2436 = vpack.c.b16 %v2377, %v2376
  %v2437 = vpack.c.b16 %v2379, %v2378
  %v2438 = vpack.c.b16 %v2381, %v2380
  %v2439 = vpack.c.b16 %v2383, %v2382
  %v2440 = vpack.c.b16 %v2385, %v2384
  %v2441 = vpack.c.b16 %v2387, %v2386
  %v2442 = vpack.c.b16 %v2389, %v2388
  %v2443 = vpack.c.b16 %v2391, %v2390
  %v2444 = vpack.c.b16 %v2393, %v2392
  %v2445 = vpack.c.b16 %v2395, %v2394
  %v2446 = vpack.c.b16 %v2397, %v2396
  %v2447 = vpack.c.b16 %v2399, %v2398
  %v2448 = vpack.c.b16 %v2401, %v2400
  %v2449 = vpack.c.b16 %v2403, %v2402
  %v2450 = vpack.c.b16 %v2405, %v2404
  %v2451 = vpack.c.b16 %v2407, %v2406
  %v2452 = vpack.c.b16 %v2409, %v2408
  %v2453 = vpack.c.b16 %v2411, %v2410
  %v2454 = vpack.c.b16 %v2413, %v2412
  %v2455 = vpack.c.b16 %v2415, %v2414
  %v2456 = vpack.c.b16 %v2417, %v2416
  %v2457 = vpack.c.b16 %v2419, %v2418
  %v2458 = vpack.c.b16 %v2421, %v2420
  %v2459 = vpack.c.b16 %v2423, %v2422
  %v2460 = vpack.c.b16 %v2425, %v2424
  %v2461 = vpack.c.b16 %v2427, %v2426
  %v2462 = vpack.c.b16 %v2429, %v2428
  %v2463 = vpack.c.b16 %v2431, %v2430
  %2496 = vmatpush.bf16.msra.mxu0 %v2439
  %2497 = vmatpush.bf16.msra.mxu0 %v2438
  %2498 = vmatpush.bf16.msra.mxu0 %v2437
  %2499 = vmatpush.bf16.msra.mxu0 %v2436
  %2500 = vmatpush.bf16.msra.mxu0 %v2435
  %2501 = vmatpush.bf16.msra.mxu0 %v2434
  %2502 = vmatpush.bf16.msra.mxu0 %v2433
  %2503 = vmatpush.bf16.msra.mxu0 %v2432
  %2504 = vmatmul.bf16.gmra.mxu0 %v2232
  %v2505 = vpop.f32.mrf.mxu0
  %v2506 = vadd.f32 %v2302, %v2505
  %v2507 = vpop.f32.mrf.mxu0
  %2508 = vdwg.mxu0
  %2509 = vmatpush.bf16.msra.mxu0 %v2447
  %2510 = vmatpush.bf16.msra.mxu0 %v2446
  %2511 = vmatpush.bf16.msra.mxu0 %v2445
  %2512 = vmatpush.bf16.msra.mxu0 %v2444
  %2513 = vmatpush.bf16.msra.mxu0 %v2443
  %2514 = vmatpush.bf16.msra.mxu0 %v2442
  %2515 = vmatpush.bf16.msra.mxu0 %v2441
  %2516 = vmatpush.bf16.msra.mxu0 %v2440
  %2517 = vmatmul.bf16.gmra.mxu0 %v2233
  %v2518 = vpop.f32.mrf.mxu0
  %v2519 = vadd.f32 %v2506, %v2518
  %v2520 = vpop.f32.mrf.mxu0
  %2521 = vdwg.mxu0
  %2522 = vmatpush.bf16.msra.mxu0 %v2455
  %2523 = vmatpush.bf16.msra.mxu0 %v2454
  %2524 = vmatpush.bf16.msra.mxu0 %v2453
  %2525 = vmatpush.bf16.msra.mxu0 %v2452
  %2526 = vmatpush.bf16.msra.mxu0 %v2451
  %2527 = vmatpush.bf16.msra.mxu0 %v2450
  %2528 = vmatpush.bf16.msra.mxu0 %v2449
  %2529 = vmatpush.bf16.msra.mxu0 %v2448
  %2530 = vmatmul.bf16.gmra.mxu0 %v2234
  %v2531 = vpop.f32.mrf.mxu0
  %v2532 = vadd.f32 %v2519, %v2531
  %v2533 = vpop.f32.mrf.mxu0
  %2534 = vdwg.mxu0
  %2535 = vmatpush.bf16.msra.mxu0 %v2463
  %2536 = vmatpush.bf16.msra.mxu0 %v2462
  %2537 = vmatpush.bf16.msra.mxu0 %v2461
  %2538 = vmatpush.bf16.msra.mxu0 %v2460
  %2539 = vmatpush.bf16.msra.mxu0 %v2459
  %2540 = vmatpush.bf16.msra.mxu0 %v2458
  %2541 = vmatpush.bf16.msra.mxu0 %v2457
  %2542 = vmatpush.bf16.msra.mxu0 %v2456
  %2543 = vmatmul.bf16.gmra.mxu0 %v2235
  %v2544 = vpop.f32.mrf.mxu0
  %v2545 = vadd.f32 %v2532, %v2544
  %v2546 = vpop.f32.mrf.mxu0
  %2547 = vdwg.mxu0
  %v2548 = vxor.u32 %v2545, 2147483648
  %v2549 = vmul.f32 %v2548, 1.442695
  %v2550 = vpow.pop %v2549
  %v2551 = vadd.f32 %v2550, 1.0
  %v2552 = vrcp.pop %v2551
  %v2553 = vmul.f32 %v2551, %v2552
  %v2554 = vsub.f32 1.0, %v2553
  %v2555 = vmul.f32 %v2552, %v2554
  %v2556 = vadd.f32 %v2552, %v2555
  %vm2557 = vweird.f32 %v2551
  %vm2558 = vweird.f32 %v2552
  %vm2559 = vmor %vm2557, %vm2558
  %v2560 = vsel %vm2559, %v2552, %v2556
  %v2561 = vand.u32 2147483647, %v2551
  %vm2562 = vcmp.eq.f32.partialorder %v2561, 8.507059e+37
  %v2563 = vand.u32 %v2551, 2147483648
  %v2564 = vor.u32 1.1754944e-38, %v2563
  %v2565 = vsel %vm2562, %v2564, %v2560
  %v2566 = vmul.f32 1.0, %v2565
  %2567 = vst [vmem:[%s7] sm:$0xff] %v2566
  // Predicated region
  $region30: #{_forward.1} parent=0 // pred_check
    _
  $region31: #{_forward.1} parent=0 // pred_check_branch
    %2569 = sbr.rel (0) target = $region33
  $region32: #{_forward.1} parent=0 // pred_region
    _
  $region33: #{_forward.1} parent=0 // pred_fallthru
    _
  // Predicated region
  $region34: #{_forward.1} parent=0 // pred_check
    _
  $region35: #{_forward.1} parent=0 // pred_check_branch
    %2571 = sbr.rel (0) target = $region37
  $region36: #{_forward.1} parent=0 // pred_region
    _
  $region37: #{_forward.1} parent=0 // pred_fallthru
    _

// kernel: _forward.1
$region0: #{_forward.1}
  #allocation0 [shape = 'u32[]', space=smem, size = 0x4, offset = 0x4, fixed_abs, tag = 'smem constant byte address 0x4 - core index']
  #allocation1 [shape = 'u32[72,128]{1,0:T(1,128)}', space=vmem, size = 0x9000, scoped, tag = 'internal scratch']
  %s0 = inlined_call_operand.vmem [shape: bf16[8,32], index: 0, kind: input, shape index: {}]
  %s1 = inlined_call_operand.vmem [shape: bf16[32,1024], index: 1, kind: input, shape index: {}]
  %s2 = inlined_call_operand.vmem [shape: f32[1,1024], index: 2, kind: input, shape index: {}]
  %s3 = inlined_call_operand.vmem [shape: bf16[1024,512], index: 3, kind: input, shape index: {}]
  %s4 = inlined_call_operand.vmem [shape: f32[1,512], index: 4, kind: input, shape index: {}]
  %s5 = inlined_call_operand.vmem [shape: bf16[512,128], index: 5, kind: input, shape index: {}]
  %s6 = inlined_call_operand.vmem [shape: f32[1,128], index: 6, kind: input, shape index: {}]
  %s7 = inlined_call_operand.vmem [shape: f32[8,128], index: 7, kind: output, shape index: {}]
  %s8 = sld [smem:[#allocation0]]
  $region38: #{_forward.1} parent=0
    _
  %s10 = ssub.s32 1, %s8
  %s11 = scalar_select 0, %s10, %s8
  // Predicated region
  $region2: #{_forward.1} parent=0 // pred_check
    _
  $region3: #{_forward.1} parent=0 // pred_check_branch
    %13 = sbr.rel (0) target = $region5
  $region4: #{_forward.1} parent=0 // pred_region
    _
  $region5: #{_forward.1} parent=0 // pred_fallthru
    _
  // Predicated region
  $region6: #{_forward.1} parent=0 // pred_check
    _
  $region7: #{_forward.1} parent=0 // pred_check_branch
    %15 = sbr.rel (0) target = $region9
  $region8: #{_forward.1} parent=0 // pred_region
    _
  $region9: #{_forward.1} parent=0 // pred_fallthru
    _
  // Predicated region
  $region10: #{_forward.1} parent=0 // pred_check
    _
  $region11: #{_forward.1} parent=0 // pred_check_branch
    %17 = sbr.rel (0) target = $region13
  $region12: #{_forward.1} parent=0 // pred_region
    _
  $region13: #{_forward.1} parent=0 // pred_fallthru
    _
  // Predicated region
  $region14: #{_forward.1} parent=0 // pred_check
    _
  $region15: #{_forward.1} parent=0 // pred_check_branch
    %19 = sbr.rel (0) target = $region17
  $region16: #{_forward.1} parent=0 // pred_region
    _
  $region17: #{_forward.1} parent=0 // pred_fallthru
    _
  // Predicated region
  $region18: #{_forward.1} parent=0 // pred_check
    _
  $region19: #{_forward.1} parent=0 // pred_check_branch
    %21 = sbr.rel (0) target = $region21
  $region20: #{_forward.1} parent=0 // pred_region
    _
  $region21: #{_forward.1} parent=0 // pred_fallthru
    _
  // Predicated region
  $region22: #{_forward.1} parent=0 // pred_check
    _
  $region23: #{_forward.1} parent=0 // pred_check_branch
    %23 = sbr.rel (0) target = $region25
  $region24: #{_forward.1} parent=0 // pred_region
    _
  $region25: #{_forward.1} parent=0 // pred_fallthru
    _
  // Predicated region
  $region26: #{_forward.1} parent=0 // pred_check
    _
  $region27: #{_forward.1} parent=0 // pred_check_branch
    %25 = sbr.rel (0) target = $region29
  $region28: #{_forward.1} parent=0 // pred_region
    _
  $region29: #{_forward.1} parent=0 // pred_fallthru
    _
  %v27 = vld [vmem:[%s0] sm:$0xf]
  %v28 = vld [vmem:[%s1] sm:$0xff]
  %v29 = vld [vmem:[%s1 + $0x8] sm:$0xff]
  %v30 = vld [vmem:[%s1 + $0x10] sm:$0xff]
  %v31 = vld [vmem:[%s1 + $0x18] sm:$0xff]
  %v32 = vld [vmem:[%s1 + $0x20] sm:$0xff]
  %v33 = vld [vmem:[%s1 + $0x28] sm:$0xff]
  %v34 = vld [vmem:[%s1 + $0x30] sm:$0xff]
  %v35 = vld [vmem:[%s1 + $0x38] sm:$0xff]
  %v36 = vld [vmem:[%s1 + $0x40] sm:$0xff]
  %v37 = vld [vmem:[%s1 + $0x48] sm:$0xff]
  %v38 = vld [vmem:[%s1 + $0x50] sm:$0xff]
  %v39 = vld [vmem:[%s1 + $0x58] sm:$0xff]
  %v40 = vld [vmem:[%s1 + $0x60] sm:$0xff]
  %v41 = vld [vmem:[%s1 + $0x68] sm:$0xff]
  %v42 = vld [vmem:[%s1 + $0x70] sm:$0xff]
  %v43 = vld [vmem:[%s1 + $0x78] sm:$0xff]
  %v44 = vld [vmem:[%s2] sm:$0xff]
  %v46 = vperm.slane %v44, 0
  %v47 = vperm.slane %v44, 1
  %v48 = vperm.slane %v44, 2
  %v49 = vperm.slane %v44, 3
  %v50 = vperm.slane %v44, 4
  %v51 = vperm.slane %v44, 5
  %v52 = vperm.slane %v44, 6
  %v53 = vperm.slane %v44, 7
  %v78 = vunpack.c.l.b16 %v28
  %v79 = vunpack.c.h.b16 %v28
  %v80 = vunpack.c.l.b16 %v29
  %v81 = vunpack.c.h.b16 %v29
  %v82 = vunpack.c.l.b16 %v30
  %v83 = vunpack.c.h.b16 %v30
  %v84 = vunpack.c.l.b16 %v31
  %v85 = vunpack.c.h.b16 %v31
  %v86 = vunpack.c.l.b16 %v32
  %v87 = vunpack.c.h.b16 %v32
  %v88 = vunpack.c.l.b16 %v33
  %v89 = vunpack.c.h.b16 %v33
  %v90 = vunpack.c.l.b16 %v34
  %v91 = vunpack.c.h.b16 %v34
  %v92 = vunpack.c.l.b16 %v35
  %v93 = vunpack.c.h.b16 %v35
  %v94 = vunpack.c.l.b16 %v36
  %v95 = vunpack.c.h.b16 %v36
  %v96 = vunpack.c.l.b16 %v37
  %v97 = vunpack.c.h.b16 %v37
  %v98 = vunpack.c.l.b16 %v38
  %v99 = vunpack.c.h.b16 %v38
  %v100 = vunpack.c.l.b16 %v39
  %v101 = vunpack.c.h.b16 %v39
  %v102 = vunpack.c.l.b16 %v40
  %v103 = vunpack.c.h.b16 %v40
  %v104 = vunpack.c.l.b16 %v41
  %v105 = vunpack.c.h.b16 %v41
  %v106 = vunpack.c.l.b16 %v42
  %v107 = vunpack.c.h.b16 %v42
  %v108 = vunpack.c.l.b16 %v43
  %v109 = vunpack.c.h.b16 %v43
  %v110 = vpack.c.b16 %v86, %v78
  %v111 = vpack.c.b16 %v87, %v79
  %v112 = vpack.c.b16 %v88, %v80
  %v113 = vpack.c.b16 %v89, %v81
  %v114 = vpack.c.b16 %v90, %v82
  %v115 = vpack.c.b16 %v91, %v83
  %v116 = vpack.c.b16 %v92, %v84
  %v117 = vpack.c.b16 %v93, %v85
  %v118 = vpack.c.b16 %v102, %v94
  %v119 = vpack.c.b16 %v103, %v95
  %v120 = vpack.c.b16 %v104, %v96
  %v121 = vpack.c.b16 %v105, %v97
  %v122 = vpack.c.b16 %v106, %v98
  %v123 = vpack.c.b16 %v107, %v99
  %v124 = vpack.c.b16 %v108, %v100
  %v125 = vpack.c.b16 %v109, %v101
  %vm142 = vcmask 261120
  %v144 = vsel %vm142, %v27, 0
  %146 = vmatpush.bf16.msra.mxu0 0
  %147 = vmatpush.bf16.msra.mxu0 0
  %148 = vmatpush.bf16.msra.mxu0 0
  %149 = vmatpush.bf16.msra.mxu0 0
  %150 = vmatpush.bf16.msra.mxu0 0
  %151 = vmatpush.bf16.msra.mxu0 0
  %152 = vmatpush.bf16.msra.mxu0 %v118
  %153 = vmatpush.bf16.msra.mxu0 %v110
  %154 = vmatmul.bf16.gmra.mxu0 %v144
  %v155 = vpop.f32.mrf.mxu0
  %v156 = vadd.f32 %v46, %v155
  %v157 = vpop.f32.mrf.mxu0
  %158 = vdwg.mxu0
  %159 = vmatpush.bf16.msra.mxu0 0
  %160 = vmatpush.bf16.msra.mxu0 0
  %161 = vmatpush.bf16.msra.mxu0 0
  %162 = vmatpush.bf16.msra.mxu0 0
  %163 = vmatpush.bf16.msra.mxu0 0
  %164 = vmatpush.bf16.msra.mxu0 0
  %165 = vmatpush.bf16.msra.mxu0 %v119
  %166 = vmatpush.bf16.msra.mxu0 %v111
  %167 = vmatmul.bf16.gmra.mxu0 %v144
  %v168 = vpop.f32.mrf.mxu0
  %v169 = vadd.f32 %v47, %v168
  %v170 = vpop.f32.mrf.mxu0
  %171 = vdwg.mxu0
  %172 = vmatpush.bf16.msra.mxu0 0
  %173 = vmatpush.bf16.msra.mxu0 0
  %174 = vmatpush.bf16.msra.mxu0 0
  %175 = vmatpush.bf16.msra.mxu0 0
  %176 = vmatpush.bf16.msra.mxu0 0
  %177 = vmatpush.bf16.msra.mxu0 0
  %178 = vmatpush.bf16.msra.mxu0 %v120
  %179 = vmatpush.bf16.msra.mxu0 %v112
  %180 = vmatmul.bf16.gmra.mxu0 %v144
  %v181 = vpop.f32.mrf.mxu0
  %v182 = vadd.f32 %v48, %v181
  %v183 = vpop.f32.mrf.mxu0
  %184 = vdwg.mxu0
  %185 = vmatpush.bf16.msra.mxu0 0
  %186 = vmatpush.bf16.msra.mxu0 0
  %187 = vmatpush.bf16.msra.mxu0 0
  %188 = vmatpush.bf16.msra.mxu0 0
  %189 = vmatpush.bf16.msra.mxu0 0
  %190 = vmatpush.bf16.msra.mxu0 0
  %191 = vmatpush.bf16.msra.mxu0 %v121
  %192 = vmatpush.bf16.msra.mxu0 %v113
  %193 = vmatmul.bf16.gmra.mxu0 %v144
  %v194 = vpop.f32.mrf.mxu0
  %v195 = vadd.f32 %v49, %v194
  %v196 = vpop.f32.mrf.mxu0
  %197 = vdwg.mxu0
  %198 = vmatpush.bf16.msra.mxu0 0
  %199 = vmatpush.bf16.msra.mxu0 0
  %200 = vmatpush.bf16.msra.mxu0 0
  %201 = vmatpush.bf16.msra.mxu0 0
  %202 = vmatpush.bf16.msra.mxu0 0
  %203 = vmatpush.bf16.msra.mxu0 0
  %204 = vmatpush.bf16.msra.mxu0 %v122
  %205 = vmatpush.bf16.msra.mxu0 %v114
  %206 = vmatmul.bf16.gmra.mxu0 %v144
  %v207 = vpop.f32.mrf.mxu0
  %v208 = vadd.f32 %v50, %v207
  %v209 = vpop.f32.mrf.mxu0
  %210 = vdwg.mxu0
  %211 = vmatpush.bf16.msra.mxu0 0
  %212 = vmatpush.bf16.msra.mxu0 0
  %213 = vmatpush.bf16.msra.mxu0 0
  %214 = vmatpush.bf16.msra.mxu0 0
  %215 = vmatpush.bf16.msra.mxu0 0
  %216 = vmatpush.bf16.msra.mxu0 0
  %217 = vmatpush.bf16.msra.mxu0 %v123
  %218 = vmatpush.bf16.msra.mxu0 %v115
  %219 = vmatmul.bf16.gmra.mxu0 %v144
  %v220 = vpop.f32.mrf.mxu0
  %v221 = vadd.f32 %v51, %v220
  %v222 = vpop.f32.mrf.mxu0
  %223 = vdwg.mxu0
  %224 = vmatpush.bf16.msra.mxu0 0
  %225 = vmatpush.bf16.msra.mxu0 0
  %226 = vmatpush.bf16.msra.mxu0 0
  %227 = vmatpush.bf16.msra.mxu0 0
  %228 = vmatpush.bf16.msra.mxu0 0
  %229 = vmatpush.bf16.msra.mxu0 0
  %230 = vmatpush.bf16.msra.mxu0 %v124
  %231 = vmatpush.bf16.msra.mxu0 %v116
  %232 = vmatmul.bf16.gmra.mxu0 %v144
  %v233 = vpop.f32.mrf.mxu0
  %v234 = vadd.f32 %v52, %v233
  %v235 = vpop.f32.mrf.mxu0
  %236 = vdwg.mxu0
  %237 = vmatpush.bf16.msra.mxu0 0
  %238 = vmatpush.bf16.msra.mxu0 0
  %239 = vmatpush.bf16.msra.mxu0 0
  %240 = vmatpush.bf16.msra.mxu0 0
  %241 = vmatpush.bf16.msra.mxu0 0
  %242 = vmatpush.bf16.msra.mxu0 0
  %243 = vmatpush.bf16.msra.mxu0 %v125
  %244 = vmatpush.bf16.msra.mxu0 %v117
  %245 = vmatmul.bf16.gmra.mxu0 %v144
  %v246 = vpop.f32.mrf.mxu0
  %v247 = vadd.f32 %v53, %v246
  %v248 = vpop.f32.mrf.mxu0
  %249 = vdwg.mxu0
  %v250 = vmax.f32 %v156, 0.0
  %v251 = vmax.f32 %v169, 0.0
  %v252 = vmax.f32 %v182, 0.0
  %v253 = vmax.f32 %v195, 0.0
  %v254 = vmax.f32 %v208, 0.0
  %v255 = vmax.f32 %v221, 0.0
  %v256 = vmax.f32 %v234, 0.0
  %v257 = vmax.f32 %v247, 0.0
  %v258 = vpack.c.bf16 %v250, %v250
  %v259 = vpack.c.bf16 %v251, %v251
  %v260 = vpack.c.bf16 %v252, %v252
  %v261 = vpack.c.bf16 %v253, %v253
  %v262 = vpack.c.bf16 %v254, %v254
  %v263 = vpack.c.bf16 %v255, %v255
  %v264 = vpack.c.bf16 %v256, %v256
  %v265 = vpack.c.bf16 %v257, %v257
  %v266 = vld [vmem:[%s3] sm:$0xff]
  %v267 = vld [vmem:[%s3 + $0x8] sm:$0xff]
  %v268 = vld [vmem:[%s3 + $0x10] sm:$0xff]
  %v269 = vld [vmem:[%s3 + $0x18] sm:$0xff]
  %v270 = vld [vmem:[%s3 + $0x20] sm:$0xff]
  %v271 = vld [vmem:[%s3 + $0x28] sm:$0xff]
  %v272 = vld [vmem:[%s3 + $0x30] sm:$0xff]
  %v273 = vld [vmem:[%s3 + $0x38] sm:$0xff]
  %v274 = vld [vmem:[%s3 + $0x40] sm:$0xff]
  %v275 = vld [vmem:[%s3 + $0x48] sm:$0xff]
  %v276 = vld [vmem:[%s3 + $0x50] sm:$0xff]
  %v277 = vld [vmem:[%s3 + $0x58] sm:$0xff]
  %v278 = vld [vmem:[%s3 + $0x60] sm:$0xff]
  %v279 = vld [vmem:[%s3 + $0x68] sm:$0xff]
  %v280 = vld [vmem:[%s3 + $0x70] sm:$0xff]
  %v281 = vld [vmem:[%s3 + $0x78] sm:$0xff]
  %v282 = vld [vmem:[%s3 + $0x80] sm:$0xff]
  %v283 = vld [vmem:[%s3 + $0x88] sm:$0xff]
  %v284 = vld [vmem:[%s3 + $0x90] sm:$0xff]
  %v285 = vld [vmem:[%s3 + $0x98] sm:$0xff]
  %v286 = vld [vmem:[%s3 + $0xa0] sm:$0xff]
  %v287 = vld [vmem:[%s3 + $0xa8] sm:$0xff]
  %v288 = vld [vmem:[%s3 + $0xb0] sm:$0xff]
  %v289 = vld [vmem:[%s3 + $0xb8] sm:$0xff]
  %v290 = vld [vmem:[%s3 + $0xc0] sm:$0xff]
  %v291 = vld [vmem:[%s3 + $0xc8] sm:$0xff]
  %v292 = vld [vmem:[%s3 + $0xd0] sm:$0xff]
  %v293 = vld [vmem:[%s3 + $0xd8] sm:$0xff]
  %v294 = vld [vmem:[%s3 + $0xe0] sm:$0xff]
  %v295 = vld [vmem:[%s3 + $0xe8] sm:$0xff]
  %v296 = vld [vmem:[%s3 + $0xf0] sm:$0xff]
  %v297 = vld [vmem:[%s3 + $0xf8] sm:$0xff]
  %v298 = vld [vmem:[%s3 + $0x100] sm:$0xff]
  %v299 = vld [vmem:[%s3 + $0x108] sm:$0xff]
  %v300 = vld [vmem:[%s3 + $0x110] sm:$0xff]
  %v301 = vld [vmem:[%s3 + $0x118] sm:$0xff]
  %v302 = vld [vmem:[%s3 + $0x120] sm:$0xff]
  %v303 = vld [vmem:[%s3 + $0x128] sm:$0xff]
  %v304 = vld [vmem:[%s3 + $0x130] sm:$0xff]
  %v305 = vld [vmem:[%s3 + $0x138] sm:$0xff]
  %v306 = vld [vmem:[%s3 + $0x140] sm:$0xff]
  %v307 = vld [vmem:[%s3 + $0x148] sm:$0xff]
  %v308 = vld [vmem:[%s3 + $0x150] sm:$0xff]
  %v309 = vld [vmem:[%s3 + $0x158] sm:$0xff]
  %v310 = vld [vmem:[%s3 + $0x160] sm:$0xff]
  %v311 = vld [vmem:[%s3 + $0x168] sm:$0xff]
  %v312 = vld [vmem:[%s3 + $0x170] sm:$0xff]
  %v313 = vld [vmem:[%s3 + $0x178] sm:$0xff]
  %v314 = vld [vmem:[%s3 + $0x180] sm:$0xff]
  %v315 = vld [vmem:[%s3 + $0x188] sm:$0xff]
  %v316 = vld [vmem:[%s3 + $0x190] sm:$0xff]
  %v317 = vld [vmem:[%s3 + $0x198] sm:$0xff]
  %v318 = vld [vmem:[%s3 + $0x1a0] sm:$0xff]
  %v319 = vld [vmem:[%s3 + $0x1a8] sm:$0xff]
  %v320 = vld [vmem:[%s3 + $0x1b0] sm:$0xff]
  %v321 = vld [vmem:[%s3 + $0x1b8] sm:$0xff]
  %v322 = vld [vmem:[%s3 + $0x1c0] sm:$0xff]
  %v323 = vld [vmem:[%s3 + $0x1c8] sm:$0xff]
  %v324 = vld [vmem:[%s3 + $0x1d0] sm:$0xff]
  %v325 = vld [vmem:[%s3 + $0x1d8] sm:$0xff]
  %v326 = vld [vmem:[%s3 + $0x1e0] sm:$0xff]
  %v327 = vld [vmem:[%s3 + $0x1e8] sm:$0xff]
  %v328 = vld [vmem:[%s3 + $0x1f0] sm:$0xff]
  %v329 = vld [vmem:[%s3 + $0x1f8] sm:$0xff]
  %v330 = vld [vmem:[%s3 + $0x200] sm:$0xff]
  %v331 = vld [vmem:[%s3 + $0x208] sm:$0xff]
  %v332 = vld [vmem:[%s3 + $0x210] sm:$0xff]
  %v333 = vld [vmem:[%s3 + $0x218] sm:$0xff]
  %v334 = vld [vmem:[%s3 + $0x220] sm:$0xff]
  %v335 = vld [vmem:[%s3 + $0x228] sm:$0xff]
  %v336 = vld [vmem:[%s3 + $0x230] sm:$0xff]
  %v337 = vld [vmem:[%s3 + $0x238] sm:$0xff]
  %v338 = vld [vmem:[%s3 + $0x240] sm:$0xff]
  %v339 = vld [vmem:[%s3 + $0x248] sm:$0xff]
  %v340 = vld [vmem:[%s3 + $0x250] sm:$0xff]
  %v341 = vld [vmem:[%s3 + $0x258] sm:$0xff]
  %v342 = vld [vmem:[%s3 + $0x260] sm:$0xff]
  %v343 = vld [vmem:[%s3 + $0x268] sm:$0xff]
  %v344 = vld [vmem:[%s3 + $0x270] sm:$0xff]
  %v345 = vld [vmem:[%s3 + $0x278] sm:$0xff]
  %v346 = vld [vmem:[%s3 + $0x280] sm:$0xff]
  %v347 = vld [vmem:[%s3 + $0x288] sm:$0xff]
  %v348 = vld [vmem:[%s3 + $0x290] sm:$0xff]
  %v349 = vld [vmem:[%s3 + $0x298] sm:$0xff]
  %v350 = vld [vmem:[%s3 + $0x2a0] sm:$0xff]
  %v351 = vld [vmem:[%s3 + $0x2a8] sm:$0xff]
  %v352 = vld [vmem:[%s3 + $0x2b0] sm:$0xff]
  %v353 = vld [vmem:[%s3 + $0x2b8] sm:$0xff]
  %v354 = vld [vmem:[%s3 + $0x2c0] sm:$0xff]
  %v355 = vld [vmem:[%s3 + $0x2c8] sm:$0xff]
  %v356 = vld [vmem:[%s3 + $0x2d0] sm:$0xff]
  %v357 = vld [vmem:[%s3 + $0x2d8] sm:$0xff]
  %v358 = vld [vmem:[%s3 + $0x2e0] sm:$0xff]
  %v359 = vld [vmem:[%s3 + $0x2e8] sm:$0xff]
  %v360 = vld [vmem:[%s3 + $0x2f0] sm:$0xff]
  %v361 = vld [vmem:[%s3 + $0x2f8] sm:$0xff]
  %v362 = vld [vmem:[%s3 + $0x300] sm:$0xff]
  %v363 = vld [vmem:[%s3 + $0x308] sm:$0xff]
  %v364 = vld [vmem:[%s3 + $0x310] sm:$0xff]
  %v365 = vld [vmem:[%s3 + $0x318] sm:$0xff]
  %v366 = vld [vmem:[%s3 + $0x320] sm:$0xff]
  %v367 = vld [vmem:[%s3 + $0x328] sm:$0xff]
  %v368 = vld [vmem:[%s3 + $0x330] sm:$0xff]
  %v369 = vld [vmem:[%s3 + $0x338] sm:$0xff]
  %v370 = vld [vmem:[%s3 + $0x340] sm:$0xff]
  %v371 = vld [vmem:[%s3 + $0x348] sm:$0xff]
  %v372 = vld [vmem:[%s3 + $0x350] sm:$0xff]
  %v373 = vld [vmem:[%s3 + $0x358] sm:$0xff]
  %v374 = vld [vmem:[%s3 + $0x360] sm:$0xff]
  %v375 = vld [vmem:[%s3 + $0x368] sm:$0xff]
  %v376 = vld [vmem:[%s3 + $0x370] sm:$0xff]
  %v377 = vld [vmem:[%s3 + $0x378] sm:$0xff]
  %v378 = vld [vmem:[%s3 + $0x380] sm:$0xff]
  %v379 = vld [vmem:[%s3 + $0x388] sm:$0xff]
  %v380 = vld [vmem:[%s3 + $0x390] sm:$0xff]
  %v381 = vld [vmem:[%s3 + $0x398] sm:$0xff]
  %v382 = vld [vmem:[%s3 + $0x3a0] sm:$0xff]
  %v383 = vld [vmem:[%s3 + $0x3a8] sm:$0xff]
  %v384 = vld [vmem:[%s3 + $0x3b0] sm:$0xff]
  %v385 = vld [vmem:[%s3 + $0x3b8] sm:$0xff]
  %v386 = vld [vmem:[%s3 + $0x3c0] sm:$0xff]
  %v387 = vld [vmem:[%s3 + $0x3c8] sm:$0xff]
  %v388 = vld [vmem:[%s3 + $0x3d0] sm:$0xff]
  %v389 = vld [vmem:[%s3 + $0x3d8] sm:$0xff]
  %v390 = vld [vmem:[%s3 + $0x3e0] sm:$0xff]
  %v391 = vld [vmem:[%s3 + $0x3e8] sm:$0xff]
  %v392 = vld [vmem:[%s3 + $0x3f0] sm:$0xff]
  %v393 = vld [vmem:[%s3 + $0x3f8] sm:$0xff]
  %v394 = vld [vmem:[%s3 + $0x400] sm:$0xff]
  %v395 = vld [vmem:[%s3 + $0x408] sm:$0xff]
  %v396 = vld [vmem:[%s3 + $0x410] sm:$0xff]
  %v397 = vld [vmem:[%s3 + $0x418] sm:$0xff]
  %v398 = vld [vmem:[%s3 + $0x420] sm:$0xff]
  %v399 = vld [vmem:[%s3 + $0x428] sm:$0xff]
  %v400 = vld [vmem:[%s3 + $0x430] sm:$0xff]
  %v401 = vld [vmem:[%s3 + $0x438] sm:$0xff]
  %v402 = vld [vmem:[%s3 + $0x440] sm:$0xff]
  %v403 = vld [vmem:[%s3 + $0x448] sm:$0xff]
  %v404 = vld [vmem:[%s3 + $0x450] sm:$0xff]
  %v405 = vld [vmem:[%s3 + $0x458] sm:$0xff]
  %v406 = vld [vmem:[%s3 + $0x460] sm:$0xff]
  %v407 = vld [vmem:[%s3 + $0x468] sm:$0xff]
  %v408 = vld [vmem:[%s3 + $0x470] sm:$0xff]
  %v409 = vld [vmem:[%s3 + $0x478] sm:$0xff]
  %v410 = vld [vmem:[%s3 + $0x480] sm:$0xff]
  %v411 = vld [vmem:[%s3 + $0x488] sm:$0xff]
  %v412 = vld [vmem:[%s3 + $0x490] sm:$0xff]
  %v413 = vld [vmem:[%s3 + $0x498] sm:$0xff]
  %v414 = vld [vmem:[%s3 + $0x4a0] sm:$0xff]
  %v415 = vld [vmem:[%s3 + $0x4a8] sm:$0xff]
  %v416 = vld [vmem:[%s3 + $0x4b0] sm:$0xff]
  %v417 = vld [vmem:[%s3 + $0x4b8] sm:$0xff]
  %v418 = vld [vmem:[%s3 + $0x4c0] sm:$0xff]
  %v419 = vld [vmem:[%s3 + $0x4c8] sm:$0xff]
  %v420 = vld [vmem:[%s3 + $0x4d0] sm:$0xff]
  %v421 = vld [vmem:[%s3 + $0x4d8] sm:$0xff]
  %v422 = vld [vmem:[%s3 + $0x4e0] sm:$0xff]
  %v423 = vld [vmem:[%s3 + $0x4e8] sm:$0xff]
  %v424 = vld [vmem:[%s3 + $0x4f0] sm:$0xff]
  %v425 = vld [vmem:[%s3 + $0x4f8] sm:$0xff]
  %v426 = vld [vmem:[%s3 + $0x500] sm:$0xff]
  %v427 = vld [vmem:[%s3 + $0x508] sm:$0xff]
  %v428 = vld [vmem:[%s3 + $0x510] sm:$0xff]
  %v429 = vld [vmem:[%s3 + $0x518] sm:$0xff]
  %v430 = vld [vmem:[%s3 + $0x520] sm:$0xff]
  %v431 = vld [vmem:[%s3 + $0x528] sm:$0xff]
  %v432 = vld [vmem:[%s3 + $0x530] sm:$0xff]
  %v433 = vld [vmem:[%s3 + $0x538] sm:$0xff]
  %v434 = vld [vmem:[%s3 + $0x540] sm:$0xff]
  %v435 = vld [vmem:[%s3 + $0x548] sm:$0xff]
  %v436 = vld [vmem:[%s3 + $0x550] sm:$0xff]
  %v437 = vld [vmem:[%s3 + $0x558] sm:$0xff]
  %v438 = vld [vmem:[%s3 + $0x560] sm:$0xff]
  %v439 = vld [vmem:[%s3 + $0x568] sm:$0xff]
  %v440 = vld [vmem:[%s3 + $0x570] sm:$0xff]
  %v441 = vld [vmem:[%s3 + $0x578] sm:$0xff]
  %v442 = vld [vmem:[%s3 + $0x580] sm:$0xff]
  %v443 = vld [vmem:[%s3 + $0x588] sm:$0xff]
  %v444 = vld [vmem:[%s3 + $0x590] sm:$0xff]
  %v445 = vld [vmem:[%s3 + $0x598] sm:$0xff]
  %v446 = vld [vmem:[%s3 + $0x5a0] sm:$0xff]
  %v447 = vld [vmem:[%s3 + $0x5a8] sm:$0xff]
  %v448 = vld [vmem:[%s3 + $0x5b0] sm:$0xff]
  %v449 = vld [vmem:[%s3 + $0x5b8] sm:$0xff]
  %v450 = vld [vmem:[%s3 + $0x5c0] sm:$0xff]
  %v451 = vld [vmem:[%s3 + $0x5c8] sm:$0xff]
  %v452 = vld [vmem:[%s3 + $0x5d0] sm:$0xff]
  %v453 = vld [vmem:[%s3 + $0x5d8] sm:$0xff]
  %v454 = vld [vmem:[%s3 + $0x5e0] sm:$0xff]
  %v455 = vld [vmem:[%s3 + $0x5e8] sm:$0xff]
  %v456 = vld [vmem:[%s3 + $0x5f0] sm:$0xff]
  %v457 = vld [vmem:[%s3 + $0x5f8] sm:$0xff]
  %v458 = vld [vmem:[%s3 + $0x600] sm:$0xff]
  %v459 = vld [vmem:[%s3 + $0x608] sm:$0xff]
  %v460 = vld [vmem:[%s3 + $0x610] sm:$0xff]
  %v461 = vld [vmem:[%s3 + $0x618] sm:$0xff]
  %v462 = vld [vmem:[%s3 + $0x620] sm:$0xff]
  %v463 = vld [vmem:[%s3 + $0x628] sm:$0xff]
  %v464 = vld [vmem:[%s3 + $0x630] sm:$0xff]
  %v465 = vld [vmem:[%s3 + $0x638] sm:$0xff]
  %v466 = vld [vmem:[%s3 + $0x640] sm:$0xff]
  %v467 = vld [vmem:[%s3 + $0x648] sm:$0xff]
  %v468 = vld [vmem:[%s3 + $0x650] sm:$0xff]
  %v469 = vld [vmem:[%s3 + $0x658] sm:$0xff]
  %v470 = vld [vmem:[%s3 + $0x660] sm:$0xff]
  %v471 = vld [vmem:[%s3 + $0x668] sm:$0xff]
  %v472 = vld [vmem:[%s3 + $0x670] sm:$0xff]
  %v473 = vld [vmem:[%s3 + $0x678] sm:$0xff]
  %v474 = vld [vmem:[%s3 + $0x680] sm:$0xff]
  %v475 = vld [vmem:[%s3 + $0x688] sm:$0xff]
  %v476 = vld [vmem:[%s3 + $0x690] sm:$0xff]
  %v477 = vld [vmem:[%s3 + $0x698] sm:$0xff]
  %v478 = vld [vmem:[%s3 + $0x6a0] sm:$0xff]
  %v479 = vld [vmem:[%s3 + $0x6a8] sm:$0xff]
  %v480 = vld [vmem:[%s3 + $0x6b0] sm:$0xff]
  %v481 = vld [vmem:[%s3 + $0x6b8] sm:$0xff]
  %v482 = vld [vmem:[%s3 + $0x6c0] sm:$0xff]
  %v483 = vld [vmem:[%s3 + $0x6c8] sm:$0xff]
  %v484 = vld [vmem:[%s3 + $0x6d0] sm:$0xff]
  %v485 = vld [vmem:[%s3 + $0x6d8] sm:$0xff]
  %v486 = vld [vmem:[%s3 + $0x6e0] sm:$0xff]
  %v487 = vld [vmem:[%s3 + $0x6e8] sm:$0xff]
  %v488 = vld [vmem:[%s3 + $0x6f0] sm:$0xff]
  %v489 = vld [vmem:[%s3 + $0x6f8] sm:$0xff]
  %v490 = vld [vmem:[%s3 + $0x700] sm:$0xff]
  %v491 = vld [vmem:[%s3 + $0x708] sm:$0xff]
  %v492 = vld [vmem:[%s3 + $0x710] sm:$0xff]
  %v493 = vld [vmem:[%s3 + $0x718] sm:$0xff]
  %v494 = vld [vmem:[%s3 + $0x720] sm:$0xff]
  %v495 = vld [vmem:[%s3 + $0x728] sm:$0xff]
  %v496 = vld [vmem:[%s3 + $0x730] sm:$0xff]
  %v497 = vld [vmem:[%s3 + $0x738] sm:$0xff]
  %v498 = vld [vmem:[%s3 + $0x740] sm:$0xff]
  %v499 = vld [vmem:[%s3 + $0x748] sm:$0xff]
  %v500 = vld [vmem:[%s3 + $0x750] sm:$0xff]
  %v501 = vld [vmem:[%s3 + $0x758] sm:$0xff]
  %v502 = vld [vmem:[%s3 + $0x760] sm:$0xff]
  %v503 = vld [vmem:[%s3 + $0x768] sm:$0xff]
  %v504 = vld [vmem:[%s3 + $0x770] sm:$0xff]
  %v505 = vld [vmem:[%s3 + $0x778] sm:$0xff]
  %v506 = vld [vmem:[%s3 + $0x780] sm:$0xff]
  %v507 = vld [vmem:[%s3 + $0x788] sm:$0xff]
  %v508 = vld [vmem:[%s3 + $0x790] sm:$0xff]
  %v509 = vld [vmem:[%s3 + $0x798] sm:$0xff]
  %v510 = vld [vmem:[%s3 + $0x7a0] sm:$0xff]
  %v511 = vld [vmem:[%s3 + $0x7a8] sm:$0xff]
  %v512 = vld [vmem:[%s3 + $0x7b0] sm:$0xff]
  %v513 = vld [vmem:[%s3 + $0x7b8] sm:$0xff]
  %v514 = vld [vmem:[%s3 + $0x7c0] sm:$0xff]
  %v515 = vld [vmem:[%s3 + $0x7c8] sm:$0xff]
  %v516 = vld [vmem:[%s3 + $0x7d0] sm:$0xff]
  %v517 = vld [vmem:[%s3 + $0x7d8] sm:$0xff]
  %v518 = vld [vmem:[%s3 + $0x7e0] sm:$0xff]
  %v519 = vld [vmem:[%s3 + $0x7e8] sm:$0xff]
  %v520 = vld [vmem:[%s3 + $0x7f0] sm:$0xff]
  %v521 = vld [vmem:[%s3 + $0x7f8] sm:$0xff]
  %v522 = vld [vmem:[%s4] sm:$0xf]
  %v524 = vperm.slane %v522, 0
  %v525 = vperm.slane %v522, 1
  %v526 = vperm.slane %v522, 2
  %v527 = vperm.slane %v522, 3
  %v788 = vunpack.c.l.b16 %v266
  %v789 = vunpack.c.h.b16 %v266
  %v790 = vunpack.c.l.b16 %v267
  %v791 = vunpack.c.h.b16 %v267
  %v792 = vunpack.c.l.b16 %v268
  %v793 = vunpack.c.h.b16 %v268
  %v794 = vunpack.c.l.b16 %v269
  %v795 = vunpack.c.h.b16 %v269
  %v796 = vunpack.c.l.b16 %v270
  %v797 = vunpack.c.h.b16 %v270
  %v798 = vunpack.c.l.b16 %v271
  %v799 = vunpack.c.h.b16 %v271
  %v800 = vunpack.c.l.b16 %v272
  %v801 = vunpack.c.h.b16 %v272
  %v802 = vunpack.c.l.b16 %v273
  %v803 = vunpack.c.h.b16 %v273
  %v804 = vunpack.c.l.b16 %v274
  %v805 = vunpack.c.h.b16 %v274
  %v806 = vunpack.c.l.b16 %v275
  %v807 = vunpack.c.h.b16 %v275
  %v808 = vunpack.c.l.b16 %v276
  %v809 = vunpack.c.h.b16 %v276
  %v810 = vunpack.c.l.b16 %v277
  %v811 = vunpack.c.h.b16 %v277
  %v812 = vunpack.c.l.b16 %v278
  %v813 = vunpack.c.h.b16 %v278
  %v814 = vunpack.c.l.b16 %v279
  %v815 = vunpack.c.h.b16 %v279
  %v816 = vunpack.c.l.b16 %v280
  %v817 = vunpack.c.h.b16 %v280
  %v818 = vunpack.c.l.b16 %v281
  %v819 = vunpack.c.h.b16 %v281
  %v820 = vunpack.c.l.b16 %v282
  %v821 = vunpack.c.h.b16 %v282
  %v822 = vunpack.c.l.b16 %v283
  %v823 = vunpack.c.h.b16 %v283
  %v824 = vunpack.c.l.b16 %v284
  %v825 = vunpack.c.h.b16 %v284
  %v826 = vunpack.c.l.b16 %v285
  %v827 = vunpack.c.h.b16 %v285
  %v828 = vunpack.c.l.b16 %v286
  %v829 = vunpack.c.h.b16 %v286
  %v830 = vunpack.c.l.b16 %v287
  %v831 = vunpack.c.h.b16 %v287
  %v832 = vunpack.c.l.b16 %v288
  %v833 = vunpack.c.h.b16 %v288
  %v834 = vunpack.c.l.b16 %v289
  %v835 = vunpack.c.h.b16 %v289
  %v836 = vunpack.c.l.b16 %v290
  %v837 = vunpack.c.h.b16 %v290
  %v838 = vunpack.c.l.b16 %v291
  %v839 = vunpack.c.h.b16 %v291
  %v840 = vunpack.c.l.b16 %v292
  %v841 = vunpack.c.h.b16 %v292
  %v842 = vunpack.c.l.b16 %v293
  %v843 = vunpack.c.h.b16 %v293
  %v844 = vunpack.c.l.b16 %v294
  %v845 = vunpack.c.h.b16 %v294
  %v846 = vunpack.c.l.b16 %v295
  %v847 = vunpack.c.h.b16 %v295
  %v848 = vunpack.c.l.b16 %v296
  %v849 = vunpack.c.h.b16 %v296
  %v850 = vunpack.c.l.b16 %v297
  %v851 = vunpack.c.h.b16 %v297
  %v852 = vunpack.c.l.b16 %v298
  %v853 = vunpack.c.h.b16 %v298
  %v854 = vunpack.c.l.b16 %v299
  %v855 = vunpack.c.h.b16 %v299
  %v856 = vunpack.c.l.b16 %v300
  %v857 = vunpack.c.h.b16 %v300
  %v858 = vunpack.c.l.b16 %v301
  %v859 = vunpack.c.h.b16 %v301
  %v860 = vunpack.c.l.b16 %v302
  %v861 = vunpack.c.h.b16 %v302
  %v862 = vunpack.c.l.b16 %v303
  %v863 = vunpack.c.h.b16 %v303
  %v864 = vunpack.c.l.b16 %v304
  %v865 = vunpack.c.h.b16 %v304
  %v866 = vunpack.c.l.b16 %v305
  %v867 = vunpack.c.h.b16 %v305
  %v868 = vunpack.c.l.b16 %v306
  %v869 = vunpack.c.h.b16 %v306
  %v870 = vunpack.c.l.b16 %v307
  %v871 = vunpack.c.h.b16 %v307
  %v872 = vunpack.c.l.b16 %v308
  %v873 = vunpack.c.h.b16 %v308
  %v874 = vunpack.c.l.b16 %v309
  %v875 = vunpack.c.h.b16 %v309
  %v876 = vunpack.c.l.b16 %v310
  %v877 = vunpack.c.h.b16 %v310
  %v878 = vunpack.c.l.b16 %v311
  %v879 = vunpack.c.h.b16 %v311
  %v880 = vunpack.c.l.b16 %v312
  %v881 = vunpack.c.h.b16 %v312
  %v882 = vunpack.c.l.b16 %v313
  %v883 = vunpack.c.h.b16 %v313
  %v884 = vunpack.c.l.b16 %v314
  %v885 = vunpack.c.h.b16 %v314
  %v886 = vunpack.c.l.b16 %v315
  %v887 = vunpack.c.h.b16 %v315
  %v888 = vunpack.c.l.b16 %v316
  %v889 = vunpack.c.h.b16 %v316
  %v890 = vunpack.c.l.b16 %v317
  %v891 = vunpack.c.h.b16 %v317
  %v892 = vunpack.c.l.b16 %v318
  %v893 = vunpack.c.h.b16 %v318
  %v894 = vunpack.c.l.b16 %v319
  %v895 = vunpack.c.h.b16 %v319
  %v896 = vunpack.c.l.b16 %v320
  %v897 = vunpack.c.h.b16 %v320
  %v898 = vunpack.c.l.b16 %v321
  %v899 = vunpack.c.h.b16 %v321
  %v900 = vunpack.c.l.b16 %v322
  %v901 = vunpack.c.h.b16 %v322
  %v902 = vunpack.c.l.b16 %v323
  %v903 = vunpack.c.h.b16 %v323
  %v904 = vunpack.c.l.b16 %v324
  %v905 = vunpack.c.h.b16 %v324
  %v906 = vunpack.c.l.b16 %v325
  %v907 = vunpack.c.h.b16 %v325
  %v908 = vunpack.c.l.b16 %v326
  %v909 = vunpack.c.h.b16 %v326
  %v910 = vunpack.c.l.b16 %v327
  %v911 = vunpack.c.h.b16 %v327
  %v912 = vunpack.c.l.b16 %v328
  %v913 = vunpack.c.h.b16 %v328
  %v914 = vunpack.c.l.b16 %v329
  %v915 = vunpack.c.h.b16 %v329
  %v916 = vunpack.c.l.b16 %v330
  %v917 = vunpack.c.h.b16 %v330
  %v918 = vunpack.c.l.b16 %v331
  %v919 = vunpack.c.h.b16 %v331
  %v920 = vunpack.c.l.b16 %v332
  %v921 = vunpack.c.h.b16 %v332
  %v922 = vunpack.c.l.b16 %v333
  %v923 = vunpack.c.h.b16 %v333
  %v924 = vunpack.c.l.b16 %v334
  %v925 = vunpack.c.h.b16 %v334
  %v926 = vunpack.c.l.b16 %v335
  %v927 = vunpack.c.h.b16 %v335
  %v928 = vunpack.c.l.b16 %v336
  %v929 = vunpack.c.h.b16 %v336
  %v930 = vunpack.c.l.b16 %v337
  %v931 = vunpack.c.h.b16 %v337
  %v932 = vunpack.c.l.b16 %v338
  %v933 = vunpack.c.h.b16 %v338
  %v934 = vunpack.c.l.b16 %v339
  %v935 = vunpack.c.h.b16 %v339
  %v936 = vunpack.c.l.b16 %v340
  %v937 = vunpack.c.h.b16 %v340
  %v938 = vunpack.c.l.b16 %v341
  %v939 = vunpack.c.h.b16 %v341
  %v940 = vunpack.c.l.b16 %v342
  %v941 = vunpack.c.h.b16 %v342
  %v942 = vunpack.c.l.b16 %v343
  %v943 = vunpack.c.h.b16 %v343
  %v944 = vunpack.c.l.b16 %v344
  %v945 = vunpack.c.h.b16 %v344
  %v946 = vunpack.c.l.b16 %v345
  %v947 = vunpack.c.h.b16 %v345
  %v948 = vunpack.c.l.b16 %v346
  %v949 = vunpack.c.h.b16 %v346
  %v950 = vunpack.c.l.b16 %v347
  %v951 = vunpack.c.h.b16 %v347
  %v952 = vunpack.c.l.b16 %v348
  %v953 = vunpack.c.h.b16 %v348
  %v954 = vunpack.c.l.b16 %v349
  %v955 = vunpack.c.h.b16 %v349
  %v956 = vunpack.c.l.b16 %v350
  %v957 = vunpack.c.h.b16 %v350
  %v958 = vunpack.c.l.b16 %v351
  %v959 = vunpack.c.h.b16 %v351
  %v960 = vunpack.c.l.b16 %v352
  %v961 = vunpack.c.h.b16 %v352
  %v962 = vunpack.c.l.b16 %v353
  %v963 = vunpack.c.h.b16 %v353
  %v964 = vunpack.c.l.b16 %v354
  %v965 = vunpack.c.h.b16 %v354
  %v966 = vunpack.c.l.b16 %v355
  %v967 = vunpack.c.h.b16 %v355
  %v968 = vunpack.c.l.b16 %v356
  %v969 = vunpack.c.h.b16 %v356
  %v970 = vunpack.c.l.b16 %v357
  %v971 = vunpack.c.h.b16 %v357
  %v972 = vunpack.c.l.b16 %v358
  %v973 = vunpack.c.h.b16 %v358
  %v974 = vunpack.c.l.b16 %v359
  %v975 = vunpack.c.h.b16 %v359
  %v976 = vunpack.c.l.b16 %v360
  %v977 = vunpack.c.h.b16 %v360
  %v978 = vunpack.c.l.b16 %v361
  %v979 = vunpack.c.h.b16 %v361
  %v980 = vunpack.c.l.b16 %v362
  %v981 = vunpack.c.h.b16 %v362
  %v982 = vunpack.c.l.b16 %v363
  %v983 = vunpack.c.h.b16 %v363
  %v984 = vunpack.c.l.b16 %v364
  %v985 = vunpack.c.h.b16 %v364
  %v986 = vunpack.c.l.b16 %v365
  %v987 = vunpack.c.h.b16 %v365
  %v988 = vunpack.c.l.b16 %v366
  %v989 = vunpack.c.h.b16 %v366
  %v990 = vunpack.c.l.b16 %v367
  %v991 = vunpack.c.h.b16 %v367
  %v992 = vunpack.c.l.b16 %v368
  %v993 = vunpack.c.h.b16 %v368
  %v994 = vunpack.c.l.b16 %v369
  %v995 = vunpack.c.h.b16 %v369
  %v996 = vunpack.c.l.b16 %v370
  %v997 = vunpack.c.h.b16 %v370
  %v998 = vunpack.c.l.b16 %v371
  %v999 = vunpack.c.h.b16 %v371
  %v1000 = vunpack.c.l.b16 %v372
  %v1001 = vunpack.c.h.b16 %v372
  %v1002 = vunpack.c.l.b16 %v373
  %v1003 = vunpack.c.h.b16 %v373
  %v1004 = vunpack.c.l.b16 %v374
  %v1005 = vunpack.c.h.b16 %v374
  %v1006 = vunpack.c.l.b16 %v375
  %v1007 = vunpack.c.h.b16 %v375
  %v1008 = vunpack.c.l.b16 %v376
  %v1009 = vunpack.c.h.b16 %v376
  %v1010 = vunpack.c.l.b16 %v377
  %v1011 = vunpack.c.h.b16 %v377
  %v1012 = vunpack.c.l.b16 %v378
  %v1013 = vunpack.c.h.b16 %v378
  %v1014 = vunpack.c.l.b16 %v379
  %v1015 = vunpack.c.h.b16 %v379
  %v1016 = vunpack.c.l.b16 %v380
  %v1017 = vunpack.c.h.b16 %v380
  %v1018 = vunpack.c.l.b16 %v381
  %v1019 = vunpack.c.h.b16 %v381
  %v1020 = vunpack.c.l.b16 %v382
  %v1021 = vunpack.c.h.b16 %v382
  %v1022 = vunpack.c.l.b16 %v383
  %v1023 = vunpack.c.h.b16 %v383
  %v1024 = vunpack.c.l.b16 %v384
  %v1025 = vunpack.c.h.b16 %v384
  %v1026 = vunpack.c.l.b16 %v385
  %v1027 = vunpack.c.h.b16 %v385
  %v1028 = vunpack.c.l.b16 %v386
  %v1029 = vunpack.c.h.b16 %v386
  %v1030 = vunpack.c.l.b16 %v387
  %v1031 = vunpack.c.h.b16 %v387
  %v1032 = vunpack.c.l.b16 %v388
  %v1033 = vunpack.c.h.b16 %v388
  %v1034 = vunpack.c.l.b16 %v389
  %v1035 = vunpack.c.h.b16 %v389
  %v1036 = vunpack.c.l.b16 %v390
  %v1037 = vunpack.c.h.b16 %v390
  %v1038 = vunpack.c.l.b16 %v391
  %v1039 = vunpack.c.h.b16 %v391
  %v1040 = vunpack.c.l.b16 %v392
  %v1041 = vunpack.c.h.b16 %v392
  %v1042 = vunpack.c.l.b16 %v393
  %v1043 = vunpack.c.h.b16 %v393
  %v1044 = vunpack.c.l.b16 %v394
  %v1045 = vunpack.c.h.b16 %v394
  %v1046 = vunpack.c.l.b16 %v395
  %v1047 = vunpack.c.h.b16 %v395
  %v1048 = vunpack.c.l.b16 %v396
  %v1049 = vunpack.c.h.b16 %v396
  %v1050 = vunpack.c.l.b16 %v397
  %v1051 = vunpack.c.h.b16 %v397
  %v1052 = vunpack.c.l.b16 %v398
  %v1053 = vunpack.c.h.b16 %v398
  %v1054 = vunpack.c.l.b16 %v399
  %v1055 = vunpack.c.h.b16 %v399
  %v1056 = vunpack.c.l.b16 %v400
  %v1057 = vunpack.c.h.b16 %v400
  %v1058 = vunpack.c.l.b16 %v401
  %v1059 = vunpack.c.h.b16 %v401
  %v1060 = vunpack.c.l.b16 %v402
  %v1061 = vunpack.c.h.b16 %v402
  %v1062 = vunpack.c.l.b16 %v403
  %v1063 = vunpack.c.h.b16 %v403
  %v1064 = vunpack.c.l.b16 %v404
  %v1065 = vunpack.c.h.b16 %v404
  %v1066 = vunpack.c.l.b16 %v405
  %v1067 = vunpack.c.h.b16 %v405
  %v1068 = vunpack.c.l.b16 %v406
  %v1069 = vunpack.c.h.b16 %v406
  %v1070 = vunpack.c.l.b16 %v407
  %v1071 = vunpack.c.h.b16 %v407
  %v1072 = vunpack.c.l.b16 %v408
  %v1073 = vunpack.c.h.b16 %v408
  %v1074 = vunpack.c.l.b16 %v409
  %v1075 = vunpack.c.h.b16 %v409
  %v1076 = vunpack.c.l.b16 %v410
  %v1077 = vunpack.c.h.b16 %v410
  %v1078 = vunpack.c.l.b16 %v411
  %v1079 = vunpack.c.h.b16 %v411
  %v1080 = vunpack.c.l.b16 %v412
  %v1081 = vunpack.c.h.b16 %v412
  %v1082 = vunpack.c.l.b16 %v413
  %v1083 = vunpack.c.h.b16 %v413
  %v1084 = vunpack.c.l.b16 %v414
  %v1085 = vunpack.c.h.b16 %v414
  %v1086 = vunpack.c.l.b16 %v415
  %v1087 = vunpack.c.h.b16 %v415
  %v1088 = vunpack.c.l.b16 %v416
  %v1089 = vunpack.c.h.b16 %v416
  %v1090 = vunpack.c.l.b16 %v417
  %v1091 = vunpack.c.h.b16 %v417
  %v1092 = vunpack.c.l.b16 %v418
  %v1093 = vunpack.c.h.b16 %v418
  %v1094 = vunpack.c.l.b16 %v419
  %v1095 = vunpack.c.h.b16 %v419
  %v1096 = vunpack.c.l.b16 %v420
  %v1097 = vunpack.c.h.b16 %v420
  %v1098 = vunpack.c.l.b16 %v421
  %v1099 = vunpack.c.h.b16 %v421
  %v1100 = vunpack.c.l.b16 %v422
  %v1101 = vunpack.c.h.b16 %v422
  %v1102 = vunpack.c.l.b16 %v423
  %v1103 = vunpack.c.h.b16 %v423
  %v1104 = vunpack.c.l.b16 %v424
  %v1105 = vunpack.c.h.b16 %v424
  %v1106 = vunpack.c.l.b16 %v425
  %v1107 = vunpack.c.h.b16 %v425
  %v1108 = vunpack.c.l.b16 %v426
  %v1109 = vunpack.c.h.b16 %v426
  %v1110 = vunpack.c.l.b16 %v427
  %v1111 = vunpack.c.h.b16 %v427
  %v1112 = vunpack.c.l.b16 %v428
  %v1113 = vunpack.c.h.b16 %v428
  %v1114 = vunpack.c.l.b16 %v429
  %v1115 = vunpack.c.h.b16 %v429
  %v1116 = vunpack.c.l.b16 %v430
  %v1117 = vunpack.c.h.b16 %v430
  %v1118 = vunpack.c.l.b16 %v431
  %v1119 = vunpack.c.h.b16 %v431
  %v1120 = vunpack.c.l.b16 %v432
  %v1121 = vunpack.c.h.b16 %v432
  %v1122 = vunpack.c.l.b16 %v433
  %v1123 = vunpack.c.h.b16 %v433
  %v1124 = vunpack.c.l.b16 %v434
  %v1125 = vunpack.c.h.b16 %v434
  %v1126 = vunpack.c.l.b16 %v435
  %v1127 = vunpack.c.h.b16 %v435
  %v1128 = vunpack.c.l.b16 %v436
  %v1129 = vunpack.c.h.b16 %v436
  %v1130 = vunpack.c.l.b16 %v437
  %v1131 = vunpack.c.h.b16 %v437
  %v1132 = vunpack.c.l.b16 %v438
  %v1133 = vunpack.c.h.b16 %v438
  %v1134 = vunpack.c.l.b16 %v439
  %v1135 = vunpack.c.h.b16 %v439
  %v1136 = vunpack.c.l.b16 %v440
  %v1137 = vunpack.c.h.b16 %v440
  %v1138 = vunpack.c.l.b16 %v441
  %v1139 = vunpack.c.h.b16 %v441
  %v1140 = vunpack.c.l.b16 %v442
  %v1141 = vunpack.c.h.b16 %v442
  %v1142 = vunpack.c.l.b16 %v443
  %v1143 = vunpack.c.h.b16 %v443
  %v1144 = vunpack.c.l.b16 %v444
  %v1145 = vunpack.c.h.b16 %v444
  %v1146 = vunpack.c.l.b16 %v445
  %v1147 = vunpack.c.h.b16 %v445
  %v1148 = vunpack.c.l.b16 %v446
  %v1149 = vunpack.c.h.b16 %v446
  %v1150 = vunpack.c.l.b16 %v447
  %v1151 = vunpack.c.h.b16 %v447
  %v1152 = vunpack.c.l.b16 %v448
  %v1153 = vunpack.c.h.b16 %v448
  %v1154 = vunpack.c.l.b16 %v449
  %v1155 = vunpack.c.h.b16 %v449
  %v1156 = vunpack.c.l.b16 %v450
  %v1157 = vunpack.c.h.b16 %v450
  %v1158 = vunpack.c.l.b16 %v451
  %v1159 = vunpack.c.h.b16 %v451
  %v1160 = vunpack.c.l.b16 %v452
  %v1161 = vunpack.c.h.b16 %v452
  %v1162 = vunpack.c.l.b16 %v453
  %v1163 = vunpack.c.h.b16 %v453
  %v1164 = vunpack.c.l.b16 %v454
  %v1165 = vunpack.c.h.b16 %v454
  %v1166 = vunpack.c.l.b16 %v455
  %v1167 = vunpack.c.h.b16 %v455
  %v1168 = vunpack.c.l.b16 %v456
  %v1169 = vunpack.c.h.b16 %v456
  %v1170 = vunpack.c.l.b16 %v457
  %v1171 = vunpack.c.h.b16 %v457
  %v1172 = vunpack.c.l.b16 %v458
  %v1173 = vunpack.c.h.b16 %v458
  %v1174 = vunpack.c.l.b16 %v459
  %v1175 = vunpack.c.h.b16 %v459
  %v1176 = vunpack.c.l.b16 %v460
  %v1177 = vunpack.c.h.b16 %v460
  %v1178 = vunpack.c.l.b16 %v461
  %v1179 = vunpack.c.h.b16 %v461
  %v1180 = vunpack.c.l.b16 %v462
  %v1181 = vunpack.c.h.b16 %v462
  %v1182 = vunpack.c.l.b16 %v463
  %v1183 = vunpack.c.h.b16 %v463
  %v1184 = vunpack.c.l.b16 %v464
  %v1185 = vunpack.c.h.b16 %v464
  %v1186 = vunpack.c.l.b16 %v465
  %v1187 = vunpack.c.h.b16 %v465
  %v1188 = vunpack.c.l.b16 %v466
  %v1189 = vunpack.c.h.b16 %v466
  %v1190 = vunpack.c.l.b16 %v467
  %v1191 = vunpack.c.h.b16 %v467
  %v1192 = vunpack.c.l.b16 %v468
  %v1193 = vunpack.c.h.b16 %v468
  %v1194 = vunpack.c.l.b16 %v469
  %v1195 = vunpack.c.h.b16 %v469
  %v1196 = vunpack.c.l.b16 %v470
  %v1197 = vunpack.c.h.b16 %v470
  %v1198 = vunpack.c.l.b16 %v471
  %v1199 = vunpack.c.h.b16 %v471
  %v1200 = vunpack.c.l.b16 %v472
  %v1201 = vunpack.c.h.b16 %v472
  %v1202 = vunpack.c.l.b16 %v473
  %v1203 = vunpack.c.h.b16 %v473
  %v1204 = vunpack.c.l.b16 %v474
  %v1205 = vunpack.c.h.b16 %v474
  %v1206 = vunpack.c.l.b16 %v475
  %v1207 = vunpack.c.h.b16 %v475
  %v1208 = vunpack.c.l.b16 %v476
  %v1209 = vunpack.c.h.b16 %v476
  %v1210 = vunpack.c.l.b16 %v477
  %v1211 = vunpack.c.h.b16 %v477
  %v1212 = vunpack.c.l.b16 %v478
  %v1213 = vunpack.c.h.b16 %v478
  %v1214 = vunpack.c.l.b16 %v479
  %v1215 = vunpack.c.h.b16 %v479
  %v1216 = vunpack.c.l.b16 %v480
  %v1217 = vunpack.c.h.b16 %v480
  %v1218 = vunpack.c.l.b16 %v481
  %v1219 = vunpack.c.h.b16 %v481
  %v1220 = vunpack.c.l.b16 %v482
  %v1221 = vunpack.c.h.b16 %v482
  %v1222 = vunpack.c.l.b16 %v483
  %v1223 = vunpack.c.h.b16 %v483
  %v1224 = vunpack.c.l.b16 %v484
  %v1225 = vunpack.c.h.b16 %v484
  %v1226 = vunpack.c.l.b16 %v485
  %v1227 = vunpack.c.h.b16 %v485
  %v1228 = vunpack.c.l.b16 %v486
  %v1229 = vunpack.c.h.b16 %v486
  %v1230 = vunpack.c.l.b16 %v487
  %v1231 = vunpack.c.h.b16 %v487
  %v1232 = vunpack.c.l.b16 %v488
  %v1233 = vunpack.c.h.b16 %v488
  %v1234 = vunpack.c.l.b16 %v489
  %v1235 = vunpack.c.h.b16 %v489
  %v1236 = vunpack.c.l.b16 %v490
  %v1237 = vunpack.c.h.b16 %v490
  %v1238 = vunpack.c.l.b16 %v491
  %v1239 = vunpack.c.h.b16 %v491
  %v1240 = vunpack.c.l.b16 %v492
  %v1241 = vunpack.c.h.b16 %v492
  %v1242 = vunpack.c.l.b16 %v493
  %v1243 = vunpack.c.h.b16 %v493
  %v1244 = vunpack.c.l.b16 %v494
  %v1245 = vunpack.c.h.b16 %v494
  %v1246 = vunpack.c.l.b16 %v495
  %v1247 = vunpack.c.h.b16 %v495
  %v1248 = vunpack.c.l.b16 %v496
  %v1249 = vunpack.c.h.b16 %v496
  %v1250 = vunpack.c.l.b16 %v497
  %v1251 = vunpack.c.h.b16 %v497
  %v1252 = vunpack.c.l.b16 %v498
  %v1253 = vunpack.c.h.b16 %v498
  %v1254 = vunpack.c.l.b16 %v499
  %v1255 = vunpack.c.h.b16 %v499
  %v1256 = vunpack.c.l.b16 %v500
  %v1257 = vunpack.c.h.b16 %v500
  %v1258 = vunpack.c.l.b16 %v501
  %v1259 = vunpack.c.h.b16 %v501
  %v1260 = vunpack.c.l.b16 %v502
  %v1261 = vunpack.c.h.b16 %v502
  %v1262 = vunpack.c.l.b16 %v503
  %v1263 = vunpack.c.h.b16 %v503
  %v1264 = vunpack.c.l.b16 %v504
  %v1265 = vunpack.c.h.b16 %v504
  %v1266 = vunpack.c.l.b16 %v505
  %v1267 = vunpack.c.h.b16 %v505
  %v1268 = vunpack.c.l.b16 %v506
  %v1269 = vunpack.c.h.b16 %v506
  %v1270 = vunpack.c.l.b16 %v507
  %v1271 = vunpack.c.h.b16 %v507
  %v1272 = vunpack.c.l.b16 %v508
  %v1273 = vunpack.c.h.b16 %v508
  %v1274 = vunpack.c.l.b16 %v509
  %v1275 = vunpack.c.h.b16 %v509
  %v1276 = vunpack.c.l.b16 %v510
  %v1277 = vunpack.c.h.b16 %v510
  %v1278 = vunpack.c.l.b16 %v511
  %v1279 = vunpack.c.h.b16 %v511
  %v1280 = vunpack.c.l.b16 %v512
  %v1281 = vunpack.c.h.b16 %v512
  %v1282 = vunpack.c.l.b16 %v513
  %v1283 = vunpack.c.h.b16 %v513
  %v1284 = vunpack.c.l.b16 %v514
  %v1285 = vunpack.c.h.b16 %v514
  %v1286 = vunpack.c.l.b16 %v515
  %v1287 = vunpack.c.h.b16 %v515
  %v1288 = vunpack.c.l.b16 %v516
  %v1289 = vunpack.c.h.b16 %v516
  %v1290 = vunpack.c.l.b16 %v517
  %v1291 = vunpack.c.h.b16 %v517
  %v1292 = vunpack.c.l.b16 %v518
  %v1293 = vunpack.c.h.b16 %v518
  %v1294 = vunpack.c.l.b16 %v519
  %v1295 = vunpack.c.h.b16 %v519
  %v1296 = vunpack.c.l.b16 %v520
  %v1297 = vunpack.c.h.b16 %v520
  %v1298 = vunpack.c.l.b16 %v521
  %v1299 = vunpack.c.h.b16 %v521
  %v1300 = vpack.c.b16 %v792, %v788
  %v1301 = vpack.c.b16 %v793, %v789
  %v1302 = vpack.c.b16 %v794, %v790
  %v1303 = vpack.c.b16 %v795, %v791
  %v1304 = vpack.c.b16 %v800, %v796
  %v1305 = vpack.c.b16 %v801, %v797
  %v1306 = vpack.c.b16 %v802, %v798
  %v1307 = vpack.c.b16 %v803, %v799
  %v1308 = vpack.c.b16 %v808, %v804
  %v1309 = vpack.c.b16 %v809, %v805
  %v1310 = vpack.c.b16 %v810, %v806
  %v1311 = vpack.c.b16 %v811, %v807
  %v1312 = vpack.c.b16 %v816, %v812
  %v1313 = vpack.c.b16 %v817, %v813
  %v1314 = vpack.c.b16 %v818, %v814
  %v1315 = vpack.c.b16 %v819, %v815
  %v1316 = vpack.c.b16 %v824, %v820
  %v1317 = vpack.c.b16 %v825, %v821
  %v1318 = vpack.c.b16 %v826, %v822
  %v1319 = vpack.c.b16 %v827, %v823
  %v1320 = vpack.c.b16 %v832, %v828
  %v1321 = vpack.c.b16 %v833, %v829
  %v1322 = vpack.c.b16 %v834, %v830
  %v1323 = vpack.c.b16 %v835, %v831
  %v1324 = vpack.c.b16 %v840, %v836
  %v1325 = vpack.c.b16 %v841, %v837
  %v1326 = vpack.c.b16 %v842, %v838
  %v1327 = vpack.c.b16 %v843, %v839
  %v1328 = vpack.c.b16 %v848, %v844
  %v1329 = vpack.c.b16 %v849, %v845
  %v1330 = vpack.c.b16 %v850, %v846
  %v1331 = vpack.c.b16 %v851, %v847
  %v1332 = vpack.c.b16 %v856, %v852
  %v1333 = vpack.c.b16 %v857, %v853
  %v1334 = vpack.c.b16 %v858, %v854
  %v1335 = vpack.c.b16 %v859, %v855
  %v1336 = vpack.c.b16 %v864, %v860
  %v1337 = vpack.c.b16 %v865, %v861
  %v1338 = vpack.c.b16 %v866, %v862
  %v1339 = vpack.c.b16 %v867, %v863
  %v1340 = vpack.c.b16 %v872, %v868
  %v1341 = vpack.c.b16 %v873, %v869
  %v1342 = vpack.c.b16 %v874, %v870
  %v1343 = vpack.c.b16 %v875, %v871
  %v1344 = vpack.c.b16 %v880, %v876
  %v1345 = vpack.c.b16 %v881, %v877
  %v1346 = vpack.c.b16 %v882, %v878
  %v1347 = vpack.c.b16 %v883, %v879
  %v1348 = vpack.c.b16 %v888, %v884
  %v1349 = vpack.c.b16 %v889, %v885
  %v1350 = vpack.c.b16 %v890, %v886
  %v1351 = vpack.c.b16 %v891, %v887
  %v1352 = vpack.c.b16 %v896, %v892
  %v1353 = vpack.c.b16 %v897, %v893
  %v1354 = vpack.c.b16 %v898, %v894
  %v1355 = vpack.c.b16 %v899, %v895
  %v1356 = vpack.c.b16 %v904, %v900
  %v1357 = vpack.c.b16 %v905, %v901
  %v1358 = vpack.c.b16 %v906, %v902
  %v1359 = vpack.c.b16 %v907, %v903
  %v1360 = vpack.c.b16 %v912, %v908
  %v1361 = vpack.c.b16 %v913, %v909
  %v1362 = vpack.c.b16 %v914, %v910
  %v1363 = vpack.c.b16 %v915, %v911
  %v1364 = vpack.c.b16 %v920, %v916
  %v1365 = vpack.c.b16 %v921, %v917
  %v1366 = vpack.c.b16 %v922, %v918
  %v1367 = vpack.c.b16 %v923, %v919
  %v1368 = vpack.c.b16 %v928, %v924
  %v1369 = vpack.c.b16 %v929, %v925
  %v1370 = vpack.c.b16 %v930, %v926
  %v1371 = vpack.c.b16 %v931, %v927
  %v1372 = vpack.c.b16 %v936, %v932
  %v1373 = vpack.c.b16 %v937, %v933
  %v1374 = vpack.c.b16 %v938, %v934
  %v1375 = vpack.c.b16 %v939, %v935
  %v1376 = vpack.c.b16 %v944, %v940
  %v1377 = vpack.c.b16 %v945, %v941
  %v1378 = vpack.c.b16 %v946, %v942
  %v1379 = vpack.c.b16 %v947, %v943
  %v1380 = vpack.c.b16 %v952, %v948
  %v1381 = vpack.c.b16 %v953, %v949
  %v1382 = vpack.c.b16 %v954, %v950
  %v1383 = vpack.c.b16 %v955, %v951
  %v1384 = vpack.c.b16 %v960, %v956
  %v1385 = vpack.c.b16 %v961, %v957
  %v1386 = vpack.c.b16 %v962, %v958
  %v1387 = vpack.c.b16 %v963, %v959
  %v1388 = vpack.c.b16 %v968, %v964
  %v1389 = vpack.c.b16 %v969, %v965
  %v1390 = vpack.c.b16 %v970, %v966
  %v1391 = vpack.c.b16 %v971, %v967
  %v1392 = vpack.c.b16 %v976, %v972
  %v1393 = vpack.c.b16 %v977, %v973
  %v1394 = vpack.c.b16 %v978, %v974
  %v1395 = vpack.c.b16 %v979, %v975
  %v1396 = vpack.c.b16 %v984, %v980
  %v1397 = vpack.c.b16 %v985, %v981
  %v1398 = vpack.c.b16 %v986, %v982
  %v1399 = vpack.c.b16 %v987, %v983
  %v1400 = vpack.c.b16 %v992, %v988
  %v1401 = vpack.c.b16 %v993, %v989
  %v1402 = vpack.c.b16 %v994, %v990
  %v1403 = vpack.c.b16 %v995, %v991
  %v1404 = vpack.c.b16 %v1000, %v996
  %v1405 = vpack.c.b16 %v1001, %v997
  %v1406 = vpack.c.b16 %v1002, %v998
  %v1407 = vpack.c.b16 %v1003, %v999
  %v1408 = vpack.c.b16 %v1008, %v1004
  %v1409 = vpack.c.b16 %v1009, %v1005
  %v1410 = vpack.c.b16 %v1010, %v1006
  %v1411 = vpack.c.b16 %v1011, %v1007
  %v1412 = vpack.c.b16 %v1016, %v1012
  %v1413 = vpack.c.b16 %v1017, %v1013
  %v1414 = vpack.c.b16 %v1018, %v1014
  %v1415 = vpack.c.b16 %v1019, %v1015
  %v1416 = vpack.c.b16 %v1024, %v1020
  %v1417 = vpack.c.b16 %v1025, %v1021
  %v1418 = vpack.c.b16 %v1026, %v1022
  %v1419 = vpack.c.b16 %v1027, %v1023
  %v1420 = vpack.c.b16 %v1032, %v1028
  %v1421 = vpack.c.b16 %v1033, %v1029
  %v1422 = vpack.c.b16 %v1034, %v1030
  %v1423 = vpack.c.b16 %v1035, %v1031
  %v1424 = vpack.c.b16 %v1040, %v1036
  %v1425 = vpack.c.b16 %v1041, %v1037
  %v1426 = vpack.c.b16 %v1042, %v1038
  %v1427 = vpack.c.b16 %v1043, %v1039
  %v1428 = vpack.c.b16 %v1048, %v1044
  %v1429 = vpack.c.b16 %v1049, %v1045
  %v1430 = vpack.c.b16 %v1050, %v1046
  %v1431 = vpack.c.b16 %v1051, %v1047
  %v1432 = vpack.c.b16 %v1056, %v1052
  %v1433 = vpack.c.b16 %v1057, %v1053
  %v1434 = vpack.c.b16 %v1058, %v1054
  %v1435 = vpack.c.b16 %v1059, %v1055
  %v1436 = vpack.c.b16 %v1064, %v1060
  %v1437 = vpack.c.b16 %v1065, %v1061
  %v1438 = vpack.c.b16 %v1066, %v1062
  %v1439 = vpack.c.b16 %v1067, %v1063
  %v1440 = vpack.c.b16 %v1072, %v1068
  %v1441 = vpack.c.b16 %v1073, %v1069
  %v1442 = vpack.c.b16 %v1074, %v1070
  %v1443 = vpack.c.b16 %v1075, %v1071
  %v1444 = vpack.c.b16 %v1080, %v1076
  %v1445 = vpack.c.b16 %v1081, %v1077
  %v1446 = vpack.c.b16 %v1082, %v1078
  %v1447 = vpack.c.b16 %v1083, %v1079
  %v1448 = vpack.c.b16 %v1088, %v1084
  %v1449 = vpack.c.b16 %v1089, %v1085
  %v1450 = vpack.c.b16 %v1090, %v1086
  %v1451 = vpack.c.b16 %v1091, %v1087
  %v1452 = vpack.c.b16 %v1096, %v1092
  %v1453 = vpack.c.b16 %v1097, %v1093
  %v1454 = vpack.c.b16 %v1098, %v1094
  %v1455 = vpack.c.b16 %v1099, %v1095
  %v1456 = vpack.c.b16 %v1104, %v1100
  %v1457 = vpack.c.b16 %v1105, %v1101
  %v1458 = vpack.c.b16 %v1106, %v1102
  %v1459 = vpack.c.b16 %v1107, %v1103
  %v1460 = vpack.c.b16 %v1112, %v1108
  %v1461 = vpack.c.b16 %v1113, %v1109
  %v1462 = vpack.c.b16 %v1114, %v1110
  %v1463 = vpack.c.b16 %v1115, %v1111
  %v1464 = vpack.c.b16 %v1120, %v1116
  %v1465 = vpack.c.b16 %v1121, %v1117
  %v1466 = vpack.c.b16 %v1122, %v1118
  %v1467 = vpack.c.b16 %v1123, %v1119
  %v1468 = vpack.c.b16 %v1128, %v1124
  %v1469 = vpack.c.b16 %v1129, %v1125
  %v1470 = vpack.c.b16 %v1130, %v1126
  %v1471 = vpack.c.b16 %v1131, %v1127
  %v1472 = vpack.c.b16 %v1136, %v1132
  %v1473 = vpack.c.b16 %v1137, %v1133
  %v1474 = vpack.c.b16 %v1138, %v1134
  %v1475 = vpack.c.b16 %v1139, %v1135
  %v1476 = vpack.c.b16 %v1144, %v1140
  %v1477 = vpack.c.b16 %v1145, %v1141
  %v1478 = vpack.c.b16 %v1146, %v1142
  %v1479 = vpack.c.b16 %v1147, %v1143
  %v1480 = vpack.c.b16 %v1152, %v1148
  %v1481 = vpack.c.b16 %v1153, %v1149
  %v1482 = vpack.c.b16 %v1154, %v1150
  %v1483 = vpack.c.b16 %v1155, %v1151
  %v1484 = vpack.c.b16 %v1160, %v1156
  %v1485 = vpack.c.b16 %v1161, %v1157
  %v1486 = vpack.c.b16 %v1162, %v1158
  %v1487 = vpack.c.b16 %v1163, %v1159
  %v1488 = vpack.c.b16 %v1168, %v1164
  %v1489 = vpack.c.b16 %v1169, %v1165
  %v1490 = vpack.c.b16 %v1170, %v1166
  %v1491 = vpack.c.b16 %v1171, %v1167
  %v1492 = vpack.c.b16 %v1176, %v1172
  %v1493 = vpack.c.b16 %v1177, %v1173
  %v1494 = vpack.c.b16 %v1178, %v1174
  %v1495 = vpack.c.b16 %v1179, %v1175
  %v1496 = vpack.c.b16 %v1184, %v1180
  %v1497 = vpack.c.b16 %v1185, %v1181
  %v1498 = vpack.c.b16 %v1186, %v1182
  %v1499 = vpack.c.b16 %v1187, %v1183
  %v1500 = vpack.c.b16 %v1192, %v1188
  %v1501 = vpack.c.b16 %v1193, %v1189
  %v1502 = vpack.c.b16 %v1194, %v1190
  %v1503 = vpack.c.b16 %v1195, %v1191
  %v1504 = vpack.c.b16 %v1200, %v1196
  %v1505 = vpack.c.b16 %v1201, %v1197
  %v1506 = vpack.c.b16 %v1202, %v1198
  %v1507 = vpack.c.b16 %v1203, %v1199
  %v1508 = vpack.c.b16 %v1208, %v1204
  %v1509 = vpack.c.b16 %v1209, %v1205
  %v1510 = vpack.c.b16 %v1210, %v1206
  %v1511 = vpack.c.b16 %v1211, %v1207
  %v1512 = vpack.c.b16 %v1216, %v1212
  %v1513 = vpack.c.b16 %v1217, %v1213
  %v1514 = vpack.c.b16 %v1218, %v1214
  %v1515 = vpack.c.b16 %v1219, %v1215
  %v1516 = vpack.c.b16 %v1224, %v1220
  %v1517 = vpack.c.b16 %v1225, %v1221
  %v1518 = vpack.c.b16 %v1226, %v1222
  %v1519 = vpack.c.b16 %v1227, %v1223
  %v1520 = vpack.c.b16 %v1232, %v1228
  %v1521 = vpack.c.b16 %v1233, %v1229
  %v1522 = vpack.c.b16 %v1234, %v1230
  %v1523 = vpack.c.b16 %v1235, %v1231
  %v1524 = vpack.c.b16 %v1240, %v1236
  %v1525 = vpack.c.b16 %v1241, %v1237
  %v1526 = vpack.c.b16 %v1242, %v1238
  %v1527 = vpack.c.b16 %v1243, %v1239
  %v1528 = vpack.c.b16 %v1248, %v1244
  %v1529 = vpack.c.b16 %v1249, %v1245
  %v1530 = vpack.c.b16 %v1250, %v1246
  %v1531 = vpack.c.b16 %v1251, %v1247
  %v1532 = vpack.c.b16 %v1256, %v1252
  %v1533 = vpack.c.b16 %v1257, %v1253
  %v1534 = vpack.c.b16 %v1258, %v1254
  %v1535 = vpack.c.b16 %v1259, %v1255
  %v1536 = vpack.c.b16 %v1264, %v1260
  %v1537 = vpack.c.b16 %v1265, %v1261
  %v1538 = vpack.c.b16 %v1266, %v1262
  %v1539 = vpack.c.b16 %v1267, %v1263
  %v1540 = vpack.c.b16 %v1272, %v1268
  %v1541 = vpack.c.b16 %v1273, %v1269
  %v1542 = vpack.c.b16 %v1274, %v1270
  %v1543 = vpack.c.b16 %v1275, %v1271
  %v1544 = vpack.c.b16 %v1280, %v1276
  %v1545 = vpack.c.b16 %v1281, %v1277
  %v1546 = vpack.c.b16 %v1282, %v1278
  %v1547 = vpack.c.b16 %v1283, %v1279
  %v1548 = vpack.c.b16 %v1288, %v1284
  %v1549 = vpack.c.b16 %v1289, %v1285
  %v1550 = vpack.c.b16 %v1290, %v1286
  %v1551 = vpack.c.b16 %v1291, %v1287
  %v1552 = vpack.c.b16 %v1296, %v1292
  %v1553 = vpack.c.b16 %v1297, %v1293
  %v1554 = vpack.c.b16 %v1298, %v1294
  %v1555 = vpack.c.b16 %v1299, %v1295
  %1812 = vmatpush.bf16.msra.mxu0 %v1328
  %1813 = vmatpush.bf16.msra.mxu0 %v1324
  %1814 = vmatpush.bf16.msra.mxu0 %v1320
  %1815 = vmatpush.bf16.msra.mxu0 %v1316
  %1816 = vmatpush.bf16.msra.mxu0 %v1312
  %1817 = vmatpush.bf16.msra.mxu0 %v1308
  %1818 = vmatpush.bf16.msra.mxu0 %v1304
  %1819 = vmatpush.bf16.msra.mxu0 %v1300
  %1820 = vmatmul.bf16.gmra.mxu0 %v258
  %v1821 = vpop.f32.mrf.mxu0
  %v1822 = vadd.f32 %v524, %v1821
  %v1823 = vpop.f32.mrf.mxu0
  %1824 = vdwg.mxu0
  %1825 = vmatpush.bf16.msra.mxu0 %v1360
  %1826 = vmatpush.bf16.msra.mxu0 %v1356
  %1827 = vmatpush.bf16.msra.mxu0 %v1352
  %1828 = vmatpush.bf16.msra.mxu0 %v1348
  %1829 = vmatpush.bf16.msra.mxu0 %v1344
  %1830 = vmatpush.bf16.msra.mxu0 %v1340
  %1831 = vmatpush.bf16.msra.mxu0 %v1336
  %1832 = vmatpush.bf16.msra.mxu0 %v1332
  %1833 = vmatmul.bf16.gmra.mxu0 %v259
  %v1834 = vpop.f32.mrf.mxu0
  %v1835 = vadd.f32 %v1822, %v1834
  %v1836 = vpop.f32.mrf.mxu0
  %1837 = vdwg.mxu0
  %1838 = vmatpush.bf16.msra.mxu0 %v1392
  %1839 = vmatpush.bf16.msra.mxu0 %v1388
  %1840 = vmatpush.bf16.msra.mxu0 %v1384
  %1841 = vmatpush.bf16.msra.mxu0 %v1380
  %1842 = vmatpush.bf16.msra.mxu0 %v1376
  %1843 = vmatpush.bf16.msra.mxu0 %v1372
  %1844 = vmatpush.bf16.msra.mxu0 %v1368
  %1845 = vmatpush.bf16.msra.mxu0 %v1364
  %1846 = vmatmul.bf16.gmra.mxu0 %v260
  %v1847 = vpop.f32.mrf.mxu0
  %v1848 = vadd.f32 %v1835, %v1847
  %v1849 = vpop.f32.mrf.mxu0
  %1850 = vdwg.mxu0
  %1851 = vmatpush.bf16.msra.mxu0 %v1424
  %1852 = vmatpush.bf16.msra.mxu0 %v1420
  %1853 = vmatpush.bf16.msra.mxu0 %v1416
  %1854 = vmatpush.bf16.msra.mxu0 %v1412
  %1855 = vmatpush.bf16.msra.mxu0 %v1408
  %1856 = vmatpush.bf16.msra.mxu0 %v1404
  %1857 = vmatpush.bf16.msra.mxu0 %v1400
  %1858 = vmatpush.bf16.msra.mxu0 %v1396
  %1859 = vmatmul.bf16.gmra.mxu0 %v261
  %v1860 = vpop.f32.mrf.mxu0
  %v1861 = vadd.f32 %v1848, %v1860
  %v1862 = vpop.f32.mrf.mxu0
  %1863 = vdwg.mxu0
  %1864 = vmatpush.bf16.msra.mxu0 %v1456
  %1865 = vmatpush.bf16.msra.mxu0 %v1452
  %1866 = vmatpush.bf16.msra.mxu0 %v1448
  %1867 = vmatpush.bf16.msra.mxu0 %v1444
  %1868 = vmatpush.bf16.msra.mxu0 %v1440
  %1869 = vmatpush.bf16.msra.mxu0 %v1436
  %1870 = vmatpush.bf16.msra.mxu0 %v1432
  %1871 = vmatpush.bf16.msra.mxu0 %v1428
  %1872 = vmatmul.bf16.gmra.mxu0 %v262
  %v1873 = vpop.f32.mrf.mxu0
  %v1874 = vadd.f32 %v1861, %v1873
  %v1875 = vpop.f32.mrf.mxu0
  %1876 = vdwg.mxu0
  %1877 = vmatpush.bf16.msra.mxu0 %v1488
  %1878 = vmatpush.bf16.msra.mxu0 %v1484
  %1879 = vmatpush.bf16.msra.mxu0 %v1480
  %1880 = vmatpush.bf16.msra.mxu0 %v1476
  %1881 = vmatpush.bf16.msra.mxu0 %v1472
  %1882 = vmatpush.bf16.msra.mxu0 %v1468
  %1883 = vmatpush.bf16.msra.mxu0 %v1464
  %1884 = vmatpush.bf16.msra.mxu0 %v1460
  %1885 = vmatmul.bf16.gmra.mxu0 %v263
  %v1886 = vpop.f32.mrf.mxu0
  %v1887 = vadd.f32 %v1874, %v1886
  %v1888 = vpop.f32.mrf.mxu0
  %1889 = vdwg.mxu0
  %1890 = vmatpush.bf16.msra.mxu0 %v1520
  %1891 = vmatpush.bf16.msra.mxu0 %v1516
  %1892 = vmatpush.bf16.msra.mxu0 %v1512
  %1893 = vmatpush.bf16.msra.mxu0 %v1508
  %1894 = vmatpush.bf16.msra.mxu0 %v1504
  %1895 = vmatpush.bf16.msra.mxu0 %v1500
  %1896 = vmatpush.bf16.msra.mxu0 %v1496
  %1897 = vmatpush.bf16.msra.mxu0 %v1492
  %1898 = vmatmul.bf16.gmra.mxu0 %v264
  %v1899 = vpop.f32.mrf.mxu0
  %v1900 = vadd.f32 %v1887, %v1899
  %v1901 = vpop.f32.mrf.mxu0
  %1902 = vdwg.mxu0
  %1903 = vmatpush.bf16.msra.mxu0 %v1552
  %1904 = vmatpush.bf16.msra.mxu0 %v1548
  %1905 = vmatpush.bf16.msra.mxu0 %v1544
  %1906 = vmatpush.bf16.msra.mxu0 %v1540
  %1907 = vmatpush.bf16.msra.mxu0 %v1536
  %1908 = vmatpush.bf16.msra.mxu0 %v1532
  %1909 = vmatpush.bf16.msra.mxu0 %v1528
  %1910 = vmatpush.bf16.msra.mxu0 %v1524
  %1911 = vmatmul.bf16.gmra.mxu0 %v265
  %v1912 = vpop.f32.mrf.mxu0
  %v1913 = vadd.f32 %v1900, %v1912
  %v1914 = vpop.f32.mrf.mxu0
  %1915 = vdwg.mxu0
  %1916 = vmatpush.bf16.msra.mxu0 %v1329
  %1917 = vmatpush.bf16.msra.mxu0 %v1325
  %1918 = vmatpush.bf16.msra.mxu0 %v1321
  %1919 = vmatpush.bf16.msra.mxu0 %v1317
  %1920 = vmatpush.bf16.msra.mxu0 %v1313
  %1921 = vmatpush.bf16.msra.mxu0 %v1309
  %1922 = vmatpush.bf16.msra.mxu0 %v1305
  %1923 = vmatpush.bf16.msra.mxu0 %v1301
  %1924 = vmatmul.bf16.gmra.mxu0 %v258
  %v1925 = vpop.f32.mrf.mxu0
  %v1926 = vadd.f32 %v525, %v1925
  %v1927 = vpop.f32.mrf.mxu0
  %1928 = vdwg.mxu0
  %1929 = vmatpush.bf16.msra.mxu0 %v1361
  %1930 = vmatpush.bf16.msra.mxu0 %v1357
  %1931 = vmatpush.bf16.msra.mxu0 %v1353
  %1932 = vmatpush.bf16.msra.mxu0 %v1349
  %1933 = vmatpush.bf16.msra.mxu0 %v1345
  %1934 = vmatpush.bf16.msra.mxu0 %v1341
  %1935 = vmatpush.bf16.msra.mxu0 %v1337
  %1936 = vmatpush.bf16.msra.mxu0 %v1333
  %1937 = vmatmul.bf16.gmra.mxu0 %v259
  %v1938 = vpop.f32.mrf.mxu0
  %v1939 = vadd.f32 %v1926, %v1938
  %v1940 = vpop.f32.mrf.mxu0
  %1941 = vdwg.mxu0
  %1942 = vmatpush.bf16.msra.mxu0 %v1393
  %1943 = vmatpush.bf16.msra.mxu0 %v1389
  %1944 = vmatpush.bf16.msra.mxu0 %v1385
  %1945 = vmatpush.bf16.msra.mxu0 %v1381
  %1946 = vmatpush.bf16.msra.mxu0 %v1377
  %1947 = vmatpush.bf16.msra.mxu0 %v1373
  %1948 = vmatpush.bf16.msra.mxu0 %v1369
  %1949 = vmatpush.bf16.msra.mxu0 %v1365
  %1950 = vmatmul.bf16.gmra.mxu0 %v260
  %v1951 = vpop.f32.mrf.mxu0
  %v1952 = vadd.f32 %v1939, %v1951
  %v1953 = vpop.f32.mrf.mxu0
  %1954 = vdwg.mxu0
  %1955 = vmatpush.bf16.msra.mxu0 %v1425
  %1956 = vmatpush.bf16.msra.mxu0 %v1421
  %1957 = vmatpush.bf16.msra.mxu0 %v1417
  %1958 = vmatpush.bf16.msra.mxu0 %v1413
  %1959 = vmatpush.bf16.msra.mxu0 %v1409
  %1960 = vmatpush.bf16.msra.mxu0 %v1405
  %1961 = vmatpush.bf16.msra.mxu0 %v1401
  %1962 = vmatpush.bf16.msra.mxu0 %v1397
  %1963 = vmatmul.bf16.gmra.mxu0 %v261
  %v1964 = vpop.f32.mrf.mxu0
  %v1965 = vadd.f32 %v1952, %v1964
  %v1966 = vpop.f32.mrf.mxu0
  %1967 = vdwg.mxu0
  %1968 = vmatpush.bf16.msra.mxu0 %v1457
  %1969 = vmatpush.bf16.msra.mxu0 %v1453
  %1970 = vmatpush.bf16.msra.mxu0 %v1449
  %1971 = vmatpush.bf16.msra.mxu0 %v1445
  %1972 = vmatpush.bf16.msra.mxu0 %v1441
  %1973 = vmatpush.bf16.msra.mxu0 %v1437
  %1974 = vmatpush.bf16.msra.mxu0 %v1433
  %1975 = vmatpush.bf16.msra.mxu0 %v1429
  %1976 = vmatmul.bf16.gmra.mxu0 %v262
  %v1977 = vpop.f32.mrf.mxu0
  %v1978 = vadd.f32 %v1965, %v1977
  %v1979 = vpop.f32.mrf.mxu0
  %1980 = vdwg.mxu0
  %1981 = vmatpush.bf16.msra.mxu0 %v1489
  %1982 = vmatpush.bf16.msra.mxu0 %v1485
  %1983 = vmatpush.bf16.msra.mxu0 %v1481
  %1984 = vmatpush.bf16.msra.mxu0 %v1477
  %1985 = vmatpush.bf16.msra.mxu0 %v1473
  %1986 = vmatpush.bf16.msra.mxu0 %v1469
  %1987 = vmatpush.bf16.msra.mxu0 %v1465
  %1988 = vmatpush.bf16.msra.mxu0 %v1461
  %1989 = vmatmul.bf16.gmra.mxu0 %v263
  %v1990 = vpop.f32.mrf.mxu0
  %v1991 = vadd.f32 %v1978, %v1990
  %v1992 = vpop.f32.mrf.mxu0
  %1993 = vdwg.mxu0
  %1994 = vmatpush.bf16.msra.mxu0 %v1521
  %1995 = vmatpush.bf16.msra.mxu0 %v1517
  %1996 = vmatpush.bf16.msra.mxu0 %v1513
  %1997 = vmatpush.bf16.msra.mxu0 %v1509
  %1998 = vmatpush.bf16.msra.mxu0 %v1505
  %1999 = vmatpush.bf16.msra.mxu0 %v1501
  %2000 = vmatpush.bf16.msra.mxu0 %v1497
  %2001 = vmatpush.bf16.msra.mxu0 %v1493
  %2002 = vmatmul.bf16.gmra.mxu0 %v264
  %v2003 = vpop.f32.mrf.mxu0
  %v2004 = vadd.f32 %v1991, %v2003
  %v2005 = vpop.f32.mrf.mxu0
  %2006 = vdwg.mxu0
  %2007 = vmatpush.bf16.msra.mxu0 %v1553
  %2008 = vmatpush.bf16.msra.mxu0 %v1549
  %2009 = vmatpush.bf16.msra.mxu0 %v1545
  %2010 = vmatpush.bf16.msra.mxu0 %v1541
  %2011 = vmatpush.bf16.msra.mxu0 %v1537
  %2012 = vmatpush.bf16.msra.mxu0 %v1533
  %2013 = vmatpush.bf16.msra.mxu0 %v1529
  %2014 = vmatpush.bf16.msra.mxu0 %v1525
  %2015 = vmatmul.bf16.gmra.mxu0 %v265
  %v2016 = vpop.f32.mrf.mxu0
  %v2017 = vadd.f32 %v2004, %v2016
  %v2018 = vpop.f32.mrf.mxu0
  %2019 = vdwg.mxu0
  %2020 = vmatpush.bf16.msra.mxu0 %v1330
  %2021 = vmatpush.bf16.msra.mxu0 %v1326
  %2022 = vmatpush.bf16.msra.mxu0 %v1322
  %2023 = vmatpush.bf16.msra.mxu0 %v1318
  %2024 = vmatpush.bf16.msra.mxu0 %v1314
  %2025 = vmatpush.bf16.msra.mxu0 %v1310
  %2026 = vmatpush.bf16.msra.mxu0 %v1306
  %2027 = vmatpush.bf16.msra.mxu0 %v1302
  %2028 = vmatmul.bf16.gmra.mxu0 %v258
  %v2029 = vpop.f32.mrf.mxu0
  %v2030 = vadd.f32 %v526, %v2029
  %v2031 = vpop.f32.mrf.mxu0
  %2032 = vdwg.mxu0
  %2033 = vmatpush.bf16.msra.mxu0 %v1362
  %2034 = vmatpush.bf16.msra.mxu0 %v1358
  %2035 = vmatpush.bf16.msra.mxu0 %v1354
  %2036 = vmatpush.bf16.msra.mxu0 %v1350
  %2037 = vmatpush.bf16.msra.mxu0 %v1346
  %2038 = vmatpush.bf16.msra.mxu0 %v1342
  %2039 = vmatpush.bf16.msra.mxu0 %v1338
  %2040 = vmatpush.bf16.msra.mxu0 %v1334
  %2041 = vmatmul.bf16.gmra.mxu0 %v259
  %v2042 = vpop.f32.mrf.mxu0
  %v2043 = vadd.f32 %v2030, %v2042
  %v2044 = vpop.f32.mrf.mxu0
  %2045 = vdwg.mxu0
  %2046 = vmatpush.bf16.msra.mxu0 %v1394
  %2047 = vmatpush.bf16.msra.mxu0 %v1390
  %2048 = vmatpush.bf16.msra.mxu0 %v1386
  %2049 = vmatpush.bf16.msra.mxu0 %v1382
  %2050 = vmatpush.bf16.msra.mxu0 %v1378
  %2051 = vmatpush.bf16.msra.mxu0 %v1374
  %2052 = vmatpush.bf16.msra.mxu0 %v1370
  %2053 = vmatpush.bf16.msra.mxu0 %v1366
  %2054 = vmatmul.bf16.gmra.mxu0 %v260
  %v2055 = vpop.f32.mrf.mxu0
  %v2056 = vadd.f32 %v2043, %v2055
  %v2057 = vpop.f32.mrf.mxu0
  %2058 = vdwg.mxu0
  %2059 = vmatpush.bf16.msra.mxu0 %v1426
  %2060 = vmatpush.bf16.msra.mxu0 %v1422
  %2061 = vmatpush.bf16.msra.mxu0 %v1418
  %2062 = vmatpush.bf16.msra.mxu0 %v1414
  %2063 = vmatpush.bf16.msra.mxu0 %v1410
  %2064 = vmatpush.bf16.msra.mxu0 %v1406
  %2065 = vmatpush.bf16.msra.mxu0 %v1402
  %2066 = vmatpush.bf16.msra.mxu0 %v1398
  %2067 = vmatmul.bf16.gmra.mxu0 %v261
  %v2068 = vpop.f32.mrf.mxu0
  %v2069 = vadd.f32 %v2056, %v2068
  %v2070 = vpop.f32.mrf.mxu0
  %2071 = vdwg.mxu0
  %2072 = vmatpush.bf16.msra.mxu0 %v1458
  %2073 = vmatpush.bf16.msra.mxu0 %v1454
  %2074 = vmatpush.bf16.msra.mxu0 %v1450
  %2075 = vmatpush.bf16.msra.mxu0 %v1446
  %2076 = vmatpush.bf16.msra.mxu0 %v1442
  %2077 = vmatpush.bf16.msra.mxu0 %v1438
  %2078 = vmatpush.bf16.msra.mxu0 %v1434
  %2079 = vmatpush.bf16.msra.mxu0 %v1430
  %2080 = vmatmul.bf16.gmra.mxu0 %v262
  %v2081 = vpop.f32.mrf.mxu0
  %v2082 = vadd.f32 %v2069, %v2081
  %v2083 = vpop.f32.mrf.mxu0
  %2084 = vdwg.mxu0
  %2085 = vmatpush.bf16.msra.mxu0 %v1490
  %2086 = vmatpush.bf16.msra.mxu0 %v1486
  %2087 = vmatpush.bf16.msra.mxu0 %v1482
  %2088 = vmatpush.bf16.msra.mxu0 %v1478
  %2089 = vmatpush.bf16.msra.mxu0 %v1474
  %2090 = vmatpush.bf16.msra.mxu0 %v1470
  %2091 = vmatpush.bf16.msra.mxu0 %v1466
  %2092 = vmatpush.bf16.msra.mxu0 %v1462
  %2093 = vmatmul.bf16.gmra.mxu0 %v263
  %v2094 = vpop.f32.mrf.mxu0
  %v2095 = vadd.f32 %v2082, %v2094
  %v2096 = vpop.f32.mrf.mxu0
  %2097 = vdwg.mxu0
  %2098 = vmatpush.bf16.msra.mxu0 %v1522
  %2099 = vmatpush.bf16.msra.mxu0 %v1518
  %2100 = vmatpush.bf16.msra.mxu0 %v1514
  %2101 = vmatpush.bf16.msra.mxu0 %v1510
  %2102 = vmatpush.bf16.msra.mxu0 %v1506
  %2103 = vmatpush.bf16.msra.mxu0 %v1502
  %2104 = vmatpush.bf16.msra.mxu0 %v1498
  %2105 = vmatpush.bf16.msra.mxu0 %v1494
  %2106 = vmatmul.bf16.gmra.mxu0 %v264
  %v2107 = vpop.f32.mrf.mxu0
  %v2108 = vadd.f32 %v2095, %v2107
  %v2109 = vpop.f32.mrf.mxu0
  %2110 = vdwg.mxu0
  %2111 = vmatpush.bf16.msra.mxu0 %v1554
  %2112 = vmatpush.bf16.msra.mxu0 %v1550
  %2113 = vmatpush.bf16.msra.mxu0 %v1546
  %2114 = vmatpush.bf16.msra.mxu0 %v1542
  %2115 = vmatpush.bf16.msra.mxu0 %v1538
  %2116 = vmatpush.bf16.msra.mxu0 %v1534
  %2117 = vmatpush.bf16.msra.mxu0 %v1530
  %2118 = vmatpush.bf16.msra.mxu0 %v1526
  %2119 = vmatmul.bf16.gmra.mxu0 %v265
  %v2120 = vpop.f32.mrf.mxu0
  %v2121 = vadd.f32 %v2108, %v2120
  %v2122 = vpop.f32.mrf.mxu0
  %2123 = vdwg.mxu0
  %2124 = vmatpush.bf16.msra.mxu0 %v1331
  %2125 = vmatpush.bf16.msra.mxu0 %v1327
  %2126 = vmatpush.bf16.msra.mxu0 %v1323
  %2127 = vmatpush.bf16.msra.mxu0 %v1319
  %2128 = vmatpush.bf16.msra.mxu0 %v1315
  %2129 = vmatpush.bf16.msra.mxu0 %v1311
  %2130 = vmatpush.bf16.msra.mxu0 %v1307
  %2131 = vmatpush.bf16.msra.mxu0 %v1303
  %2132 = vmatmul.bf16.gmra.mxu0 %v258
  %v2133 = vpop.f32.mrf.mxu0
  %v2134 = vadd.f32 %v527, %v2133
  %v2135 = vpop.f32.mrf.mxu0
  %2136 = vdwg.mxu0
  %2137 = vmatpush.bf16.msra.mxu0 %v1363
  %2138 = vmatpush.bf16.msra.mxu0 %v1359
  %2139 = vmatpush.bf16.msra.mxu0 %v1355
  %2140 = vmatpush.bf16.msra.mxu0 %v1351
  %2141 = vmatpush.bf16.msra.mxu0 %v1347
  %2142 = vmatpush.bf16.msra.mxu0 %v1343
  %2143 = vmatpush.bf16.msra.mxu0 %v1339
  %2144 = vmatpush.bf16.msra.mxu0 %v1335
  %2145 = vmatmul.bf16.gmra.mxu0 %v259
  %v2146 = vpop.f32.mrf.mxu0
  %v2147 = vadd.f32 %v2134, %v2146
  %v2148 = vpop.f32.mrf.mxu0
  %2149 = vdwg.mxu0
  %2150 = vmatpush.bf16.msra.mxu0 %v1395
  %2151 = vmatpush.bf16.msra.mxu0 %v1391
  %2152 = vmatpush.bf16.msra.mxu0 %v1387
  %2153 = vmatpush.bf16.msra.mxu0 %v1383
  %2154 = vmatpush.bf16.msra.mxu0 %v1379
  %2155 = vmatpush.bf16.msra.mxu0 %v1375
  %2156 = vmatpush.bf16.msra.mxu0 %v1371
  %2157 = vmatpush.bf16.msra.mxu0 %v1367
  %2158 = vmatmul.bf16.gmra.mxu0 %v260
  %v2159 = vpop.f32.mrf.mxu0
  %v2160 = vadd.f32 %v2147, %v2159
  %v2161 = vpop.f32.mrf.mxu0
  %2162 = vdwg.mxu0
  %2163 = vmatpush.bf16.msra.mxu0 %v1427
  %2164 = vmatpush.bf16.msra.mxu0 %v1423
  %2165 = vmatpush.bf16.msra.mxu0 %v1419
  %2166 = vmatpush.bf16.msra.mxu0 %v1415
  %2167 = vmatpush.bf16.msra.mxu0 %v1411
  %2168 = vmatpush.bf16.msra.mxu0 %v1407
  %2169 = vmatpush.bf16.msra.mxu0 %v1403
  %2170 = vmatpush.bf16.msra.mxu0 %v1399
  %2171 = vmatmul.bf16.gmra.mxu0 %v261
  %v2172 = vpop.f32.mrf.mxu0
  %v2173 = vadd.f32 %v2160, %v2172
  %v2174 = vpop.f32.mrf.mxu0
  %2175 = vdwg.mxu0
  %2176 = vmatpush.bf16.msra.mxu0 %v1459
  %2177 = vmatpush.bf16.msra.mxu0 %v1455
  %2178 = vmatpush.bf16.msra.mxu0 %v1451
  %2179 = vmatpush.bf16.msra.mxu0 %v1447
  %2180 = vmatpush.bf16.msra.mxu0 %v1443
  %2181 = vmatpush.bf16.msra.mxu0 %v1439
  %2182 = vmatpush.bf16.msra.mxu0 %v1435
  %2183 = vmatpush.bf16.msra.mxu0 %v1431
  %2184 = vmatmul.bf16.gmra.mxu0 %v262
  %v2185 = vpop.f32.mrf.mxu0
  %v2186 = vadd.f32 %v2173, %v2185
  %v2187 = vpop.f32.mrf.mxu0
  %2188 = vdwg.mxu0
  %2189 = vmatpush.bf16.msra.mxu0 %v1491
  %2190 = vmatpush.bf16.msra.mxu0 %v1487
  %2191 = vmatpush.bf16.msra.mxu0 %v1483
  %2192 = vmatpush.bf16.msra.mxu0 %v1479
  %2193 = vmatpush.bf16.msra.mxu0 %v1475
  %2194 = vmatpush.bf16.msra.mxu0 %v1471
  %2195 = vmatpush.bf16.msra.mxu0 %v1467
  %2196 = vmatpush.bf16.msra.mxu0 %v1463
  %2197 = vmatmul.bf16.gmra.mxu0 %v263
  %v2198 = vpop.f32.mrf.mxu0
  %v2199 = vadd.f32 %v2186, %v2198
  %v2200 = vpop.f32.mrf.mxu0
  %2201 = vdwg.mxu0
  %2202 = vmatpush.bf16.msra.mxu0 %v1523
  %2203 = vmatpush.bf16.msra.mxu0 %v1519
  %2204 = vmatpush.bf16.msra.mxu0 %v1515
  %2205 = vmatpush.bf16.msra.mxu0 %v1511
  %2206 = vmatpush.bf16.msra.mxu0 %v1507
  %2207 = vmatpush.bf16.msra.mxu0 %v1503
  %2208 = vmatpush.bf16.msra.mxu0 %v1499
  %2209 = vmatpush.bf16.msra.mxu0 %v1495
  %2210 = vmatmul.bf16.gmra.mxu0 %v264
  %v2211 = vpop.f32.mrf.mxu0
  %v2212 = vadd.f32 %v2199, %v2211
  %v2213 = vpop.f32.mrf.mxu0
  %2214 = vdwg.mxu0
  %2215 = vmatpush.bf16.msra.mxu0 %v1555
  %2216 = vmatpush.bf16.msra.mxu0 %v1551
  %2217 = vmatpush.bf16.msra.mxu0 %v1547
  %2218 = vmatpush.bf16.msra.mxu0 %v1543
  %2219 = vmatpush.bf16.msra.mxu0 %v1539
  %2220 = vmatpush.bf16.msra.mxu0 %v1535
  %2221 = vmatpush.bf16.msra.mxu0 %v1531
  %2222 = vmatpush.bf16.msra.mxu0 %v1527
  %2223 = vmatmul.bf16.gmra.mxu0 %v265
  %v2224 = vpop.f32.mrf.mxu0
  %v2225 = vadd.f32 %v2212, %v2224
  %v2226 = vpop.f32.mrf.mxu0
  %2227 = vdwg.mxu0
  %v2228 = vmax.f32 %v1913, 0.0
  %v2229 = vmax.f32 %v2017, 0.0
  %v2230 = vmax.f32 %v2121, 0.0
  %v2231 = vmax.f32 %v2225, 0.0
  %v2232 = vpack.c.bf16 %v2228, %v2228
  %v2233 = vpack.c.bf16 %v2229, %v2229
  %v2234 = vpack.c.bf16 %v2230, %v2230
  %v2235 = vpack.c.bf16 %v2231, %v2231
  %v2236 = vld [vmem:[%s5] sm:$0xf]
  %v2237 = vld [vmem:[%s5 + $0x4] sm:$0xf]
  %v2238 = vld [vmem:[%s5 + $0x8] sm:$0xf]
  %v2239 = vld [vmem:[%s5 + $0xc] sm:$0xf]
  %v2240 = vld [vmem:[%s5 + $0x10] sm:$0xf]
  %v2241 = vld [vmem:[%s5 + $0x14] sm:$0xf]
  %v2242 = vld [vmem:[%s5 + $0x18] sm:$0xf]
  %v2243 = vld [vmem:[%s5 + $0x1c] sm:$0xf]
  %v2244 = vld [vmem:[%s5 + $0x20] sm:$0xf]
  %v2245 = vld [vmem:[%s5 + $0x24] sm:$0xf]
  %v2246 = vld [vmem:[%s5 + $0x28] sm:$0xf]
  %v2247 = vld [vmem:[%s5 + $0x2c] sm:$0xf]
  %v2248 = vld [vmem:[%s5 + $0x30] sm:$0xf]
  %v2249 = vld [vmem:[%s5 + $0x34] sm:$0xf]
  %v2250 = vld [vmem:[%s5 + $0x38] sm:$0xf]
  %v2251 = vld [vmem:[%s5 + $0x3c] sm:$0xf]
  %v2252 = vld [vmem:[%s5 + $0x40] sm:$0xf]
  %v2253 = vld [vmem:[%s5 + $0x44] sm:$0xf]
  %v2254 = vld [vmem:[%s5 + $0x48] sm:$0xf]
  %v2255 = vld [vmem:[%s5 + $0x4c] sm:$0xf]
  %v2256 = vld [vmem:[%s5 + $0x50] sm:$0xf]
  %v2257 = vld [vmem:[%s5 + $0x54] sm:$0xf]
  %v2258 = vld [vmem:[%s5 + $0x58] sm:$0xf]
  %v2259 = vld [vmem:[%s5 + $0x5c] sm:$0xf]
  %v2260 = vld [vmem:[%s5 + $0x60] sm:$0xf]
  %v2261 = vld [vmem:[%s5 + $0x64] sm:$0xf]
  %v2262 = vld [vmem:[%s5 + $0x68] sm:$0xf]
  %v2263 = vld [vmem:[%s5 + $0x6c] sm:$0xf]
  %v2264 = vld [vmem:[%s5 + $0x70] sm:$0xf]
  %v2265 = vld [vmem:[%s5 + $0x74] sm:$0xf]
  %v2266 = vld [vmem:[%s5 + $0x78] sm:$0xf]
  %v2267 = vld [vmem:[%s5 + $0x7c] sm:$0xf]
  %v2268 = vld [vmem:[%s5 + $0x80] sm:$0xf]
  %v2269 = vld [vmem:[%s5 + $0x84] sm:$0xf]
  %v2270 = vld [vmem:[%s5 + $0x88] sm:$0xf]
  %v2271 = vld [vmem:[%s5 + $0x8c] sm:$0xf]
  %v2272 = vld [vmem:[%s5 + $0x90] sm:$0xf]
  %v2273 = vld [vmem:[%s5 + $0x94] sm:$0xf]
  %v2274 = vld [vmem:[%s5 + $0x98] sm:$0xf]
  %v2275 = vld [vmem:[%s5 + $0x9c] sm:$0xf]
  %v2276 = vld [vmem:[%s5 + $0xa0] sm:$0xf]
  %v2277 = vld [vmem:[%s5 + $0xa4] sm:$0xf]
  %v2278 = vld [vmem:[%s5 + $0xa8] sm:$0xf]
  %v2279 = vld [vmem:[%s5 + $0xac] sm:$0xf]
  %v2280 = vld [vmem:[%s5 + $0xb0] sm:$0xf]
  %v2281 = vld [vmem:[%s5 + $0xb4] sm:$0xf]
  %v2282 = vld [vmem:[%s5 + $0xb8] sm:$0xf]
  %v2283 = vld [vmem:[%s5 + $0xbc] sm:$0xf]
  %v2284 = vld [vmem:[%s5 + $0xc0] sm:$0xf]
  %v2285 = vld [vmem:[%s5 + $0xc4] sm:$0xf]
  %v2286 = vld [vmem:[%s5 + $0xc8] sm:$0xf]
  %v2287 = vld [vmem:[%s5 + $0xcc] sm:$0xf]
  %v2288 = vld [vmem:[%s5 + $0xd0] sm:$0xf]
  %v2289 = vld [vmem:[%s5 + $0xd4] sm:$0xf]
  %v2290 = vld [vmem:[%s5 + $0xd8] sm:$0xf]
  %v2291 = vld [vmem:[%s5 + $0xdc] sm:$0xf]
  %v2292 = vld [vmem:[%s5 + $0xe0] sm:$0xf]
  %v2293 = vld [vmem:[%s5 + $0xe4] sm:$0xf]
  %v2294 = vld [vmem:[%s5 + $0xe8] sm:$0xf]
  %v2295 = vld [vmem:[%s5 + $0xec] sm:$0xf]
  %v2296 = vld [vmem:[%s5 + $0xf0] sm:$0xf]
  %v2297 = vld [vmem:[%s5 + $0xf4] sm:$0xf]
  %v2298 = vld [vmem:[%s5 + $0xf8] sm:$0xf]
  %v2299 = vld [vmem:[%s5 + $0xfc] sm:$0xf]
  %v2300 = vld [vmem:[%s6] sm:$0x1]
  %v2302 = vperm.slane %v2300, 0
  %v2368 = vunpack.c.l.b16 %v2236
  %v2369 = vunpack.c.l.b16 %v2237
  %v2370 = vunpack.c.l.b16 %v2238
  %v2371 = vunpack.c.l.b16 %v2239
  %v2372 = vunpack.c.l.b16 %v2240
  %v2373 = vunpack.c.l.b16 %v2241
  %v2374 = vunpack.c.l.b16 %v2242
  %v2375 = vunpack.c.l.b16 %v2243
  %v2376 = vunpack.c.l.b16 %v2244
  %v2377 = vunpack.c.l.b16 %v2245
  %v2378 = vunpack.c.l.b16 %v2246
  %v2379 = vunpack.c.l.b16 %v2247
  %v2380 = vunpack.c.l.b16 %v2248
  %v2381 = vunpack.c.l.b16 %v2249
  %v2382 = vunpack.c.l.b16 %v2250
  %v2383 = vunpack.c.l.b16 %v2251
  %v2384 = vunpack.c.l.b16 %v2252
  %v2385 = vunpack.c.l.b16 %v2253
  %v2386 = vunpack.c.l.b16 %v2254
  %v2387 = vunpack.c.l.b16 %v2255
  %v2388 = vunpack.c.l.b16 %v2256
  %v2389 = vunpack.c.l.b16 %v2257
  %v2390 = vunpack.c.l.b16 %v2258
  %v2391 = vunpack.c.l.b16 %v2259
  %v2392 = vunpack.c.l.b16 %v2260
  %v2393 = vunpack.c.l.b16 %v2261
  %v2394 = vunpack.c.l.b16 %v2262
  %v2395 = vunpack.c.l.b16 %v2263
  %v2396 = vunpack.c.l.b16 %v2264
  %v2397 = vunpack.c.l.b16 %v2265
  %v2398 = vunpack.c.l.b16 %v2266
  %v2399 = vunpack.c.l.b16 %v2267
  %v2400 = vunpack.c.l.b16 %v2268
  %v2401 = vunpack.c.l.b16 %v2269
  %v2402 = vunpack.c.l.b16 %v2270
  %v2403 = vunpack.c.l.b16 %v2271
  %v2404 = vunpack.c.l.b16 %v2272
  %v2405 = vunpack.c.l.b16 %v2273
  %v2406 = vunpack.c.l.b16 %v2274
  %v2407 = vunpack.c.l.b16 %v2275
  %v2408 = vunpack.c.l.b16 %v2276
  %v2409 = vunpack.c.l.b16 %v2277
  %v2410 = vunpack.c.l.b16 %v2278
  %v2411 = vunpack.c.l.b16 %v2279
  %v2412 = vunpack.c.l.b16 %v2280
  %v2413 = vunpack.c.l.b16 %v2281
  %v2414 = vunpack.c.l.b16 %v2282
  %v2415 = vunpack.c.l.b16 %v2283
  %v2416 = vunpack.c.l.b16 %v2284
  %v2417 = vunpack.c.l.b16 %v2285
  %v2418 = vunpack.c.l.b16 %v2286
  %v2419 = vunpack.c.l.b16 %v2287
  %v2420 = vunpack.c.l.b16 %v2288
  %v2421 = vunpack.c.l.b16 %v2289
  %v2422 = vunpack.c.l.b16 %v2290
  %v2423 = vunpack.c.l.b16 %v2291
  %v2424 = vunpack.c.l.b16 %v2292
  %v2425 = vunpack.c.l.b16 %v2293
  %v2426 = vunpack.c.l.b16 %v2294
  %v2427 = vunpack.c.l.b16 %v2295
  %v2428 = vunpack.c.l.b16 %v2296
  %v2429 = vunpack.c.l.b16 %v2297
  %v2430 = vunpack.c.l.b16 %v2298
  %v2431 = vunpack.c.l.b16 %v2299
  %v2432 = vpack.c.b16 %v2369, %v2368
  %v2433 = vpack.c.b16 %v2371, %v2370
  %v2434 = vpack.c.b16 %v2373, %v2372
  %v2435 = vpack.c.b16 %v2375, %v2374
  %v2436 = vpack.c.b16 %v2377, %v2376
  %v2437 = vpack.c.b16 %v2379, %v2378
  %v2438 = vpack.c.b16 %v2381, %v2380
  %v2439 = vpack.c.b16 %v2383, %v2382
  %v2440 = vpack.c.b16 %v2385, %v2384
  %v2441 = vpack.c.b16 %v2387, %v2386
  %v2442 = vpack.c.b16 %v2389, %v2388
  %v2443 = vpack.c.b16 %v2391, %v2390
  %v2444 = vpack.c.b16 %v2393, %v2392
  %v2445 = vpack.c.b16 %v2395, %v2394
  %v2446 = vpack.c.b16 %v2397, %v2396
  %v2447 = vpack.c.b16 %v2399, %v2398
  %v2448 = vpack.c.b16 %v2401, %v2400
  %v2449 = vpack.c.b16 %v2403, %v2402
  %v2450 = vpack.c.b16 %v2405, %v2404
  %v2451 = vpack.c.b16 %v2407, %v2406
  %v2452 = vpack.c.b16 %v2409, %v2408
  %v2453 = vpack.c.b16 %v2411, %v2410
  %v2454 = vpack.c.b16 %v2413, %v2412
  %v2455 = vpack.c.b16 %v2415, %v2414
  %v2456 = vpack.c.b16 %v2417, %v2416
  %v2457 = vpack.c.b16 %v2419, %v2418
  %v2458 = vpack.c.b16 %v2421, %v2420
  %v2459 = vpack.c.b16 %v2423, %v2422
  %v2460 = vpack.c.b16 %v2425, %v2424
  %v2461 = vpack.c.b16 %v2427, %v2426
  %v2462 = vpack.c.b16 %v2429, %v2428
  %v2463 = vpack.c.b16 %v2431, %v2430
  %2496 = vmatpush.bf16.msra.mxu0 %v2439
  %2497 = vmatpush.bf16.msra.mxu0 %v2438
  %2498 = vmatpush.bf16.msra.mxu0 %v2437
  %2499 = vmatpush.bf16.msra.mxu0 %v2436
  %2500 = vmatpush.bf16.msra.mxu0 %v2435
  %2501 = vmatpush.bf16.msra.mxu0 %v2434
  %2502 = vmatpush.bf16.msra.mxu0 %v2433
  %2503 = vmatpush.bf16.msra.mxu0 %v2432
  %2504 = vmatmul.bf16.gmra.mxu0 %v2232
  %v2505 = vpop.f32.mrf.mxu0
  %v2506 = vadd.f32 %v2302, %v2505
  %v2507 = vpop.f32.mrf.mxu0
  %2508 = vdwg.mxu0
  %2509 = vmatpush.bf16.msra.mxu0 %v2447
  %2510 = vmatpush.bf16.msra.mxu0 %v2446
  %2511 = vmatpush.bf16.msra.mxu0 %v2445
  %2512 = vmatpush.bf16.msra.mxu0 %v2444
  %2513 = vmatpush.bf16.msra.mxu0 %v2443
  %2514 = vmatpush.bf16.msra.mxu0 %v2442
  %2515 = vmatpush.bf16.msra.mxu0 %v2441
  %2516 = vmatpush.bf16.msra.mxu0 %v2440
  %2517 = vmatmul.bf16.gmra.mxu0 %v2233
  %v2518 = vpop.f32.mrf.mxu0
  %v2519 = vadd.f32 %v2506, %v2518
  %v2520 = vpop.f32.mrf.mxu0
  %2521 = vdwg.mxu0
  %2522 = vmatpush.bf16.msra.mxu0 %v2455
  %2523 = vmatpush.bf16.msra.mxu0 %v2454
  %2524 = vmatpush.bf16.msra.mxu0 %v2453
  %2525 = vmatpush.bf16.msra.mxu0 %v2452
  %2526 = vmatpush.bf16.msra.mxu0 %v2451
  %2527 = vmatpush.bf16.msra.mxu0 %v2450
  %2528 = vmatpush.bf16.msra.mxu0 %v2449
  %2529 = vmatpush.bf16.msra.mxu0 %v2448
  %2530 = vmatmul.bf16.gmra.mxu0 %v2234
  %v2531 = vpop.f32.mrf.mxu0
  %v2532 = vadd.f32 %v2519, %v2531
  %v2533 = vpop.f32.mrf.mxu0
  %2534 = vdwg.mxu0
  %2535 = vmatpush.bf16.msra.mxu0 %v2463
  %2536 = vmatpush.bf16.msra.mxu0 %v2462
  %2537 = vmatpush.bf16.msra.mxu0 %v2461
  %2538 = vmatpush.bf16.msra.mxu0 %v2460
  %2539 = vmatpush.bf16.msra.mxu0 %v2459
  %2540 = vmatpush.bf16.msra.mxu0 %v2458
  %2541 = vmatpush.bf16.msra.mxu0 %v2457
  %2542 = vmatpush.bf16.msra.mxu0 %v2456
  %2543 = vmatmul.bf16.gmra.mxu0 %v2235
  %v2544 = vpop.f32.mrf.mxu0
  %v2545 = vadd.f32 %v2532, %v2544
  %v2546 = vpop.f32.mrf.mxu0
  %2547 = vdwg.mxu0
  %v2548 = vxor.u32 %v2545, 2147483648
  %v2549 = vmul.f32 %v2548, 1.442695
  %v2550 = vpow.pop %v2549
  %v2551 = vadd.f32 %v2550, 1.0
  %v2552 = vrcp.pop %v2551
  %v2553 = vmul.f32 %v2551, %v2552
  %v2554 = vsub.f32 1.0, %v2553
  %v2555 = vmul.f32 %v2552, %v2554
  %v2556 = vadd.f32 %v2552, %v2555
  %vm2557 = vweird.f32 %v2551
  %vm2558 = vweird.f32 %v2552
  %vm2559 = vmor %vm2557, %vm2558
  %v2560 = vsel %vm2559, %v2552, %v2556
  %v2561 = vand.u32 2147483647, %v2551
  %vm2562 = vcmp.eq.f32.partialorder %v2561, 8.507059e+37
  %v2563 = vand.u32 %v2551, 2147483648
  %v2564 = vor.u32 1.1754944e-38, %v2563
  %v2565 = vsel %vm2562, %v2564, %v2560
  %v2566 = vmul.f32 1.0, %v2565
  %2567 = vst [vmem:[%s7] sm:$0xff] %v2566
  // Predicated region
  $region30: #{_forward.1} parent=0 // pred_check
    _
  $region31: #{_forward.1} parent=0 // pred_check_branch
    %2569 = sbr.rel (0) target = $region33
  $region32: #{_forward.1} parent=0 // pred_region
    _
  $region33: #{_forward.1} parent=0 // pred_fallthru
    _
  // Predicated region
  $region34: #{_forward.1} parent=0 // pred_check
    _
  $region35: #{_forward.1} parent=0 // pred_check_branch
    %2571 = sbr.rel (0) target = $region37
  $region36: #{_forward.1} parent=0 // pred_region
    _
  $region37: #{_forward.1} parent=0 // pred_fallthru
    _

</llo_original>
